<compile_context>
chip_gen: v7x
topology: tpu7x:2x2x1
jax: 0.10.0
libtpu: 0.0.40
codegen_flags: <defaults>
</compile_context>

<pallas_src>
import functools

import jax
import jax.numpy as jnp
from jax.experimental import pallas as pl
from jax.experimental.pallas import tpu as pltpu

BN_EPS = 1e-5


def _gelu_exact(x):
    # matches PyTorch nn.GELU() default (erf-based)
    return 0.5 * x * (1.0 + jax.lax.erf(x * jnp.float32(0.7071067811865476)))


def _round_up(x, m):
    return (x + m - 1) // m * m


@functools.partial(jax.jit, static_argnames=("window",))
def series_embedding(x, w1, b1, g1, be1, w2, b2, g2, be2, *, window):
    B, C_in, L = x.shape
    L_out = L - window + 1
    hidden = w1.shape[0]          # w1: (hidden, C_in, window)
    c_out = w2.shape[0]           # w2: (c_out, hidden, 1)
    K1 = C_in * window

    HP = _round_up(hidden, 128)   # hidden channels, lane-padded
    CL = _round_up(c_out, 128)    # out channels, lane-padded for in-kernel compute
    CP = _round_up(c_out, 8)      # out channels, sublane-padded for the NCL output
    TL = min(512, _round_up(L_out, 128))   # tile over output positions (lane-dense)
    LP = _round_up(L_out, TL)
    NT = LP // TL
    n_valid = jnp.float32(B * L_out)

    # ---- layout glue (plain JAX): im2col + weight reshape / zero padding -------------
    f32 = jnp.float32
    idx = jnp.arange(L_out)[:, None] + jnp.arange(window)[None, :]      # (L_out, window)
    patches = x[:, :, idx].transpose(0, 2, 1, 3).reshape(B, L_out, K1)
    patches = jnp.pad(patches.astype(f32), ((0, 0), (0, LP - L_out), (0, 0)))

    # zero padding keeps padded channels exactly inert through GELU/BN/matmul
    w1m = jnp.pad(w1.reshape(hidden, K1).T.astype(f32), ((0, 0), (0, HP - hidden)))
    w2m = jnp.pad(w2.reshape(c_out, hidden).T.astype(f32),
                  ((0, HP - hidden), (0, CL - c_out)))
    b1p = jnp.pad(b1.astype(f32), (0, HP - hidden)).reshape(1, HP)
    g1p = jnp.pad(g1.astype(f32), (0, HP - hidden)).reshape(1, HP)
    be1p = jnp.pad(be1.astype(f32), (0, HP - hidden)).reshape(1, HP)
    b2p = jnp.pad(b2.astype(f32), (0, CL - c_out)).reshape(1, CL)
    g2p = jnp.pad(g2.astype(f32), (0, CL - c_out)).reshape(1, CL)
    be2p = jnp.pad(be2.astype(f32), (0, CL - c_out)).reshape(1, CL)

    # ---- block specs ------------------------------------------------------------------
    grid = (B, NT)
    p_spec = pl.BlockSpec((1, TL, K1), lambda b, t: (b, t, 0))
    w1_spec = pl.BlockSpec((K1, HP), lambda b, t: (0, 0))
    w2_spec = pl.BlockSpec((HP, CL), lambda b, t: (0, 0))
    vh_spec = pl.BlockSpec((1, HP), lambda b, t: (0, 0))
    vc_spec = pl.BlockSpec((1, CL), lambda b, t: (0, 0))
    out_spec = pl.BlockSpec((1, CP, TL), lambda b, t: (b, 0, t))

    acc_params = pltpu.CompilerParams(
        dimension_semantics=("arbitrary", "arbitrary"),   # shared accumulator output
        vmem_limit_bytes=64 * 1024 * 1024)
    par_params = pltpu.CompilerParams(
        dimension_semantics=("parallel", "parallel"),
        vmem_limit_bytes=64 * 1024 * 1024)

    def _row_mask():
        rows = jax.lax.broadcasted_iota(jnp.int32, (TL, 1), 0)
        return (pl.program_id(1) * TL + rows) < L_out

    def _h_tile(p_ref, w1_ref, b1_ref):
        h = jnp.dot(p_ref[0], w1_ref[...], preferred_element_type=jnp.float32)
        return _gelu_exact(h + b1_ref[...])

    # ---- pass 1: BN1 batch statistics ---------------------------------------------------
    def stats1_kernel(p_ref, w1_ref, b1_ref, s_ref, q_ref):
        @pl.when((pl.program_id(0) == 0) & (pl.program_id(1) == 0))
        def _():
            s_ref[...] = jnp.zeros_like(s_ref)
            q_ref[...] = jnp.zeros_like(q_ref)

        h = jnp.where(_row_mask(), _h_tile(p_ref, w1_ref, b1_ref), 0.0)
        s_ref[...] += jnp.sum(h, axis=0, keepdims=True)
        q_ref[...] += jnp.sum(h * h, axis=0, keepdims=True)

    sum1, sq1 = pl.pallas_call(
        stats1_kernel,
        out_shape=(jax.ShapeDtypeStruct((1, HP), f32),
                   jax.ShapeDtypeStruct((1, HP), f32)),
        grid=grid,
        in_specs=[p_spec, w1_spec, vh_spec],
        out_specs=(vh_spec, vh_spec),
        compiler_params=acc_params,
    )(patches, w1m, b1p)

    mean1 = sum1 / n_valid
    var1 = jnp.maximum(sq1 / n_valid - mean1 * mean1, 0.0)
    a1 = g1p * jax.lax.rsqrt(var1 + BN_EPS)
    c1 = be1p - mean1 * a1

    # ---- pass 2: BN2 batch statistics ---------------------------------------------------
    def stats2_kernel(p_ref, w1_ref, b1_ref, a1_ref, c1_ref, w2_ref, b2_ref,
                      s_ref, q_ref):
        @pl.when((pl.program_id(0) == 0) & (pl.program_id(1) == 0))
        def _():
            s_ref[...] = jnp.zeros_like(s_ref)
            q_ref[...] = jnp.zeros_like(q_ref)

        h = _h_tile(p_ref, w1_ref, b1_ref)
        hn = h * a1_ref[...] + c1_ref[...]
        y = jnp.dot(hn, w2_ref[...], preferred_element_type=jnp.float32)
        y = _gelu_exact(y + b2_ref[...])
        y = jnp.where(_row_mask(), y, 0.0)
        s_ref[...] += jnp.sum(y, axis=0, keepdims=True)
        q_ref[...] += jnp.sum(y * y, axis=0, keepdims=True)

    sum2, sq2 = pl.pallas_call(
        stats2_kernel,
        out_shape=(jax.ShapeDtypeStruct((1, CL), f32),
                   jax.ShapeDtypeStruct((1, CL), f32)),
        grid=grid,
        in_specs=[p_spec, w1_spec, vh_spec, vh_spec, vh_spec, w2_spec, vc_spec],
        out_specs=(vc_spec, vc_spec),
        compiler_params=acc_params,
    )(patches, w1m, b1p, a1, c1, w2m, b2p)

    mean2 = sum2 / n_valid
    var2 = jnp.maximum(sq2 / n_valid - mean2 * mean2, 0.0)
    a2 = g2p * jax.lax.rsqrt(var2 + BN_EPS)
    c2 = be2p - mean2 * a2

    # ---- pass 3: normalized output, written directly in NCL layout (lane-dense in L) ---
    def final_kernel(p_ref, w1_ref, b1_ref, a1_ref, c1_ref, w2_ref, b2_ref,
                     a2_ref, c2_ref, out_ref):
        h = _h_tile(p_ref, w1_ref, b1_ref)
        hn = h * a1_ref[...] + c1_ref[...]
        y = jnp.dot(hn, w2_ref[...], preferred_element_type=jnp.float32)
        y = _gelu_exact(y + b2_ref[...])
        z = y * a2_ref[...] + c2_ref[...]            # (TL, CL)
        zt = z.T                                     # (CL, TL): L on lanes, unmasked stores
        out_ref[0] = zt[:CP, :].astype(out_ref.dtype)

    out = pl.pallas_call(
        final_kernel,
        out_shape=jax.ShapeDtypeStruct((B, CP, LP), f32),
        grid=grid,
        in_specs=[p_spec, w1_spec, vh_spec, vh_spec, vh_spec, w2_spec, vc_spec,
                  vc_spec, vc_spec],
        out_specs=out_spec,
        compiler_params=par_params,
    )(patches, w1m, b1p, a1, c1, w2m, b2p, a2, c2)

    # TODO(synk): BatchNorm running_mean/running_var state updates are not reproduced;
    # only the training-mode forward output (batch statistics) is computed.
    return out[:, :c_out, :L_out]


def _reference(x, w1, b1, g1, be1, w2, b2, g2, be2, *, window):
    # pure-JAX reference of the PyTorch forward (training-mode BN)
    B, C_in, L = x.shape
    L_out = L - window + 1
    hidden, c_out = w1.shape[0], w2.shape[0]
    idx = jnp.arange(L_out)[:, None] + jnp.arange(window)[None, :]
    p = x[:, :, idx].transpose(0, 2, 1, 3).reshape(B * L_out, C_in * window)

    def bn(v, g, be):
        m = jnp.mean(v, axis=0, keepdims=True)
        va = jnp.mean(jnp.square(v - m), axis=0, keepdims=True)
        return (v - m) * jax.lax.rsqrt(va + BN_EPS) * g + be

    h = _gelu_exact(p @ w1.reshape(hidden, -1).T + b1[None, :])
    h = bn(h, g1[None, :], be1[None, :])
    y = _gelu_exact(h @ w2.reshape(c_out, hidden).T + b2[None, :])
    y = bn(y, g2[None, :], be2[None, :])
    return y.reshape(B, L_out, c_out).transpose(0, 2, 1)


if __name__ == "__main__":
    # small shapes consistent with the module: input_channel=1, out_channel=16,
    # ratio=4.0 -> hidden=64, window=8, batch=2, L=24 -> L_out=17
    B, C_in, L = 2, 1, 24
    C_out, ratio, window = 16, 4.0, 8
    hidden = int(C_out * ratio)

    key = jax.random.PRNGKey(0)
    kx, k1, k2, k3, k4 = jax.random.split(key, 5)
    x = jax.random.normal(kx, (B, C_in, L), dtype=jnp.float32)

    w1 = 0.1 * jax.random.normal(k1, (hidden, C_in, window), dtype=jnp.float32)
    b1 = 0.05 * jax.random.normal(k2, (hidden,), dtype=jnp.float32)
    g1 = jnp.ones((hidden,), jnp.float32)
    be1 = jnp.zeros((hidden,), jnp.float32)
    w2 = 0.1 * jax.random.normal(k3, (C_out, hidden, 1), dtype=jnp.float32)
    b2 = 0.05 * jax.random.normal(k4, (C_out,), dtype=jnp.float32)
    g2 = jnp.ones((C_out,), jnp.float32)
    be2 = jnp.zeros((C_out,), jnp.float32)

    out = series_embedding(x, w1, b1, g1, be1, w2, b2, g2, be2, window=window)
    out = jax.block_until_ready(out)

    ref = _reference(x, w1, b1, g1, be1, w2, b2, g2, be2, window=window)
    assert out.shape == (B, C_out, L - window + 1), out.shape
    err = float(jnp.max(jnp.abs(out - ref)))
    assert jnp.allclose(out, ref, rtol=1e-4, atol=1e-4), err

    print("KERNEL_OK")
</pallas_src>

<mosaic_0001>
module attributes {stable_mosaic.version = 11 : i64} {
  func.func @stats1_kernel(%arg0: i32, %arg1: i32, %arg2: memref<1x128x8xf32, #tpu.memory_space<vmem>>, %arg3: memref<8x128xf32, #tpu.memory_space<vmem>>, %arg4: memref<1x128xf32, #tpu.memory_space<vmem>>, %arg5: memref<1x128xf32, #tpu.memory_space<vmem>>, %arg6: memref<1x128xf32, #tpu.memory_space<vmem>>) attributes {dimension_semantics = [#tpu.dimension_semantics<arbitrary>, #tpu.dimension_semantics<arbitrary>], iteration_bounds = array<i64: 2, 1>, scalar_prefetch = 0 : i64, scratch_operands = 0 : i64, tpu.core_type = #tpu.core_type<tc>, window_params = [{transform_indices = @transform_0, window_bounds = array<i64: 1, 128, 8>}, {pipeline_mode = #tpu.pipeline_mode<synchronous>, transform_indices = @transform_1, window_bounds = array<i64: 8, 128>}, {pipeline_mode = #tpu.pipeline_mode<synchronous>, transform_indices = @transform_2, window_bounds = array<i64: 1, 128>}, {pipeline_mode = #tpu.pipeline_mode<synchronous>, transform_indices = @transform_3, window_bounds = array<i64: 1, 128>}, {pipeline_mode = #tpu.pipeline_mode<synchronous>, transform_indices = @transform_4, window_bounds = array<i64: 1, 128>}]} {
    %c0_i32 = arith.constant 0 : i32
    %0 = arith.cmpi eq, %arg0, %c0_i32 : i32
    %c0_i32_0 = arith.constant 0 : i32
    %1 = arith.cmpi eq, %arg1, %c0_i32_0 : i32
    %2 = arith.andi %0, %1 : i1
    %3 = arith.extui %2 : i1 to i32
    %c0_i32_1 = arith.constant 0 : i32
    %4 = arith.cmpi ne, %3, %c0_i32_1 : i32
    scf.if %4 {
      %cst_22 = arith.constant 0.000000e+00 : f32
      %41 = vector.broadcast %cst_22 : f32 to vector<1x128xf32>
      %c0_23 = arith.constant 0 : index
      %c0_24 = arith.constant 0 : index
      %42 = vector.load %arg5[%c0_23, %c0_24] : memref<1x128xf32, #tpu.memory_space<vmem>>, vector<1x128xf32>
      tpu.vector_store %arg5[%c0_23, %c0_24], %41 {strides = array<i32>} : memref<1x128xf32, #tpu.memory_space<vmem>>, vector<1x128xf32>,
      %cst_25 = arith.constant 0.000000e+00 : f32
      %43 = vector.broadcast %cst_25 : f32 to vector<1x128xf32>
      %c0_26 = arith.constant 0 : index
      %c0_27 = arith.constant 0 : index
      %44 = vector.load %arg6[%c0_26, %c0_27] : memref<1x128xf32, #tpu.memory_space<vmem>>, vector<1x128xf32>
      tpu.vector_store %arg6[%c0_26, %c0_27], %43 {strides = array<i32>} : memref<1x128xf32, #tpu.memory_space<vmem>>, vector<1x128xf32>,
    } else {
    }
    %5 = tpu.iota {dimensions = array<i32: 0>} : vector<128x1xi32>
    %c128_i32 = arith.constant 128 : i32
    %6 = arith.muli %arg1, %c128_i32 : i32
    %7 = vector.broadcast %6 : i32 to vector<128x1xi32>
    %8 = arith.addi %7, %5 : vector<128x1xi32>
    %c17_i32 = arith.constant 17 : i32
    %9 = vector.broadcast %c17_i32 : i32 to vector<128x1xi32>
    %10 = arith.cmpi slt, %8, %9 : vector<128x1xi32>
    %c0 = arith.constant 0 : index
    %c0_2 = arith.constant 0 : index
    %c0_3 = arith.constant 0 : index
    %11 = vector.load %arg2[%c0, %c0_2, %c0_3] : memref<1x128x8xf32, #tpu.memory_space<vmem>>, vector<1x128x8xf32>
    %12 = vector.shape_cast %11 : vector<1x128x8xf32> to vector<128x8xf32>
    %c0_4 = arith.constant 0 : index
    %c0_5 = arith.constant 0 : index
    %13 = vector.load %arg3[%c0_4, %c0_5] : memref<8x128xf32, #tpu.memory_space<vmem>>, vector<8x128xf32>
    %cst = arith.constant dense<0.000000e+00> : vector<128x128xf32>
    %14 = tpu.matmul %12, %13, %cst {dimension_numbers = #tpu.dot_dimension_numbers<[1], [0], [0], [1], [0, 0, 1, 1], [], []>} : vector<128x8xf32>, vector<8x128xf32>, vector<128x128xf32> -> vector<128x128xf32>
    %c0_6 = arith.constant 0 : index
    %c0_7 = arith.constant 0 : index
    %15 = vector.load %arg4[%c0_6, %c0_7] : memref<1x128xf32, #tpu.memory_space<vmem>>, vector<1x128xf32>
    %16 = vector.broadcast %15 : vector<1x128xf32> to vector<128x128xf32>
    %17 = arith.addf %14, %16 : vector<128x128xf32>
    %cst_8 = arith.constant 5.000000e-01 : f32
    %18 = vector.broadcast %cst_8 : f32 to vector<128x128xf32>
    %19 = arith.mulf %18, %17 : vector<128x128xf32>
    %cst_9 = arith.constant 0.707106769 : f32
    %20 = vector.broadcast %cst_9 : f32 to vector<128x128xf32>
    %21 = arith.mulf %17, %20 : vector<128x128xf32>
    %22 = math.erf %21 : vector<128x128xf32>
    %cst_10 = arith.constant 1.000000e+00 : f32
    %23 = vector.broadcast %cst_10 : f32 to vector<128x128xf32>
    %24 = arith.addf %23, %22 : vector<128x128xf32>
    %25 = arith.mulf %19, %24 : vector<128x128xf32>
    %cst_11 = arith.constant 0.000000e+00 : f32
    %26 = vector.shape_cast %10 : vector<128x1xi1> to vector<128x1xi1>
    %27 = vector.broadcast %26 : vector<128x1xi1> to vector<128x128xi1>
    %28 = vector.broadcast %cst_11 : f32 to vector<128x128xf32>
    %29 = arith.select %27, %25, %28 : vector<128x128xi1>, vector<128x128xf32>
    %c0_12 = arith.constant 0 : index
    %c0_13 = arith.constant 0 : index
    %30 = vector.load %arg5[%c0_12, %c0_13] : memref<1x128xf32, #tpu.memory_space<vmem>>, vector<1x128xf32>
    %cst_14 = arith.constant dense<0.000000e+00> : vector<128xf32>
    %31 = vector.multi_reduction <add>, %29, %cst_14 [0] : vector<128x128xf32> to vector<128xf32>
    %32 = vector.shape_cast %31 : vector<128xf32> to vector<1x128xf32>
    %33 = arith.addf %30, %32 : vector<1x128xf32>
    %c0_15 = arith.constant 0 : index
    %c0_16 = arith.constant 0 : index
    %34 = vector.load %arg5[%c0_15, %c0_16] : memref<1x128xf32, #tpu.memory_space<vmem>>, vector<1x128xf32>
    tpu.vector_store %arg5[%c0_15, %c0_16], %33 {strides = array<i32>} : memref<1x128xf32, #tpu.memory_space<vmem>>, vector<1x128xf32>,
    %c0_17 = arith.constant 0 : index
    %c0_18 = arith.constant 0 : index
    %35 = vector.load %arg6[%c0_17, %c0_18] : memref<1x128xf32, #tpu.memory_space<vmem>>, vector<1x128xf32>
    %36 = arith.mulf %29, %29 : vector<128x128xf32>
    %cst_19 = arith.constant dense<0.000000e+00> : vector<128xf32>
    %37 = vector.multi_reduction <add>, %36, %cst_19 [0] : vector<128x128xf32> to vector<128xf32>
    %38 = vector.shape_cast %37 : vector<128xf32> to vector<1x128xf32>
    %39 = arith.addf %35, %38 : vector<1x128xf32>
    %c0_20 = arith.constant 0 : index
    %c0_21 = arith.constant 0 : index
    %40 = vector.load %arg6[%c0_20, %c0_21] : memref<1x128xf32, #tpu.memory_space<vmem>>, vector<1x128xf32>
    tpu.vector_store %arg6[%c0_20, %c0_21], %39 {strides = array<i32>} : memref<1x128xf32, #tpu.memory_space<vmem>>, vector<1x128xf32>,
    return
  }
  func.func @transform_0(%arg0: i32, %arg1: i32) -> (i32, i32, i32) {
    %c0_i32 = arith.constant 0 : i32
    %c0_i32_0 = arith.constant 0 : i32
    return %arg0, %arg1, %c0_i32 : i32, i32, i32
  }
  func.func @transform_1(%arg0: i32, %arg1: i32) -> (i32, i32) {
    %c0_i32 = arith.constant 0 : i32
    %c0_i32_0 = arith.constant 0 : i32
    %c0_i32_1 = arith.constant 0 : i32
    return %c0_i32, %c0_i32_0 : i32, i32
  }
  func.func @transform_2(%arg0: i32, %arg1: i32) -> (i32, i32) {
    %c0_i32 = arith.constant 0 : i32
    %c0_i32_0 = arith.constant 0 : i32
    %c0_i32_1 = arith.constant 0 : i32
    return %c0_i32, %c0_i32_0 : i32, i32
  }
  func.func @transform_3(%arg0: i32, %arg1: i32) -> (i32, i32) {
    %c0_i32 = arith.constant 0 : i32
    %c0_i32_0 = arith.constant 0 : i32
    %c0_i32_1 = arith.constant 0 : i32
    return %c0_i32, %c0_i32_0 : i32, i32
  }
  func.func @transform_4(%arg0: i32, %arg1: i32) -> (i32, i32) {
    %c0_i32 = arith.constant 0 : i32
    %c0_i32_0 = arith.constant 0 : i32
    %c0_i32_1 = arith.constant 0 : i32
    return %c0_i32, %c0_i32_0 : i32, i32
  }
}

module attributes {stable_mosaic.version = 11 : i64} {
  func.func @stats2_kernel(%arg0: i32, %arg1: i32, %arg2: memref<1x128x8xf32, #tpu.memory_space<vmem>>, %arg3: memref<8x128xf32, #tpu.memory_space<vmem>>, %arg4: memref<1x128xf32, #tpu.memory_space<vmem>>, %arg5: memref<1x128xf32, #tpu.memory_space<vmem>>, %arg6: memref<1x128xf32, #tpu.memory_space<vmem>>, %arg7: memref<128x128xf32, #tpu.memory_space<vmem>>, %arg8: memref<1x128xf32, #tpu.memory_space<vmem>>, %arg9: memref<1x128xf32, #tpu.memory_space<vmem>>, %arg10: memref<1x128xf32, #tpu.memory_space<vmem>>) attributes {dimension_semantics = [#tpu.dimension_semantics<arbitrary>, #tpu.dimension_semantics<arbitrary>], iteration_bounds = array<i64: 2, 1>, scalar_prefetch = 0 : i64, scratch_operands = 0 : i64, tpu.core_type = #tpu.core_type<tc>, window_params = [{transform_indices = @transform_0, window_bounds = array<i64: 1, 128, 8>}, {pipeline_mode = #tpu.pipeline_mode<synchronous>, transform_indices = @transform_1, window_bounds = array<i64: 8, 128>}, {pipeline_mode = #tpu.pipeline_mode<synchronous>, transform_indices = @transform_2, window_bounds = array<i64: 1, 128>}, {pipeline_mode = #tpu.pipeline_mode<synchronous>, transform_indices = @transform_3, window_bounds = array<i64: 1, 128>}, {pipeline_mode = #tpu.pipeline_mode<synchronous>, transform_indices = @transform_4, window_bounds = array<i64: 1, 128>}, {pipeline_mode = #tpu.pipeline_mode<synchronous>, transform_indices = @transform_5, window_bounds = array<i64: 128, 128>}, {pipeline_mode = #tpu.pipeline_mode<synchronous>, transform_indices = @transform_6, window_bounds = array<i64: 1, 128>}, {pipeline_mode = #tpu.pipeline_mode<synchronous>, transform_indices = @transform_7, window_bounds = array<i64: 1, 128>}, {pipeline_mode = #tpu.pipeline_mode<synchronous>, transform_indices = @transform_8, window_bounds = array<i64: 1, 128>}]} {
    %c0_i32 = arith.constant 0 : i32
    %0 = arith.cmpi eq, %arg0, %c0_i32 : i32
    %c0_i32_0 = arith.constant 0 : i32
    %1 = arith.cmpi eq, %arg1, %c0_i32_0 : i32
    %2 = arith.andi %0, %1 : i1
    %3 = arith.extui %2 : i1 to i32
    %c0_i32_1 = arith.constant 0 : i32
    %4 = arith.cmpi ne, %3, %c0_i32_1 : i32
    scf.if %4 {
      %cst_34 = arith.constant 0.000000e+00 : f32
      %60 = vector.broadcast %cst_34 : f32 to vector<1x128xf32>
      %c0_35 = arith.constant 0 : index
      %c0_36 = arith.constant 0 : index
      %61 = vector.load %arg9[%c0_35, %c0_36] : memref<1x128xf32, #tpu.memory_space<vmem>>, vector<1x128xf32>
      tpu.vector_store %arg9[%c0_35, %c0_36], %60 {strides = array<i32>} : memref<1x128xf32, #tpu.memory_space<vmem>>, vector<1x128xf32>,
      %cst_37 = arith.constant 0.000000e+00 : f32
      %62 = vector.broadcast %cst_37 : f32 to vector<1x128xf32>
      %c0_38 = arith.constant 0 : index
      %c0_39 = arith.constant 0 : index
      %63 = vector.load %arg10[%c0_38, %c0_39] : memref<1x128xf32, #tpu.memory_space<vmem>>, vector<1x128xf32>
      tpu.vector_store %arg10[%c0_38, %c0_39], %62 {strides = array<i32>} : memref<1x128xf32, #tpu.memory_space<vmem>>, vector<1x128xf32>,
    } else {
    }
    %c0 = arith.constant 0 : index
    %c0_2 = arith.constant 0 : index
    %c0_3 = arith.constant 0 : index
    %5 = vector.load %arg2[%c0, %c0_2, %c0_3] : memref<1x128x8xf32, #tpu.memory_space<vmem>>, vector<1x128x8xf32>
    %6 = vector.shape_cast %5 : vector<1x128x8xf32> to vector<128x8xf32>
    %c0_4 = arith.constant 0 : index
    %c0_5 = arith.constant 0 : index
    %7 = vector.load %arg3[%c0_4, %c0_5] : memref<8x128xf32, #tpu.memory_space<vmem>>, vector<8x128xf32>
    %cst = arith.constant dense<0.000000e+00> : vector<128x128xf32>
    %8 = tpu.matmul %6, %7, %cst {dimension_numbers = #tpu.dot_dimension_numbers<[1], [0], [0], [1], [0, 0, 1, 1], [], []>} : vector<128x8xf32>, vector<8x128xf32>, vector<128x128xf32> -> vector<128x128xf32>
    %c0_6 = arith.constant 0 : index
    %c0_7 = arith.constant 0 : index
    %9 = vector.load %arg4[%c0_6, %c0_7] : memref<1x128xf32, #tpu.memory_space<vmem>>, vector<1x128xf32>
    %10 = vector.broadcast %9 : vector<1x128xf32> to vector<128x128xf32>
    %11 = arith.addf %8, %10 : vector<128x128xf32>
    %cst_8 = arith.constant 5.000000e-01 : f32
    %12 = vector.broadcast %cst_8 : f32 to vector<128x128xf32>
    %13 = arith.mulf %12, %11 : vector<128x128xf32>
    %cst_9 = arith.constant 0.707106769 : f32
    %14 = vector.broadcast %cst_9 : f32 to vector<128x128xf32>
    %15 = arith.mulf %11, %14 : vector<128x128xf32>
    %16 = math.erf %15 : vector<128x128xf32>
    %cst_10 = arith.constant 1.000000e+00 : f32
    %17 = vector.broadcast %cst_10 : f32 to vector<128x128xf32>
    %18 = arith.addf %17, %16 : vector<128x128xf32>
    %19 = arith.mulf %13, %18 : vector<128x128xf32>
    %c0_11 = arith.constant 0 : index
    %c0_12 = arith.constant 0 : index
    %20 = vector.load %arg5[%c0_11, %c0_12] : memref<1x128xf32, #tpu.memory_space<vmem>>, vector<1x128xf32>
    %21 = vector.broadcast %20 : vector<1x128xf32> to vector<128x128xf32>
    %22 = arith.mulf %19, %21 : vector<128x128xf32>
    %c0_13 = arith.constant 0 : index
    %c0_14 = arith.constant 0 : index
    %23 = vector.load %arg6[%c0_13, %c0_14] : memref<1x128xf32, #tpu.memory_space<vmem>>, vector<1x128xf32>
    %24 = vector.broadcast %23 : vector<1x128xf32> to vector<128x128xf32>
    %25 = arith.addf %22, %24 : vector<128x128xf32>
    %c0_15 = arith.constant 0 : index
    %c0_16 = arith.constant 0 : index
    %26 = vector.load %arg7[%c0_15, %c0_16] : memref<128x128xf32, #tpu.memory_space<vmem>>, vector<128x128xf32>
    %cst_17 = arith.constant dense<0.000000e+00> : vector<128x128xf32>
    %27 = tpu.matmul %25, %26, %cst_17 {dimension_numbers = #tpu.dot_dimension_numbers<[1], [0], [0], [1], [0, 0, 1, 1], [], []>} : vector<128x128xf32>, vector<128x128xf32>, vector<128x128xf32> -> vector<128x128xf32>
    %c0_18 = arith.constant 0 : index
    %c0_19 = arith.constant 0 : index
    %28 = vector.load %arg8[%c0_18, %c0_19] : memref<1x128xf32, #tpu.memory_space<vmem>>, vector<1x128xf32>
    %29 = vector.broadcast %28 : vector<1x128xf32> to vector<128x128xf32>
    %30 = arith.addf %27, %29 : vector<128x128xf32>
    %cst_20 = arith.constant 5.000000e-01 : f32
    %31 = vector.broadcast %cst_20 : f32 to vector<128x128xf32>
    %32 = arith.mulf %31, %30 : vector<128x128xf32>
    %cst_21 = arith.constant 0.707106769 : f32
    %33 = vector.broadcast %cst_21 : f32 to vector<128x128xf32>
    %34 = arith.mulf %30, %33 : vector<128x128xf32>
    %35 = math.erf %34 : vector<128x128xf32>
    %cst_22 = arith.constant 1.000000e+00 : f32
    %36 = vector.broadcast %cst_22 : f32 to vector<128x128xf32>
    %37 = arith.addf %36, %35 : vector<128x128xf32>
    %38 = arith.mulf %32, %37 : vector<128x128xf32>
    %39 = tpu.iota {dimensions = array<i32: 0>} : vector<128x1xi32>
    %c128_i32 = arith.constant 128 : i32
    %40 = arith.muli %arg1, %c128_i32 : i32
    %41 = vector.broadcast %40 : i32 to vector<128x1xi32>
    %42 = arith.addi %41, %39 : vector<128x1xi32>
    %c17_i32 = arith.constant 17 : i32
    %43 = vector.broadcast %c17_i32 : i32 to vector<128x1xi32>
    %44 = arith.cmpi slt, %42, %43 : vector<128x1xi32>
    %cst_23 = arith.constant 0.000000e+00 : f32
    %45 = vector.shape_cast %44 : vector<128x1xi1> to vector<128x1xi1>
    %46 = vector.broadcast %45 : vector<128x1xi1> to vector<128x128xi1>
    %47 = vector.broadcast %cst_23 : f32 to vector<128x128xf32>
    %48 = arith.select %46, %38, %47 : vector<128x128xi1>, vector<128x128xf32>
    %c0_24 = arith.constant 0 : index
    %c0_25 = arith.constant 0 : index
    %49 = vector.load %arg9[%c0_24, %c0_25] : memref<1x128xf32, #tpu.memory_space<vmem>>, vector<1x128xf32>
    %cst_26 = arith.constant dense<0.000000e+00> : vector<128xf32>
    %50 = vector.multi_reduction <add>, %48, %cst_26 [0] : vector<128x128xf32> to vector<128xf32>
    %51 = vector.shape_cast %50 : vector<128xf32> to vector<1x128xf32>
    %52 = arith.addf %49, %51 : vector<1x128xf32>
    %c0_27 = arith.constant 0 : index
    %c0_28 = arith.constant 0 : index
    %53 = vector.load %arg9[%c0_27, %c0_28] : memref<1x128xf32, #tpu.memory_space<vmem>>, vector<1x128xf32>
    tpu.vector_store %arg9[%c0_27, %c0_28], %52 {strides = array<i32>} : memref<1x128xf32, #tpu.memory_space<vmem>>, vector<1x128xf32>,
    %c0_29 = arith.constant 0 : index
    %c0_30 = arith.constant 0 : index
    %54 = vector.load %arg10[%c0_29, %c0_30] : memref<1x128xf32, #tpu.memory_space<vmem>>, vector<1x128xf32>
    %55 = arith.mulf %48, %48 : vector<128x128xf32>
    %cst_31 = arith.constant dense<0.000000e+00> : vector<128xf32>
    %56 = vector.multi_reduction <add>, %55, %cst_31 [0] : vector<128x128xf32> to vector<128xf32>
    %57 = vector.shape_cast %56 : vector<128xf32> to vector<1x128xf32>
    %58 = arith.addf %54, %57 : vector<1x128xf32>
    %c0_32 = arith.constant 0 : index
    %c0_33 = arith.constant 0 : index
    %59 = vector.load %arg10[%c0_32, %c0_33] : memref<1x128xf32, #tpu.memory_space<vmem>>, vector<1x128xf32>
    tpu.vector_store %arg10[%c0_32, %c0_33], %58 {strides = array<i32>} : memref<1x128xf32, #tpu.memory_space<vmem>>, vector<1x128xf32>,
    return
  }
  func.func @transform_0(%arg0: i32, %arg1: i32) -> (i32, i32, i32) {
    %c0_i32 = arith.constant 0 : i32
    %c0_i32_0 = arith.constant 0 : i32
    return %arg0, %arg1, %c0_i32 : i32, i32, i32
  }
  func.func @transform_1(%arg0: i32, %arg1: i32) -> (i32, i32) {
    %c0_i32 = arith.constant 0 : i32
    %c0_i32_0 = arith.constant 0 : i32
    %c0_i32_1 = arith.constant 0 : i32
    return %c0_i32, %c0_i32_0 : i32, i32
  }
  func.func @transform_2(%arg0: i32, %arg1: i32) -> (i32, i32) {
    %c0_i32 = arith.constant 0 : i32
    %c0_i32_0 = arith.constant 0 : i32
    %c0_i32_1 = arith.constant 0 : i32
    return %c0_i32, %c0_i32_0 : i32, i32
  }
  func.func @transform_3(%arg0: i32, %arg1: i32) -> (i32, i32) {
    %c0_i32 = arith.constant 0 : i32
    %c0_i32_0 = arith.constant 0 : i32
    %c0_i32_1 = arith.constant 0 : i32
    return %c0_i32, %c0_i32_0 : i32, i32
  }
  func.func @transform_4(%arg0: i32, %arg1: i32) -> (i32, i32) {
    %c0_i32 = arith.constant 0 : i32
    %c0_i32_0 = arith.constant 0 : i32
    %c0_i32_1 = arith.constant 0 : i32
    return %c0_i32, %c0_i32_0 : i32, i32
  }
  func.func @transform_5(%arg0: i32, %arg1: i32) -> (i32, i32) {
    %c0_i32 = arith.constant 0 : i32
    %c0_i32_0 = arith.constant 0 : i32
    %c0_i32_1 = arith.constant 0 : i32
    return %c0_i32, %c0_i32_0 : i32, i32
  }
  func.func @transform_6(%arg0: i32, %arg1: i32) -> (i32, i32) {
    %c0_i32 = arith.constant 0 : i32
    %c0_i32_0 = arith.constant 0 : i32
    %c0_i32_1 = arith.constant 0 : i32
    return %c0_i32, %c0_i32_0 : i32, i32
  }
  func.func @transform_7(%arg0: i32, %arg1: i32) -> (i32, i32) {
    %c0_i32 = arith.constant 0 : i32
    %c0_i32_0 = arith.constant 0 : i32
    %c0_i32_1 = arith.constant 0 : i32
    return %c0_i32, %c0_i32_0 : i32, i32
  }
  func.func @transform_8(%arg0: i32, %arg1: i32) -> (i32, i32) {
    %c0_i32 = arith.constant 0 : i32
    %c0_i32_0 = arith.constant 0 : i32
    %c0_i32_1 = arith.constant 0 : i32
    return %c0_i32, %c0_i32_0 : i32, i32
  }
}

module attributes {stable_mosaic.version = 11 : i64} {
  func.func @final_kernel(%arg0: i32, %arg1: i32, %arg2: memref<1x128x8xf32, #tpu.memory_space<vmem>>, %arg3: memref<8x128xf32, #tpu.memory_space<vmem>>, %arg4: memref<1x128xf32, #tpu.memory_space<vmem>>, %arg5: memref<1x128xf32, #tpu.memory_space<vmem>>, %arg6: memref<1x128xf32, #tpu.memory_space<vmem>>, %arg7: memref<128x128xf32, #tpu.memory_space<vmem>>, %arg8: memref<1x128xf32, #tpu.memory_space<vmem>>, %arg9: memref<1x128xf32, #tpu.memory_space<vmem>>, %arg10: memref<1x128xf32, #tpu.memory_space<vmem>>, %arg11: memref<1x16x128xf32, #tpu.memory_space<vmem>>) attributes {dimension_semantics = [#tpu.dimension_semantics<parallel>, #tpu.dimension_semantics<parallel>], iteration_bounds = array<i64: 2, 1>, scalar_prefetch = 0 : i64, scratch_operands = 0 : i64, tpu.core_type = #tpu.core_type<tc>, window_params = [{transform_indices = @transform_0, window_bounds = array<i64: 1, 128, 8>}, {pipeline_mode = #tpu.pipeline_mode<synchronous>, transform_indices = @transform_1, window_bounds = array<i64: 8, 128>}, {pipeline_mode = #tpu.pipeline_mode<synchronous>, transform_indices = @transform_2, window_bounds = array<i64: 1, 128>}, {pipeline_mode = #tpu.pipeline_mode<synchronous>, transform_indices = @transform_3, window_bounds = array<i64: 1, 128>}, {pipeline_mode = #tpu.pipeline_mode<synchronous>, transform_indices = @transform_4, window_bounds = array<i64: 1, 128>}, {pipeline_mode = #tpu.pipeline_mode<synchronous>, transform_indices = @transform_5, window_bounds = array<i64: 128, 128>}, {pipeline_mode = #tpu.pipeline_mode<synchronous>, transform_indices = @transform_6, window_bounds = array<i64: 1, 128>}, {pipeline_mode = #tpu.pipeline_mode<synchronous>, transform_indices = @transform_7, window_bounds = array<i64: 1, 128>}, {pipeline_mode = #tpu.pipeline_mode<synchronous>, transform_indices = @transform_8, window_bounds = array<i64: 1, 128>}, {transform_indices = @transform_9, window_bounds = array<i64: 1, 16, 128>}]} {
    %c0 = arith.constant 0 : index
    %c0_0 = arith.constant 0 : index
    %c0_1 = arith.constant 0 : index
    %0 = vector.load %arg2[%c0, %c0_0, %c0_1] : memref<1x128x8xf32, #tpu.memory_space<vmem>>, vector<1x128x8xf32>
    %1 = vector.shape_cast %0 : vector<1x128x8xf32> to vector<128x8xf32>
    %c0_2 = arith.constant 0 : index
    %c0_3 = arith.constant 0 : index
    %2 = vector.load %arg3[%c0_2, %c0_3] : memref<8x128xf32, #tpu.memory_space<vmem>>, vector<8x128xf32>
    %cst = arith.constant dense<0.000000e+00> : vector<128x128xf32>
    %3 = tpu.matmul %1, %2, %cst {dimension_numbers = #tpu.dot_dimension_numbers<[1], [0], [0], [1], [0, 0, 1, 1], [], []>} : vector<128x8xf32>, vector<8x128xf32>, vector<128x128xf32> -> vector<128x128xf32>
    %c0_4 = arith.constant 0 : index
    %c0_5 = arith.constant 0 : index
    %4 = vector.load %arg4[%c0_4, %c0_5] : memref<1x128xf32, #tpu.memory_space<vmem>>, vector<1x128xf32>
    %5 = vector.broadcast %4 : vector<1x128xf32> to vector<128x128xf32>
    %6 = arith.addf %3, %5 : vector<128x128xf32>
    %cst_6 = arith.constant 5.000000e-01 : f32
    %7 = vector.broadcast %cst_6 : f32 to vector<128x128xf32>
    %8 = arith.mulf %7, %6 : vector<128x128xf32>
    %cst_7 = arith.constant 0.707106769 : f32
    %9 = vector.broadcast %cst_7 : f32 to vector<128x128xf32>
    %10 = arith.mulf %6, %9 : vector<128x128xf32>
    %11 = math.erf %10 : vector<128x128xf32>
    %cst_8 = arith.constant 1.000000e+00 : f32
    %12 = vector.broadcast %cst_8 : f32 to vector<128x128xf32>
    %13 = arith.addf %12, %11 : vector<128x128xf32>
    %14 = arith.mulf %8, %13 : vector<128x128xf32>
    %c0_9 = arith.constant 0 : index
    %c0_10 = arith.constant 0 : index
    %15 = vector.load %arg5[%c0_9, %c0_10] : memref<1x128xf32, #tpu.memory_space<vmem>>, vector<1x128xf32>
    %16 = vector.broadcast %15 : vector<1x128xf32> to vector<128x128xf32>
    %17 = arith.mulf %14, %16 : vector<128x128xf32>
    %c0_11 = arith.constant 0 : index
    %c0_12 = arith.constant 0 : index
    %18 = vector.load %arg6[%c0_11, %c0_12] : memref<1x128xf32, #tpu.memory_space<vmem>>, vector<1x128xf32>
    %19 = vector.broadcast %18 : vector<1x128xf32> to vector<128x128xf32>
    %20 = arith.addf %17, %19 : vector<128x128xf32>
    %c0_13 = arith.constant 0 : index
    %c0_14 = arith.constant 0 : index
    %21 = vector.load %arg7[%c0_13, %c0_14] : memref<128x128xf32, #tpu.memory_space<vmem>>, vector<128x128xf32>
    %cst_15 = arith.constant dense<0.000000e+00> : vector<128x128xf32>
    %22 = tpu.matmul %20, %21, %cst_15 {dimension_numbers = #tpu.dot_dimension_numbers<[1], [0], [0], [1], [0, 0, 1, 1], [], []>} : vector<128x128xf32>, vector<128x128xf32>, vector<128x128xf32> -> vector<128x128xf32>
    %c0_16 = arith.constant 0 : index
    %c0_17 = arith.constant 0 : index
    %23 = vector.load %arg8[%c0_16, %c0_17] : memref<1x128xf32, #tpu.memory_space<vmem>>, vector<1x128xf32>
    %24 = vector.broadcast %23 : vector<1x128xf32> to vector<128x128xf32>
    %25 = arith.addf %22, %24 : vector<128x128xf32>
    %cst_18 = arith.constant 5.000000e-01 : f32
    %26 = vector.broadcast %cst_18 : f32 to vector<128x128xf32>
    %27 = arith.mulf %26, %25 : vector<128x128xf32>
    %cst_19 = arith.constant 0.707106769 : f32
    %28 = vector.broadcast %cst_19 : f32 to vector<128x128xf32>
    %29 = arith.mulf %25, %28 : vector<128x128xf32>
    %30 = math.erf %29 : vector<128x128xf32>
    %cst_20 = arith.constant 1.000000e+00 : f32
    %31 = vector.broadcast %cst_20 : f32 to vector<128x128xf32>
    %32 = arith.addf %31, %30 : vector<128x128xf32>
    %33 = arith.mulf %27, %32 : vector<128x128xf32>
    %c0_21 = arith.constant 0 : index
    %c0_22 = arith.constant 0 : index
    %34 = vector.load %arg9[%c0_21, %c0_22] : memref<1x128xf32, #tpu.memory_space<vmem>>, vector<1x128xf32>
    %35 = vector.broadcast %34 : vector<1x128xf32> to vector<128x128xf32>
    %36 = arith.mulf %33, %35 : vector<128x128xf32>
    %c0_23 = arith.constant 0 : index
    %c0_24 = arith.constant 0 : index
    %37 = vector.load %arg10[%c0_23, %c0_24] : memref<1x128xf32, #tpu.memory_space<vmem>>, vector<1x128xf32>
    %38 = vector.broadcast %37 : vector<1x128xf32> to vector<128x128xf32>
    %39 = arith.addf %36, %38 : vector<128x128xf32>
    %40 = tpu.transpose %39, [1, 0] : vector<128x128xf32> -> vector<128x128xf32>
    %41 = vector.extract_strided_slice %40 {offsets = [0, 0], sizes = [16, 128], strides = [1, 1]} : vector<128x128xf32> to vector<16x128xf32>
    %c0_25 = arith.constant 0 : index
    %c0_26 = arith.constant 0 : index
    %c0_27 = arith.constant 0 : index
    %42 = vector.load %arg11[%c0_25, %c0_26, %c0_27] : memref<1x16x128xf32, #tpu.memory_space<vmem>>, vector<1x16x128xf32>
    %43 = vector.shape_cast %42 : vector<1x16x128xf32> to vector<16x128xf32>
    %44 = vector.shape_cast %41 : vector<16x128xf32> to vector<1x16x128xf32>
    tpu.vector_store %arg11[%c0_25, %c0_26, %c0_27], %44 {strides = array<i32>} : memref<1x16x128xf32, #tpu.memory_space<vmem>>, vector<1x16x128xf32>,
    return
  }
  func.func @transform_0(%arg0: i32, %arg1: i32) -> (i32, i32, i32) {
    %c0_i32 = arith.constant 0 : i32
    %c0_i32_0 = arith.constant 0 : i32
    return %arg0, %arg1, %c0_i32 : i32, i32, i32
  }
  func.func @transform_1(%arg0: i32, %arg1: i32) -> (i32, i32) {
    %c0_i32 = arith.constant 0 : i32
    %c0_i32_0 = arith.constant 0 : i32
    %c0_i32_1 = arith.constant 0 : i32
    return %c0_i32, %c0_i32_0 : i32, i32
  }
  func.func @transform_2(%arg0: i32, %arg1: i32) -> (i32, i32) {
    %c0_i32 = arith.constant 0 : i32
    %c0_i32_0 = arith.constant 0 : i32
    %c0_i32_1 = arith.constant 0 : i32
    return %c0_i32, %c0_i32_0 : i32, i32
  }
  func.func @transform_3(%arg0: i32, %arg1: i32) -> (i32, i32) {
    %c0_i32 = arith.constant 0 : i32
    %c0_i32_0 = arith.constant 0 : i32
    %c0_i32_1 = arith.constant 0 : i32
    return %c0_i32, %c0_i32_0 : i32, i32
  }
  func.func @transform_4(%arg0: i32, %arg1: i32) -> (i32, i32) {
    %c0_i32 = arith.constant 0 : i32
    %c0_i32_0 = arith.constant 0 : i32
    %c0_i32_1 = arith.constant 0 : i32
    return %c0_i32, %c0_i32_0 : i32, i32
  }
  func.func @transform_5(%arg0: i32, %arg1: i32) -> (i32, i32) {
    %c0_i32 = arith.constant 0 : i32
    %c0_i32_0 = arith.constant 0 : i32
    %c0_i32_1 = arith.constant 0 : i32
    return %c0_i32, %c0_i32_0 : i32, i32
  }
  func.func @transform_6(%arg0: i32, %arg1: i32) -> (i32, i32) {
    %c0_i32 = arith.constant 0 : i32
    %c0_i32_0 = arith.constant 0 : i32
    %c0_i32_1 = arith.constant 0 : i32
    return %c0_i32, %c0_i32_0 : i32, i32
  }
  func.func @transform_7(%arg0: i32, %arg1: i32) -> (i32, i32) {
    %c0_i32 = arith.constant 0 : i32
    %c0_i32_0 = arith.constant 0 : i32
    %c0_i32_1 = arith.constant 0 : i32
    return %c0_i32, %c0_i32_0 : i32, i32
  }
  func.func @transform_8(%arg0: i32, %arg1: i32) -> (i32, i32) {
    %c0_i32 = arith.constant 0 : i32
    %c0_i32_0 = arith.constant 0 : i32
    %c0_i32_1 = arith.constant 0 : i32
    return %c0_i32, %c0_i32_0 : i32, i32
  }
  func.func @transform_9(%arg0: i32, %arg1: i32) -> (i32, i32, i32) {
    %c0_i32 = arith.constant 0 : i32
    %c0_i32_0 = arith.constant 0 : i32
    return %arg0, %c0_i32, %arg1 : i32, i32, i32
  }
}

</mosaic_0001>

<llo_original>
// kernel: series_embedding.3
$region0: #{series_embedding.3}
  #allocation0 [shape = 'u32[]', space=smem, size = 0x4, offset = 0x4, fixed_abs, tag = 'smem constant byte address 0x4 - core index']
  #allocation1 [shape = 'u32[144,128]{1,0:T(1,128)}', space=vmem, size = 0x12000, scoped, tag = 'internal scratch']
  %s0 = inlined_call_operand.hbm [shape: f32[2,128,8], index: 0, kind: input, shape index: {}]
  %s1 = inlined_call_operand.hbm [shape: f32[8,128], index: 1, kind: input, shape index: {}]
  %s2 = inlined_call_operand.hbm [shape: f32[1,128], index: 2, kind: input, shape index: {}]
  %s3 = inlined_call_operand.hbm [shape: f32[1,128], index: 3, kind: output, shape index: {0}]
  %s4 = inlined_call_operand.hbm [shape: f32[1,128], index: 4, kind: output, shape index: {1}]
  %5 = xla_tuple %s3, %s4
  %s6 = sld [smem:[#allocation0]]
  $region69: #{series_embedding.3} parent=0
    _
  %s8 = ssub.s32 1, %s6
  %s9 = scalar_select 0, %s8, %s6
  $region1: #{series_embedding.3} parent=0
    #allocation2 [shape = 'u8[131072]{0}', space=vmem, size = 0x20000, scoped, tag = 'input window, operand 0']
    #allocation3 [shape = 's32[2]{0}', space=sflag, size = 0x8, scoped, tag = 'scoped memory for series_embedding.3']
    #allocation4 [shape = 's32[2]{0}', space=sflag, size = 0x8, scoped, tag = 'scoped memory for series_embedding.3']
    #allocation5 [shape = 'u8[4096]{0}', space=vmem, size = 0x1000, scoped, tag = 'input window, operand 1, single buffered']
    #allocation6 [shape = 's32[1]{0}', space=sflag, size = 0x4, scoped, tag = 'scoped memory for series_embedding.3']
    #allocation7 [shape = 'u8[512]{0}', space=vmem, size = 0x400, scoped, tag = 'input window, operand 2, single buffered']
    #allocation8 [shape = 'u8[512]{0}', space=vmem, size = 0x400, scoped, tag = 'output window, operand 0, single buffered']
    #allocation9 [shape = 'u8[512]{0}', space=vmem, size = 0x400, scoped, tag = 'output window, operand 1, single buffered']
    #allocation10 [shape = 's32[1]{0}', space=sflag, size = 0x4, scoped, tag = 'scoped memory for series_embedding.3']
    %10 = vsyncpa [#allocation3], 0
    %s11 = scalar_lea.sflag [#allocation3], 1
    %12 = vsyncpa %s11, 0
    %13 = vsyncpa [#allocation6], 0
    %14 = vsyncpa [#allocation4], 0
    %15 = vsyncpa [#allocation10], 0
    loop: start=0, step=1, limit=4
    $region2: #{series_embedding.3} parent=1 // loop_pre_header
      _
    $region3: #{series_embedding.3} parent=1 // loop_header
      %s17 = sphi 0, %s21
      %p18 = scmp.ge.s32.totalorder %s17, 4
      %s24 = sphi 0, %s36
      %s25 = sphi 0, %s32
      %s26 = sphi 0, %s24
      %s27 = sphi 0, %s25
      %s28 = sphi 0, %s26
      %s29 = sphi 0, %s27
      %s41 = sphi 0, %s43
      %s44 = sphi 0, %s41
      %s45 = sphi 0, %s44
      %s61 = sphi 0, %s45
      %s65 = sphi 0, %s65
      %s67 = sphi 0, %s65
      %s68 = sphi 0, %s67
      %s82 = sphi 0, %s68
      %s86 = sphi 0, %s86
      %s88 = sphi 0, %s86
      %s89 = sphi 0, %s88
      %s103 = sphi 0, %s89
      %s107 = sphi 0, %s107
      %s109 = sphi 0, %s107
      %s110 = sphi 0, %s109
      %s124 = sphi 0, %s110
      %s128 = sphi 0, %s128
      %s130 = sphi 0, %s128
      %s131 = sphi 0, %s130
      %s145 = sphi 0, %s131
    $region4: #{series_embedding.3} parent=1 // loop_header_branch
      %20 = sbr.rel (%p18) target = $region8
    $region5: #{series_embedding.3} parent=1 // loop_body
      %s22 = ssub.s32 %s17, 1
      %s23 = ssub.s32 %s17, 2
      %s30 = sadd.s32 1, %s25
      %p31 = scmp.ge.s32.totalorder %s30, 1
      %s32 = scalar_select %p31, 0, %s30
      %s33 = sadd.s32 1, %s24
      %s34 = scalar_select %p31, %s33, %s24
      %p35 = scmp.ge.s32.totalorder %s34, 2
      %s36 = scalar_select %p35, 0, %s34
      %s37 = ssub.s32 %s24, %s36
      %s38 = ssub.s32 %s25, %s32
      %s39 = sor.u32 %s37, %s38
      %p40 = scmp.eq.s32.totalorder %s39, 0
      %s42 = sadd.s32 %s41, 1
      %s43 = scalar_select %p40, %s41, %s42
      %p46 = pneg %p40
      %p47 = scmp.eq.s32.totalorder %s17, 1
      %p48 = por %p46, %p47
      %p49 = scmp.ne.s32.totalorder %s41, %s44
      %p50 = scmp.eq.s32.totalorder %s17, 0
      %p51 = por %p49, %p50
      %p52 = scmp.ne.s32.totalorder %s41, %s44
      %p53 = scmp.eq.s32.totalorder %s22, 1
      %p54 = por %p52, %p53
      %p55 = scmp.ne.s32.totalorder %s44, %s45
      %p56 = scmp.eq.s32.totalorder %s22, 0
      %p57 = por %p55, %p56
      %p58 = scmp.ne.s32.totalorder %s44, %s45
      %p59 = scmp.eq.s32.totalorder %s23, 1
      %p60 = por %p58, %p59
      %p62 = scmp.ne.s32.totalorder %s45, %s61
      %p63 = scmp.eq.s32.totalorder %s23, 0
      %p64 = por %p62, %p63
      %s66 = sadd.s32 %s65, 1
      %p69 = scmp.eq.s32.totalorder %s17, 1
      %p70 = scmp.ne.s32.totalorder %s65, %s67
      %p71 = scmp.eq.s32.totalorder %s17, 0
      %p72 = por %p70, %p71
      %p73 = scmp.ne.s32.totalorder %s65, %s67
      %p74 = scmp.eq.s32.totalorder %s22, 1
      %p75 = por %p73, %p74
      %p76 = scmp.ne.s32.totalorder %s67, %s68
      %p77 = scmp.eq.s32.totalorder %s22, 0
      %p78 = por %p76, %p77
      %p79 = scmp.ne.s32.totalorder %s67, %s68
      %p80 = scmp.eq.s32.totalorder %s23, 1
      %p81 = por %p79, %p80
      %p83 = scmp.ne.s32.totalorder %s68, %s82
      %p84 = scmp.eq.s32.totalorder %s23, 0
      %p85 = por %p83, %p84
      %s87 = sadd.s32 %s86, 1
      %p90 = scmp.eq.s32.totalorder %s17, 1
      %p91 = scmp.ne.s32.totalorder %s86, %s88
      %p92 = scmp.eq.s32.totalorder %s17, 0
      %p93 = por %p91, %p92
      %p94 = scmp.ne.s32.totalorder %s86, %s88
      %p95 = scmp.eq.s32.totalorder %s22, 1
      %p96 = por %p94, %p95
      %p97 = scmp.ne.s32.totalorder %s88, %s89
      %p98 = scmp.eq.s32.totalorder %s22, 0
      %p99 = por %p97, %p98
      %p100 = scmp.ne.s32.totalorder %s88, %s89
      %p101 = scmp.eq.s32.totalorder %s23, 1
      %p102 = por %p100, %p101
      %p104 = scmp.ne.s32.totalorder %s89, %s103
      %p105 = scmp.eq.s32.totalorder %s23, 0
      %p106 = por %p104, %p105
      %s108 = sadd.s32 %s107, 1
      %p111 = scmp.eq.s32.totalorder %s17, 1
      %p112 = scmp.ne.s32.totalorder %s107, %s109
      %p113 = scmp.eq.s32.totalorder %s17, 0
      %p114 = por %p112, %p113
      %p115 = scmp.ne.s32.totalorder %s107, %s109
      %p116 = scmp.eq.s32.totalorder %s22, 1
      %p117 = por %p115, %p116
      %p118 = scmp.ne.s32.totalorder %s109, %s110
      %p119 = scmp.eq.s32.totalorder %s22, 0
      %p120 = por %p118, %p119
      %p121 = scmp.ne.s32.totalorder %s109, %s110
      %p122 = scmp.eq.s32.totalorder %s23, 1
      %p123 = por %p121, %p122
      %p125 = scmp.ne.s32.totalorder %s110, %s124
      %p126 = scmp.eq.s32.totalorder %s23, 0
      %p127 = por %p125, %p126
      %s129 = sadd.s32 %s128, 1
      %p132 = scmp.eq.s32.totalorder %s17, 1
      %p133 = scmp.ne.s32.totalorder %s128, %s130
      %p134 = scmp.eq.s32.totalorder %s17, 0
      %p135 = por %p133, %p134
      %p136 = scmp.ne.s32.totalorder %s128, %s130
      %p137 = scmp.eq.s32.totalorder %s22, 1
      %p138 = por %p136, %p137
      %p139 = scmp.ne.s32.totalorder %s130, %s131
      %p140 = scmp.eq.s32.totalorder %s22, 0
      %p141 = por %p139, %p140
      %p142 = scmp.ne.s32.totalorder %s130, %s131
      %p143 = scmp.eq.s32.totalorder %s23, 1
      %p144 = por %p142, %p143
      %p146 = scmp.ne.s32.totalorder %s131, %s145
      %p147 = scmp.eq.s32.totalorder %s23, 0
      %p148 = por %p146, %p147
      %p149 = scmp.le.s32.totalorder 1, %s17
      %p150 = scmp.lt.s32.totalorder %s17, 3
      %p151 = pnand %p149, %p150
      %p152 = pneg %p151
      // Predicated region
      $region9: #{series_embedding.3} parent=5 // pred_check
        _
      $region10: #{series_embedding.3} parent=5 // pred_check_branch
        %154 = sbr.rel (%p151) target = $region12
      $region11: #{series_embedding.3} parent=5 // pred_region
        %s155 = ssub.s32 %s17, 1
        // Predicated region
        $region13: #{series_embedding.3} parent=11 // pred_check
          %p156 = pneg %p78
        $region14: #{series_embedding.3} parent=11 // pred_check_branch
          %158 = sbr.rel (%p156) target = $region16
        $region15: #{series_embedding.3} parent=11 // pred_region
          %s160 = ssub.s32 128, 128
          %161 = vsyncadd [#allocation6], %s160
          %s163 = sshll.u32 [#allocation5], 4
          %s164 = int_to_ptr.vmem [resolvable:$true] %s163
          %166 = dma.hbm_to_vmem [thread:$0]  %s1, 128, %s164, [#allocation6]
        $region16: #{series_embedding.3} parent=11 // pred_fallthru
          _
        // Predicated region
        $region17: #{series_embedding.3} parent=11 // pred_check
          %p167 = pneg %p99
        $region18: #{series_embedding.3} parent=11 // pred_check_branch
          %169 = sbr.rel (%p167) target = $region20
        $region19: #{series_embedding.3} parent=11 // pred_region
          %s171 = ssub.s32 16, 16
          %172 = vsyncadd [#allocation6], %s171
          %s174 = sshll.u32 [#allocation7], 4
          %s175 = int_to_ptr.vmem [resolvable:$true] %s174
          %177 = dma.hbm_to_vmem [thread:$0]  %s2, 16, %s175, [#allocation6]
        $region20: #{series_embedding.3} parent=11 // pred_fallthru
          _
      $region12: #{series_embedding.3} parent=5 // pred_fallthru
        _
      %p178 = scmp.lt.s32.totalorder %s17, 2
      // Predicated region
      $region21: #{series_embedding.3} parent=5 // pred_check
        %p179 = pneg %p178
      $region22: #{series_embedding.3} parent=5 // pred_check_branch
        %181 = sbr.rel (%p179) target = $region24
      $region23: #{series_embedding.3} parent=5 // pred_region
        // Predicated region
        $region25: #{series_embedding.3} parent=23 // pred_check
          %p182 = pneg %p51
        $region26: #{series_embedding.3} parent=23 // pred_check_branch
          %184 = sbr.rel (%p182) target = $region28
        $region27: #{series_embedding.3} parent=23 // pred_region
          %s185 = sand.u32 %s41, 1
          %s186 = scalar_lea.sflag [#allocation3], %s185
          %s187 = sand.u32 %s41, 1
          %s188 = smul.addr %s187, 128
          %s189 = scalar_lea.vmem [#allocation2], %s188
          %s190 = smul.u32 16, %s25
          %s192 = ssub.s32 2048, 2048
          %193 = vsyncadd %s186, %s192
          %s194 = smul.addr %s24, 16
          %s195 = sadd.s32 %s190, %s194
          %s196 = smul.addr %s195, 128
          %s197 = scalar_lea.hbm %s0, %s196
          %s198 = sshll.u32 %s189, 4
          %s199 = int_to_ptr.vmem [resolvable:$true] %s198
          %204 = dma.hbm_to_vmem [thread:$0]  %s197, 2048, %s199, %s186, 128, 128, 8
        $region28: #{series_embedding.3} parent=23 // pred_fallthru
          _
      $region24: #{series_embedding.3} parent=5 // pred_fallthru
        _
      %p205 = scmp.le.s32.totalorder 1, %s17
      %p206 = scmp.lt.s32.totalorder %s17, 3
      %p207 = pnand %p205, %p206
      %p208 = pneg %p207
      // Predicated region
      $region29: #{series_embedding.3} parent=5 // pred_check
        _
      $region30: #{series_embedding.3} parent=5 // pred_check_branch
        %210 = sbr.rel (%p207) target = $region32
      $region31: #{series_embedding.3} parent=5 // pred_region
        %s211 = ssub.s32 %s17, 1
        %s212 = sand.u32 %s44, 1
        %s213 = scalar_lea.sflag [#allocation3], %s212
        %s214 = sand.u32 %s44, 1
        %s215 = smul.addr %s214, 128
        %s216 = scalar_lea.vmem [#allocation2], %s215
        // Predicated region
        $region33: #{series_embedding.3} parent=31 // pred_check
          %p217 = pneg %p57
        $region34: #{series_embedding.3} parent=31 // pred_check_branch
          %219 = sbr.rel (%p217) target = $region36
        $region35: #{series_embedding.3} parent=31 // pred_region
          %220 = dma.done %s213, 2048
        $region36: #{series_embedding.3} parent=31 // pred_fallthru
          _
        // Predicated region
        $region37: #{series_embedding.3} parent=31 // pred_check
          %p221 = pneg %p78
        $region38: #{series_embedding.3} parent=31 // pred_check_branch
          %223 = sbr.rel (%p221) target = $region40
        $region39: #{series_embedding.3} parent=31 // pred_region
          %224 = dma.done [#allocation6], 128
        $region40: #{series_embedding.3} parent=31 // pred_fallthru
          _
        // Predicated region
        $region41: #{series_embedding.3} parent=31 // pred_check
          %p225 = pneg %p99
        $region42: #{series_embedding.3} parent=31 // pred_check_branch
          %227 = sbr.rel (%p225) target = $region44
        $region43: #{series_embedding.3} parent=31 // pred_region
          %228 = dma.done [#allocation6], 16
        $region44: #{series_embedding.3} parent=31 // pred_fallthru
          _
        %s229 = sand.u32 %s44, 1
        %s230 = scalar_lea.sflag [#allocation3], %s229
        %s231 = sand.u32 %s44, 1
        %s232 = smul.addr %s231, 128
        %s233 = scalar_lea.vmem [#allocation2], %s232
        %p234 = pneg %p57
        %p235 = pneg %p54
        %p236 = pneg %p78
        %p237 = pneg %p75
        %p238 = pneg %p99
        %p239 = pneg %p96
        %p240 = pneg %p120
        %p241 = pneg %p117
        %p242 = pneg %p141
        %p243 = pneg %p138
        %s244 = smul.u32 16, %s27
        %p245 = scmp.eq.s32.totalorder %s26, 0
        %p246 = scmp.eq.s32.totalorder %s27, 0
        %p247 = pnand %p245, %p246
        %p248 = pneg %p247
        // Predicated region
        $region45: #{series_embedding.3} parent=31 // pred_check
          _
        $region46: #{series_embedding.3} parent=31 // pred_check_branch
          %250 = sbr.rel (%p247) target = $region48
        $region47: #{series_embedding.3} parent=31 // pred_region
          %251 = vst [vmem:[#allocation8] sm:$0x1] 0.0
          %252 = vst [vmem:[#allocation9] sm:$0x1] 0.0
        $region48: #{series_embedding.3} parent=31 // pred_fallthru
          _
        %v253 = vlaneseq
        %v254 = vshrl.u32 %v253, 7
        %v255 = vadd.s32 %v254, 8
        %v256 = vadd.s32 %v254, 16
        %v257 = vadd.s32 %v254, 24
        %v258 = vadd.s32 %v254, 32
        %v259 = vadd.s32 %v254, 40
        %v260 = vadd.s32 %v254, 48
        %v261 = vadd.s32 %v254, 56
        %v262 = vadd.s32 %v254, 64
        %v263 = vadd.s32 %v254, 72
        %v264 = vadd.s32 %v254, 80
        %v265 = vadd.s32 %v254, 88
        %v266 = vadd.s32 %v254, 96
        %v267 = vadd.s32 %v254, 104
        %v268 = vadd.s32 %v254, 112
        %v269 = vadd.s32 %v254, 120
        %s270 = smul.u32 %s27, 128
        %v271 = vstv %s270
        %v272 = vadd.s32 %v271, %v254
        %v273 = vadd.s32 %v271, %v255
        %v274 = vadd.s32 %v271, %v256
        %v275 = vadd.s32 %v271, %v257
        %v276 = vadd.s32 %v271, %v258
        %v277 = vadd.s32 %v271, %v259
        %v278 = vadd.s32 %v271, %v260
        %v279 = vadd.s32 %v271, %v261
        %v280 = vadd.s32 %v271, %v262
        %v281 = vadd.s32 %v271, %v263
        %v282 = vadd.s32 %v271, %v264
        %v283 = vadd.s32 %v271, %v265
        %v284 = vadd.s32 %v271, %v266
        %v285 = vadd.s32 %v271, %v267
        %v286 = vadd.s32 %v271, %v268
        %v287 = vadd.s32 %v271, %v269
        %vm288 = vcmp.lt.s32.totalorder %v272, 17
        %vm289 = vcmp.lt.s32.totalorder %v273, 17
        %vm290 = vcmp.lt.s32.totalorder %v274, 17
        %vm291 = vcmp.lt.s32.totalorder %v275, 17
        %vm292 = vcmp.lt.s32.totalorder %v276, 17
        %vm293 = vcmp.lt.s32.totalorder %v277, 17
        %vm294 = vcmp.lt.s32.totalorder %v278, 17
        %vm295 = vcmp.lt.s32.totalorder %v279, 17
        %vm296 = vcmp.lt.s32.totalorder %v280, 17
        %vm297 = vcmp.lt.s32.totalorder %v281, 17
        %vm298 = vcmp.lt.s32.totalorder %v282, 17
        %vm299 = vcmp.lt.s32.totalorder %v283, 17
        %vm300 = vcmp.lt.s32.totalorder %v284, 17
        %vm301 = vcmp.lt.s32.totalorder %v285, 17
        %vm302 = vcmp.lt.s32.totalorder %v286, 17
        %vm303 = vcmp.lt.s32.totalorder %v287, 17
        %v304 = vld [vmem:[%s216] sm:$0xff]
        %v305 = vld [vmem:[%s216 + $0x8] sm:$0xff]
        %v306 = vld [vmem:[%s216 + $0x10] sm:$0xff]
        %v307 = vld [vmem:[%s216 + $0x18] sm:$0xff]
        %v308 = vld [vmem:[%s216 + $0x20] sm:$0xff]
        %v309 = vld [vmem:[%s216 + $0x28] sm:$0xff]
        %v310 = vld [vmem:[%s216 + $0x30] sm:$0xff]
        %v311 = vld [vmem:[%s216 + $0x38] sm:$0xff]
        %v312 = vld [vmem:[%s216 + $0x40] sm:$0xff]
        %v313 = vld [vmem:[%s216 + $0x48] sm:$0xff]
        %v314 = vld [vmem:[%s216 + $0x50] sm:$0xff]
        %v315 = vld [vmem:[%s216 + $0x58] sm:$0xff]
        %v316 = vld [vmem:[%s216 + $0x60] sm:$0xff]
        %v317 = vld [vmem:[%s216 + $0x68] sm:$0xff]
        %v318 = vld [vmem:[%s216 + $0x70] sm:$0xff]
        %v319 = vld [vmem:[%s216 + $0x78] sm:$0xff]
        %v320 = vld [vmem:[#allocation5] sm:$0xff]
        %v321 = vld [vmem:[#allocation7] sm:$0x1]
        %v323 = vlaneseq
        %v324 = vshrl.u32 %v323, 7
        %v325 = vsub.s32 0, %v324
        %v326 = vrot.slane %v321, %v325
        %vm328 = vcmask 64512
        %v330 = vsel %vm328, %v304, 0
        %v333 = vsel %vm328, %v305, 0
        %v336 = vsel %vm328, %v306, 0
        %v339 = vsel %vm328, %v307, 0
        %v342 = vsel %vm328, %v308, 0
        %v345 = vsel %vm328, %v309, 0
        %v348 = vsel %vm328, %v310, 0
        %v351 = vsel %vm328, %v311, 0
        %v354 = vsel %vm328, %v312, 0
        %v357 = vsel %vm328, %v313, 0
        %v360 = vsel %vm328, %v314, 0
        %v363 = vsel %vm328, %v315, 0
        %v366 = vsel %vm328, %v316, 0
        %v369 = vsel %vm328, %v317, 0
        %v372 = vsel %vm328, %v318, 0
        %v375 = vsel %vm328, %v319, 0
        %377 = vmatprep.subr.mxu0 0.0
        %378 = vmatpush1.msra.mxu0 %v320
        %379 = vmatprep.subr.mxu0 0.0
        %380 = vmatpush1.msra.mxu0 0.0
        %381 = vmatprep.subr.mxu0 0.0
        %382 = vmatpush1.msra.mxu0 0.0
        %383 = vmatprep.subr.mxu0 0.0
        %384 = vmatpush1.msra.mxu0 0.0
        %385 = vmatprep.subr.mxu0 0.0
        %386 = vmatpush1.msra.mxu0 0.0
        %387 = vmatprep.subr.mxu0 0.0
        %388 = vmatpush1.msra.mxu0 0.0
        %389 = vmatprep.subr.mxu0 0.0
        %390 = vmatpush1.msra.mxu0 0.0
        %391 = vmatprep.subr.mxu0 0.0
        %392 = vmatpush1.msra.mxu0 0.0
        %393 = vmatprep.subr.mxu0 0.0
        %394 = vmatpush1.msra.mxu0 0.0
        %395 = vmatprep.subr.mxu0 0.0
        %396 = vmatpush1.msra.mxu0 0.0
        %397 = vmatprep.subr.mxu0 0.0
        %398 = vmatpush1.msra.mxu0 0.0
        %399 = vmatprep.subr.mxu0 0.0
        %400 = vmatpush1.msra.mxu0 0.0
        %401 = vmatprep.subr.mxu0 0.0
        %402 = vmatpush1.msra.mxu0 0.0
        %403 = vmatprep.subr.mxu0 0.0
        %404 = vmatpush1.msra.mxu0 0.0
        %405 = vmatprep.subr.mxu0 0.0
        %406 = vmatpush1.msra.mxu0 0.0
        %407 = vmatprep.subr.mxu0 0.0
        %408 = vmatpush1.msra.mxu0 0.0
        %409 = vmatprep.subr.mxu0 0.0
        %410 = vmatpush1.msra.mxu0 0.0
        %411 = vmatprep.subr.mxu0 0.0
        %412 = vmatpush1.msra.mxu0 0.0
        %413 = vmatprep.subr.mxu0 0.0
        %414 = vmatpush1.msra.mxu0 0.0
        %415 = vmatprep.subr.mxu0 0.0
        %416 = vmatpush1.msra.mxu0 0.0
        %417 = vmatprep.subr.mxu0 0.0
        %418 = vmatpush1.msra.mxu0 0.0
        %419 = vmatprep.subr.mxu0 0.0
        %420 = vmatpush1.msra.mxu0 0.0
        %421 = vmatprep.subr.mxu0 0.0
        %422 = vmatpush1.msra.mxu0 0.0
        %423 = vmatprep.subr.mxu0 0.0
        %424 = vmatpush1.msra.mxu0 0.0
        %425 = vmatprep.subr.mxu0 0.0
        %426 = vmatpush1.msra.mxu0 0.0
        %427 = vmatprep.subr.mxu0 0.0
        %428 = vmatpush1.msra.mxu0 0.0
        %429 = vmatprep.subr.mxu0 0.0
        %430 = vmatpush1.msra.mxu0 0.0
        %431 = vmatprep.subr.mxu0 0.0
        %432 = vmatpush1.msra.mxu0 0.0
        %433 = vmatprep.subr.mxu0 0.0
        %434 = vmatpush1.msra.mxu0 0.0
        %435 = vmatprep.subr.mxu0 0.0
        %436 = vmatpush1.msra.mxu0 0.0
        %437 = vmatprep.subr.mxu0 0.0
        %438 = vmatpush1.msra.mxu0 0.0
        %439 = vmatprep.subr.mxu0 0.0
        %440 = vmatpush1.msra.mxu0 0.0
        %441 = vmatprep.mubr.f32.mxu0 0.0
        %442 = vmatmul.mubr.f32.gmra.mrb[0].mxu0 %v330
        %v443 = vpop.f32.mrb[0].mxu0
        %v444 = vadd.f32 %v326, %v443
        %v445 = vpop.f32.mrb[0].mxu0
        %446 = vmatprep.mubr.f32.mxu0 0.0
        %447 = vmatmul.mubr.f32.gmra.mrb[0].mxu0 %v333
        %v448 = vpop.f32.mrb[0].mxu0
        %v449 = vadd.f32 %v326, %v448
        %v450 = vpop.f32.mrb[0].mxu0
        %451 = vmatprep.mubr.f32.mxu0 0.0
        %452 = vmatmul.mubr.f32.gmra.mrb[0].mxu0 %v336
        %v453 = vpop.f32.mrb[0].mxu0
        %v454 = vadd.f32 %v326, %v453
        %v455 = vpop.f32.mrb[0].mxu0
        %456 = vmatprep.mubr.f32.mxu0 0.0
        %457 = vmatmul.mubr.f32.gmra.mrb[0].mxu0 %v339
        %v458 = vpop.f32.mrb[0].mxu0
        %v459 = vadd.f32 %v326, %v458
        %v460 = vpop.f32.mrb[0].mxu0
        %461 = vmatprep.mubr.f32.mxu0 0.0
        %462 = vmatmul.mubr.f32.gmra.mrb[0].mxu0 %v342
        %v463 = vpop.f32.mrb[0].mxu0
        %v464 = vadd.f32 %v326, %v463
        %v465 = vpop.f32.mrb[0].mxu0
        %466 = vmatprep.mubr.f32.mxu0 0.0
        %467 = vmatmul.mubr.f32.gmra.mrb[0].mxu0 %v345
        %v468 = vpop.f32.mrb[0].mxu0
        %v469 = vadd.f32 %v326, %v468
        %v470 = vpop.f32.mrb[0].mxu0
        %471 = vmatprep.mubr.f32.mxu0 0.0
        %472 = vmatmul.mubr.f32.gmra.mrb[0].mxu0 %v348
        %v473 = vpop.f32.mrb[0].mxu0
        %v474 = vadd.f32 %v326, %v473
        %v475 = vpop.f32.mrb[0].mxu0
        %476 = vmatprep.mubr.f32.mxu0 0.0
        %477 = vmatmul.mubr.f32.gmra.mrb[0].mxu0 %v351
        %v478 = vpop.f32.mrb[0].mxu0
        %v479 = vadd.f32 %v326, %v478
        %v480 = vpop.f32.mrb[0].mxu0
        %481 = vmatprep.mubr.f32.mxu0 0.0
        %482 = vmatmul.mubr.f32.gmra.mrb[0].mxu0 %v354
        %v483 = vpop.f32.mrb[0].mxu0
        %v484 = vadd.f32 %v326, %v483
        %v485 = vpop.f32.mrb[0].mxu0
        %486 = vmatprep.mubr.f32.mxu0 0.0
        %487 = vmatmul.mubr.f32.gmra.mrb[0].mxu0 %v357
        %v488 = vpop.f32.mrb[0].mxu0
        %v489 = vadd.f32 %v326, %v488
        %v490 = vpop.f32.mrb[0].mxu0
        %491 = vmatprep.mubr.f32.mxu0 0.0
        %492 = vmatmul.mubr.f32.gmra.mrb[0].mxu0 %v360
        %v493 = vpop.f32.mrb[0].mxu0
        %v494 = vadd.f32 %v326, %v493
        %v495 = vpop.f32.mrb[0].mxu0
        %496 = vmatprep.mubr.f32.mxu0 0.0
        %497 = vmatmul.mubr.f32.gmra.mrb[0].mxu0 %v363
        %v498 = vpop.f32.mrb[0].mxu0
        %v499 = vadd.f32 %v326, %v498
        %v500 = vpop.f32.mrb[0].mxu0
        %501 = vmatprep.mubr.f32.mxu0 0.0
        %502 = vmatmul.mubr.f32.gmra.mrb[0].mxu0 %v366
        %v503 = vpop.f32.mrb[0].mxu0
        %v504 = vadd.f32 %v326, %v503
        %v505 = vpop.f32.mrb[0].mxu0
        %506 = vmatprep.mubr.f32.mxu0 0.0
        %507 = vmatmul.mubr.f32.gmra.mrb[0].mxu0 %v369
        %v508 = vpop.f32.mrb[0].mxu0
        %v509 = vadd.f32 %v326, %v508
        %v510 = vpop.f32.mrb[0].mxu0
        %511 = vmatprep.mubr.f32.mxu0 0.0
        %512 = vmatmul.mubr.f32.gmra.mrb[0].mxu0 %v372
        %v513 = vpop.f32.mrb[0].mxu0
        %v514 = vadd.f32 %v326, %v513
        %v515 = vpop.f32.mrb[0].mxu0
        %516 = vmatprep.mubr.f32.mxu0 0.0
        %517 = vmatmul.mubr.f32.gmra.mrb[0].mxu0 %v375
        %v518 = vpop.f32.mrb[0].mxu0
        %v519 = vadd.f32 %v326, %v518
        %v520 = vpop.f32.mrb[0].mxu0
        %521 = vdwg.mxu0
        %v522 = vmul.f32 %v444, 0.5
        %v523 = vmul.f32 %v449, 0.5
        %v524 = vmul.f32 %v454, 0.5
        %v525 = vmul.f32 %v459, 0.5
        %v526 = vmul.f32 %v464, 0.5
        %v527 = vmul.f32 %v469, 0.5
        %v528 = vmul.f32 %v474, 0.5
        %v529 = vmul.f32 %v479, 0.5
        %v530 = vmul.f32 %v484, 0.5
        %v531 = vmul.f32 %v489, 0.5
        %v532 = vmul.f32 %v494, 0.5
        %v533 = vmul.f32 %v499, 0.5
        %v534 = vmul.f32 %v504, 0.5
        %v535 = vmul.f32 %v509, 0.5
        %v536 = vmul.f32 %v514, 0.5
        %v537 = vmul.f32 %v519, 0.5
        %v538 = vmul.f32 %v444, 0.70710677
        %v539 = vmul.f32 %v449, 0.70710677
        %v540 = vmul.f32 %v454, 0.70710677
        %v541 = vmul.f32 %v459, 0.70710677
        %v542 = vmul.f32 %v464, 0.70710677
        %v543 = vmul.f32 %v469, 0.70710677
        %v544 = vmul.f32 %v474, 0.70710677
        %v545 = vmul.f32 %v479, 0.70710677
        %v546 = vmul.f32 %v484, 0.70710677
        %v547 = vmul.f32 %v489, 0.70710677
        %v548 = vmul.f32 %v494, 0.70710677
        %v549 = vmul.f32 %v499, 0.70710677
        %v550 = vmul.f32 %v504, 0.70710677
        %v551 = vmul.f32 %v509, 0.70710677
        %v552 = vmul.f32 %v514, 0.70710677
        %v553 = vmul.f32 %v519, 0.70710677
        %v554 = verf.f32.pop %v538
        %v555 = verf.f32.pop %v539
        %v556 = verf.f32.pop %v540
        %v557 = verf.f32.pop %v541
        %v558 = verf.f32.pop %v542
        %v559 = verf.f32.pop %v543
        %v560 = verf.f32.pop %v544
        %v561 = verf.f32.pop %v545
        %v562 = verf.f32.pop %v546
        %v563 = verf.f32.pop %v547
        %v564 = verf.f32.pop %v548
        %v565 = verf.f32.pop %v549
        %v566 = verf.f32.pop %v550
        %v567 = verf.f32.pop %v551
        %v568 = verf.f32.pop %v552
        %v569 = verf.f32.pop %v553
        %v570 = vadd.f32 %v554, 1.0
        %v571 = vadd.f32 %v555, 1.0
        %v572 = vadd.f32 %v556, 1.0
        %v573 = vadd.f32 %v557, 1.0
        %v574 = vadd.f32 %v558, 1.0
        %v575 = vadd.f32 %v559, 1.0
        %v576 = vadd.f32 %v560, 1.0
        %v577 = vadd.f32 %v561, 1.0
        %v578 = vadd.f32 %v562, 1.0
        %v579 = vadd.f32 %v563, 1.0
        %v580 = vadd.f32 %v564, 1.0
        %v581 = vadd.f32 %v565, 1.0
        %v582 = vadd.f32 %v566, 1.0
        %v583 = vadd.f32 %v567, 1.0
        %v584 = vadd.f32 %v568, 1.0
        %v585 = vadd.f32 %v569, 1.0
        %v586 = vmul.f32 %v522, %v570
        %v587 = vmul.f32 %v523, %v571
        %v588 = vmul.f32 %v524, %v572
        %v589 = vmul.f32 %v525, %v573
        %v590 = vmul.f32 %v526, %v574
        %v591 = vmul.f32 %v527, %v575
        %v592 = vmul.f32 %v528, %v576
        %v593 = vmul.f32 %v529, %v577
        %v594 = vmul.f32 %v530, %v578
        %v595 = vmul.f32 %v531, %v579
        %v596 = vmul.f32 %v532, %v580
        %v597 = vmul.f32 %v533, %v581
        %v598 = vmul.f32 %v534, %v582
        %v599 = vmul.f32 %v535, %v583
        %v600 = vmul.f32 %v536, %v584
        %v601 = vmul.f32 %v537, %v585
        %v602 = vsel %vm288, 1, 0
        %v603 = vsel %vm289, 1, 0
        %v604 = vsel %vm290, 1, 0
        %v605 = vsel %vm291, 1, 0
        %v606 = vsel %vm292, 1, 0
        %v607 = vsel %vm293, 1, 0
        %v608 = vsel %vm294, 1, 0
        %v609 = vsel %vm295, 1, 0
        %v610 = vsel %vm296, 1, 0
        %v611 = vsel %vm297, 1, 0
        %v612 = vsel %vm298, 1, 0
        %v613 = vsel %vm299, 1, 0
        %v614 = vsel %vm300, 1, 0
        %v615 = vsel %vm301, 1, 0
        %v616 = vsel %vm302, 1, 0
        %v617 = vsel %vm303, 1, 0
        %vm618 = vcmp.eq.s32.totalorder %v602, 1
        %vm619 = vcmp.eq.s32.totalorder %v603, 1
        %vm620 = vcmp.eq.s32.totalorder %v604, 1
        %vm621 = vcmp.eq.s32.totalorder %v605, 1
        %vm622 = vcmp.eq.s32.totalorder %v606, 1
        %vm623 = vcmp.eq.s32.totalorder %v607, 1
        %vm624 = vcmp.eq.s32.totalorder %v608, 1
        %vm625 = vcmp.eq.s32.totalorder %v609, 1
        %vm626 = vcmp.eq.s32.totalorder %v610, 1
        %vm627 = vcmp.eq.s32.totalorder %v611, 1
        %vm628 = vcmp.eq.s32.totalorder %v612, 1
        %vm629 = vcmp.eq.s32.totalorder %v613, 1
        %vm630 = vcmp.eq.s32.totalorder %v614, 1
        %vm631 = vcmp.eq.s32.totalorder %v615, 1
        %vm632 = vcmp.eq.s32.totalorder %v616, 1
        %vm633 = vcmp.eq.s32.totalorder %v617, 1
        %v634 = vsel %vm618, %v586, 0.0
        %v635 = vsel %vm619, %v587, 0.0
        %v636 = vsel %vm620, %v588, 0.0
        %v637 = vsel %vm621, %v589, 0.0
        %v638 = vsel %vm622, %v590, 0.0
        %v639 = vsel %vm623, %v591, 0.0
        %v640 = vsel %vm624, %v592, 0.0
        %v641 = vsel %vm625, %v593, 0.0
        %v642 = vsel %vm626, %v594, 0.0
        %v643 = vsel %vm627, %v595, 0.0
        %v644 = vsel %vm628, %v596, 0.0
        %v645 = vsel %vm629, %v597, 0.0
        %v646 = vsel %vm630, %v598, 0.0
        %v647 = vsel %vm631, %v599, 0.0
        %v648 = vsel %vm632, %v600, 0.0
        %v649 = vsel %vm633, %v601, 0.0
        %v650 = vld [vmem:[#allocation8] sm:$0x1]
        %v651 = vadd.f32 %v634, %v635
        %v652 = vadd.f32 %v651, %v636
        %v653 = vadd.f32 %v652, %v637
        %v654 = vadd.f32 %v653, %v638
        %v655 = vadd.f32 %v654, %v639
        %v656 = vadd.f32 %v655, %v640
        %v657 = vadd.f32 %v656, %v641
        %v658 = vadd.f32 %v657, %v642
        %v659 = vadd.f32 %v658, %v643
        %v660 = vadd.f32 %v659, %v644
        %v661 = vadd.f32 %v660, %v645
        %v662 = vadd.f32 %v661, %v646
        %v663 = vadd.f32 %v662, %v647
        %v664 = vadd.f32 %v663, %v648
        %v665 = vadd.f32 %v664, %v649
        %v666 = vrot.slane %v665, 4
        %v667 = vadd.f32 %v665, %v666
        %v668 = vrot.slane %v667, 2
        %v669 = vadd.f32 %v667, %v668
        %v670 = vrot.slane %v669, 1
        %v671 = vadd.f32 %v669, %v670
        %v672 = vadd.f32 %v650, %v671
        %673 = vst [vmem:[#allocation8] sm:$0x1] %v672
        %v674 = vld [vmem:[#allocation9] sm:$0x1]
        %v675 = vmul.f32 %v634, %v634
        %v676 = vmul.f32 %v635, %v635
        %v677 = vmul.f32 %v636, %v636
        %v678 = vmul.f32 %v637, %v637
        %v679 = vmul.f32 %v638, %v638
        %v680 = vmul.f32 %v639, %v639
        %v681 = vmul.f32 %v640, %v640
        %v682 = vmul.f32 %v641, %v641
        %v683 = vmul.f32 %v642, %v642
        %v684 = vmul.f32 %v643, %v643
        %v685 = vmul.f32 %v644, %v644
        %v686 = vmul.f32 %v645, %v645
        %v687 = vmul.f32 %v646, %v646
        %v688 = vmul.f32 %v647, %v647
        %v689 = vmul.f32 %v648, %v648
        %v690 = vmul.f32 %v649, %v649
        %v691 = vadd.f32 %v675, %v676
        %v692 = vadd.f32 %v691, %v677
        %v693 = vadd.f32 %v692, %v678
        %v694 = vadd.f32 %v693, %v679
        %v695 = vadd.f32 %v694, %v680
        %v696 = vadd.f32 %v695, %v681
        %v697 = vadd.f32 %v696, %v682
        %v698 = vadd.f32 %v697, %v683
        %v699 = vadd.f32 %v698, %v684
        %v700 = vadd.f32 %v699, %v685
        %v701 = vadd.f32 %v700, %v686
        %v702 = vadd.f32 %v701, %v687
        %v703 = vadd.f32 %v702, %v688
        %v704 = vadd.f32 %v703, %v689
        %v705 = vadd.f32 %v704, %v690
        %v706 = vrot.slane %v705, 4
        %v707 = vadd.f32 %v705, %v706
        %v708 = vrot.slane %v707, 2
        %v709 = vadd.f32 %v707, %v708
        %v710 = vrot.slane %v709, 1
        %v711 = vadd.f32 %v709, %v710
        %v712 = vadd.f32 %v674, %v711
        %713 = vst [vmem:[#allocation9] sm:$0x1] %v712
        // Predicated region
        $region49: #{series_embedding.3} parent=31 // pred_check
          %p714 = pneg %p117
        $region50: #{series_embedding.3} parent=31 // pred_check_branch
          %716 = sbr.rel (%p714) target = $region52
        $region51: #{series_embedding.3} parent=31 // pred_region
          %s718 = ssub.s32 16, 16
          %719 = vsyncadd [#allocation4], %s718
          %s721 = sshll.u32 [#allocation8], 4
          %s722 = int_to_ptr.vmem [resolvable:$true] %s721
          %724 = dma.vmem_to_hbm [thread:$0]  %s722, 16, %s3, [#allocation4]
        $region52: #{series_embedding.3} parent=31 // pred_fallthru
          _
        // Predicated region
        $region53: #{series_embedding.3} parent=31 // pred_check
          %p725 = pneg %p138
        $region54: #{series_embedding.3} parent=31 // pred_check_branch
          %727 = sbr.rel (%p725) target = $region56
        $region55: #{series_embedding.3} parent=31 // pred_region
          %s729 = ssub.s32 16, 16
          %730 = vsyncadd [#allocation10], %s729
          %s732 = sshll.u32 [#allocation9], 4
          %s733 = int_to_ptr.vmem [resolvable:$true] %s732
          %735 = dma.vmem_to_hbm [thread:$0]  %s733, 16, %s4, [#allocation10]
        $region56: #{series_embedding.3} parent=31 // pred_fallthru
          _
        // Predicated region
        $region57: #{series_embedding.3} parent=31 // pred_check
          %p736 = pneg %p117
        $region58: #{series_embedding.3} parent=31 // pred_check_branch
          %738 = sbr.rel (%p736) target = $region60
        $region59: #{series_embedding.3} parent=31 // pred_region
          %739 = dma.done [#allocation4], 16
        $region60: #{series_embedding.3} parent=31 // pred_fallthru
          _
        // Predicated region
        $region61: #{series_embedding.3} parent=31 // pred_check
          %p740 = pneg %p138
        $region62: #{series_embedding.3} parent=31 // pred_check_branch
          %742 = sbr.rel (%p740) target = $region64
        $region63: #{series_embedding.3} parent=31 // pred_region
          %743 = dma.done [#allocation10], 16
        $region64: #{series_embedding.3} parent=31 // pred_fallthru
          _
      $region32: #{series_embedding.3} parent=5 // pred_fallthru
        _
      %p744 = scmp.le.s32.totalorder 2, %s17
      // Predicated region
      $region65: #{series_embedding.3} parent=5 // pred_check
        %p745 = pneg %p744
      $region66: #{series_embedding.3} parent=5 // pred_check_branch
        %747 = sbr.rel (%p745) target = $region68
      $region67: #{series_embedding.3} parent=5 // pred_region
        %s748 = ssub.s32 %s17, 2
      $region68: #{series_embedding.3} parent=5 // pred_fallthru
        _
    $region6: #{series_embedding.3} parent=1 // loop_footer
      %s21 = sadd.s32 1, %s17
    $region7: #{series_embedding.3} parent=1 // loop_footer_branch
      %16 = sbr.rel target = $region3
    $region8: #{series_embedding.3} parent=1 // loop_exit
      _
    %749 = vsyncpa [#allocation3], 1
    %s750 = scalar_lea.sflag [#allocation3], 1
    %751 = vsyncpa %s750, 1
    %752 = vsyncpa [#allocation6], 1
    %753 = vsyncpa [#allocation4], 1
    %s754 = scalar_lea.sflag [#allocation4], 1
    %755 = vsyncpa %s754, 1
    %756 = vsyncpa [#allocation10], 1

// kernel: series_embedding.4
$region0: #{series_embedding.4}
  #allocation0 [shape = 'u32[]', space=smem, size = 0x4, offset = 0x4, fixed_abs, tag = 'smem constant byte address 0x4 - core index']
  #allocation1 [shape = 'u32[144,128]{1,0:T(1,128)}', space=vmem, size = 0x12000, scoped, tag = 'internal scratch']
  %s0 = inlined_call_operand.hbm [shape: f32[2,128,8], index: 0, kind: input, shape index: {}]
  %s1 = inlined_call_operand.hbm [shape: f32[8,128], index: 1, kind: input, shape index: {}]
  %s2 = inlined_call_operand.hbm [shape: f32[1,128], index: 2, kind: input, shape index: {}]
  %s3 = inlined_call_operand.hbm [shape: f32[1,128], index: 3, kind: input, shape index: {}]
  %s4 = inlined_call_operand.hbm [shape: f32[1,128], index: 4, kind: input, shape index: {}]
  %s5 = inlined_call_operand.hbm [shape: f32[128,128], index: 5, kind: input, shape index: {}]
  %s6 = inlined_call_operand.hbm [shape: f32[1,128], index: 6, kind: input, shape index: {}]
  %s7 = inlined_call_operand.hbm [shape: f32[1,128], index: 7, kind: output, shape index: {0}]
  %s8 = inlined_call_operand.hbm [shape: f32[1,128], index: 8, kind: output, shape index: {1}]
  %9 = xla_tuple %s7, %s8
  %s10 = sld [smem:[#allocation0]]
  $region101: #{series_embedding.4} parent=0
    _
  %s12 = ssub.s32 1, %s10
  %s13 = scalar_select 0, %s12, %s10
  $region1: #{series_embedding.4} parent=0
    #allocation2 [shape = 'u8[131072]{0}', space=vmem, size = 0x20000, scoped, tag = 'input window, operand 0']
    #allocation3 [shape = 's32[2]{0}', space=sflag, size = 0x8, scoped, tag = 'scoped memory for series_embedding.4']
    #allocation4 [shape = 's32[2]{0}', space=sflag, size = 0x8, scoped, tag = 'scoped memory for series_embedding.4']
    #allocation5 [shape = 'u8[4096]{0}', space=vmem, size = 0x1000, scoped, tag = 'input window, operand 1, single buffered']
    #allocation6 [shape = 's32[1]{0}', space=sflag, size = 0x4, scoped, tag = 'scoped memory for series_embedding.4']
    #allocation7 [shape = 'u8[512]{0}', space=vmem, size = 0x400, scoped, tag = 'input window, operand 2, single buffered']
    #allocation8 [shape = 'u8[512]{0}', space=vmem, size = 0x400, scoped, tag = 'input window, operand 3, single buffered']
    #allocation9 [shape = 's32[1]{0}', space=sflag, size = 0x4, scoped, tag = 'scoped memory for series_embedding.4']
    #allocation10 [shape = 'u8[512]{0}', space=vmem, size = 0x400, scoped, tag = 'input window, operand 4, single buffered']
    #allocation11 [shape = 'u8[65536]{0}', space=vmem, size = 0x10000, scoped, tag = 'input window, operand 5, single buffered']
    #allocation12 [shape = 's32[1]{0}', space=sflag, size = 0x4, scoped, tag = 'scoped memory for series_embedding.4']
    #allocation13 [shape = 'u8[512]{0}', space=vmem, size = 0x400, scoped, tag = 'input window, operand 6, single buffered']
    #allocation14 [shape = 'u8[512]{0}', space=vmem, size = 0x400, scoped, tag = 'output window, operand 0, single buffered']
    #allocation15 [shape = 'u8[512]{0}', space=vmem, size = 0x400, scoped, tag = 'output window, operand 1, single buffered']
    #allocation16 [shape = 's32[1]{0}', space=sflag, size = 0x4, scoped, tag = 'scoped memory for series_embedding.4']
    %14 = vsyncpa [#allocation3], 0
    %s15 = scalar_lea.sflag [#allocation3], 1
    %16 = vsyncpa %s15, 0
    %17 = vsyncpa [#allocation6], 0
    %18 = vsyncpa [#allocation9], 0
    %19 = vsyncpa [#allocation12], 0
    %20 = vsyncpa [#allocation4], 0
    %21 = vsyncpa [#allocation16], 0
    loop: start=0, step=1, limit=4
    $region2: #{series_embedding.4} parent=1 // loop_pre_header
      _
    $region3: #{series_embedding.4} parent=1 // loop_header
      %s23 = sphi 0, %s27
      %p24 = scmp.ge.s32.totalorder %s23, 4
      %s30 = sphi 0, %s42
      %s31 = sphi 0, %s38
      %s32 = sphi 0, %s30
      %s33 = sphi 0, %s31
      %s34 = sphi 0, %s32
      %s35 = sphi 0, %s33
      %s47 = sphi 0, %s49
      %s50 = sphi 0, %s47
      %s51 = sphi 0, %s50
      %s67 = sphi 0, %s51
      %s71 = sphi 0, %s71
      %s73 = sphi 0, %s71
      %s74 = sphi 0, %s73
      %s88 = sphi 0, %s74
      %s92 = sphi 0, %s92
      %s94 = sphi 0, %s92
      %s95 = sphi 0, %s94
      %s109 = sphi 0, %s95
      %s113 = sphi 0, %s113
      %s115 = sphi 0, %s113
      %s116 = sphi 0, %s115
      %s130 = sphi 0, %s116
      %s134 = sphi 0, %s134
      %s136 = sphi 0, %s134
      %s137 = sphi 0, %s136
      %s151 = sphi 0, %s137
      %s155 = sphi 0, %s155
      %s157 = sphi 0, %s155
      %s158 = sphi 0, %s157
      %s172 = sphi 0, %s158
      %s176 = sphi 0, %s176
      %s178 = sphi 0, %s176
      %s179 = sphi 0, %s178
      %s193 = sphi 0, %s179
      %s197 = sphi 0, %s197
      %s199 = sphi 0, %s197
      %s200 = sphi 0, %s199
      %s214 = sphi 0, %s200
      %s218 = sphi 0, %s218
      %s220 = sphi 0, %s218
      %s221 = sphi 0, %s220
      %s235 = sphi 0, %s221
    $region4: #{series_embedding.4} parent=1 // loop_header_branch
      %26 = sbr.rel (%p24) target = $region8
    $region5: #{series_embedding.4} parent=1 // loop_body
      %s28 = ssub.s32 %s23, 1
      %s29 = ssub.s32 %s23, 2
      %s36 = sadd.s32 1, %s31
      %p37 = scmp.ge.s32.totalorder %s36, 1
      %s38 = scalar_select %p37, 0, %s36
      %s39 = sadd.s32 1, %s30
      %s40 = scalar_select %p37, %s39, %s30
      %p41 = scmp.ge.s32.totalorder %s40, 2
      %s42 = scalar_select %p41, 0, %s40
      %s43 = ssub.s32 %s30, %s42
      %s44 = ssub.s32 %s31, %s38
      %s45 = sor.u32 %s43, %s44
      %p46 = scmp.eq.s32.totalorder %s45, 0
      %s48 = sadd.s32 %s47, 1
      %s49 = scalar_select %p46, %s47, %s48
      %p52 = pneg %p46
      %p53 = scmp.eq.s32.totalorder %s23, 1
      %p54 = por %p52, %p53
      %p55 = scmp.ne.s32.totalorder %s47, %s50
      %p56 = scmp.eq.s32.totalorder %s23, 0
      %p57 = por %p55, %p56
      %p58 = scmp.ne.s32.totalorder %s47, %s50
      %p59 = scmp.eq.s32.totalorder %s28, 1
      %p60 = por %p58, %p59
      %p61 = scmp.ne.s32.totalorder %s50, %s51
      %p62 = scmp.eq.s32.totalorder %s28, 0
      %p63 = por %p61, %p62
      %p64 = scmp.ne.s32.totalorder %s50, %s51
      %p65 = scmp.eq.s32.totalorder %s29, 1
      %p66 = por %p64, %p65
      %p68 = scmp.ne.s32.totalorder %s51, %s67
      %p69 = scmp.eq.s32.totalorder %s29, 0
      %p70 = por %p68, %p69
      %s72 = sadd.s32 %s71, 1
      %p75 = scmp.eq.s32.totalorder %s23, 1
      %p76 = scmp.ne.s32.totalorder %s71, %s73
      %p77 = scmp.eq.s32.totalorder %s23, 0
      %p78 = por %p76, %p77
      %p79 = scmp.ne.s32.totalorder %s71, %s73
      %p80 = scmp.eq.s32.totalorder %s28, 1
      %p81 = por %p79, %p80
      %p82 = scmp.ne.s32.totalorder %s73, %s74
      %p83 = scmp.eq.s32.totalorder %s28, 0
      %p84 = por %p82, %p83
      %p85 = scmp.ne.s32.totalorder %s73, %s74
      %p86 = scmp.eq.s32.totalorder %s29, 1
      %p87 = por %p85, %p86
      %p89 = scmp.ne.s32.totalorder %s74, %s88
      %p90 = scmp.eq.s32.totalorder %s29, 0
      %p91 = por %p89, %p90
      %s93 = sadd.s32 %s92, 1
      %p96 = scmp.eq.s32.totalorder %s23, 1
      %p97 = scmp.ne.s32.totalorder %s92, %s94
      %p98 = scmp.eq.s32.totalorder %s23, 0
      %p99 = por %p97, %p98
      %p100 = scmp.ne.s32.totalorder %s92, %s94
      %p101 = scmp.eq.s32.totalorder %s28, 1
      %p102 = por %p100, %p101
      %p103 = scmp.ne.s32.totalorder %s94, %s95
      %p104 = scmp.eq.s32.totalorder %s28, 0
      %p105 = por %p103, %p104
      %p106 = scmp.ne.s32.totalorder %s94, %s95
      %p107 = scmp.eq.s32.totalorder %s29, 1
      %p108 = por %p106, %p107
      %p110 = scmp.ne.s32.totalorder %s95, %s109
      %p111 = scmp.eq.s32.totalorder %s29, 0
      %p112 = por %p110, %p111
      %s114 = sadd.s32 %s113, 1
      %p117 = scmp.eq.s32.totalorder %s23, 1
      %p118 = scmp.ne.s32.totalorder %s113, %s115
      %p119 = scmp.eq.s32.totalorder %s23, 0
      %p120 = por %p118, %p119
      %p121 = scmp.ne.s32.totalorder %s113, %s115
      %p122 = scmp.eq.s32.totalorder %s28, 1
      %p123 = por %p121, %p122
      %p124 = scmp.ne.s32.totalorder %s115, %s116
      %p125 = scmp.eq.s32.totalorder %s28, 0
      %p126 = por %p124, %p125
      %p127 = scmp.ne.s32.totalorder %s115, %s116
      %p128 = scmp.eq.s32.totalorder %s29, 1
      %p129 = por %p127, %p128
      %p131 = scmp.ne.s32.totalorder %s116, %s130
      %p132 = scmp.eq.s32.totalorder %s29, 0
      %p133 = por %p131, %p132
      %s135 = sadd.s32 %s134, 1
      %p138 = scmp.eq.s32.totalorder %s23, 1
      %p139 = scmp.ne.s32.totalorder %s134, %s136
      %p140 = scmp.eq.s32.totalorder %s23, 0
      %p141 = por %p139, %p140
      %p142 = scmp.ne.s32.totalorder %s134, %s136
      %p143 = scmp.eq.s32.totalorder %s28, 1
      %p144 = por %p142, %p143
      %p145 = scmp.ne.s32.totalorder %s136, %s137
      %p146 = scmp.eq.s32.totalorder %s28, 0
      %p147 = por %p145, %p146
      %p148 = scmp.ne.s32.totalorder %s136, %s137
      %p149 = scmp.eq.s32.totalorder %s29, 1
      %p150 = por %p148, %p149
      %p152 = scmp.ne.s32.totalorder %s137, %s151
      %p153 = scmp.eq.s32.totalorder %s29, 0
      %p154 = por %p152, %p153
      %s156 = sadd.s32 %s155, 1
      %p159 = scmp.eq.s32.totalorder %s23, 1
      %p160 = scmp.ne.s32.totalorder %s155, %s157
      %p161 = scmp.eq.s32.totalorder %s23, 0
      %p162 = por %p160, %p161
      %p163 = scmp.ne.s32.totalorder %s155, %s157
      %p164 = scmp.eq.s32.totalorder %s28, 1
      %p165 = por %p163, %p164
      %p166 = scmp.ne.s32.totalorder %s157, %s158
      %p167 = scmp.eq.s32.totalorder %s28, 0
      %p168 = por %p166, %p167
      %p169 = scmp.ne.s32.totalorder %s157, %s158
      %p170 = scmp.eq.s32.totalorder %s29, 1
      %p171 = por %p169, %p170
      %p173 = scmp.ne.s32.totalorder %s158, %s172
      %p174 = scmp.eq.s32.totalorder %s29, 0
      %p175 = por %p173, %p174
      %s177 = sadd.s32 %s176, 1
      %p180 = scmp.eq.s32.totalorder %s23, 1
      %p181 = scmp.ne.s32.totalorder %s176, %s178
      %p182 = scmp.eq.s32.totalorder %s23, 0
      %p183 = por %p181, %p182
      %p184 = scmp.ne.s32.totalorder %s176, %s178
      %p185 = scmp.eq.s32.totalorder %s28, 1
      %p186 = por %p184, %p185
      %p187 = scmp.ne.s32.totalorder %s178, %s179
      %p188 = scmp.eq.s32.totalorder %s28, 0
      %p189 = por %p187, %p188
      %p190 = scmp.ne.s32.totalorder %s178, %s179
      %p191 = scmp.eq.s32.totalorder %s29, 1
      %p192 = por %p190, %p191
      %p194 = scmp.ne.s32.totalorder %s179, %s193
      %p195 = scmp.eq.s32.totalorder %s29, 0
      %p196 = por %p194, %p195
      %s198 = sadd.s32 %s197, 1
      %p201 = scmp.eq.s32.totalorder %s23, 1
      %p202 = scmp.ne.s32.totalorder %s197, %s199
      %p203 = scmp.eq.s32.totalorder %s23, 0
      %p204 = por %p202, %p203
      %p205 = scmp.ne.s32.totalorder %s197, %s199
      %p206 = scmp.eq.s32.totalorder %s28, 1
      %p207 = por %p205, %p206
      %p208 = scmp.ne.s32.totalorder %s199, %s200
      %p209 = scmp.eq.s32.totalorder %s28, 0
      %p210 = por %p208, %p209
      %p211 = scmp.ne.s32.totalorder %s199, %s200
      %p212 = scmp.eq.s32.totalorder %s29, 1
      %p213 = por %p211, %p212
      %p215 = scmp.ne.s32.totalorder %s200, %s214
      %p216 = scmp.eq.s32.totalorder %s29, 0
      %p217 = por %p215, %p216
      %s219 = sadd.s32 %s218, 1
      %p222 = scmp.eq.s32.totalorder %s23, 1
      %p223 = scmp.ne.s32.totalorder %s218, %s220
      %p224 = scmp.eq.s32.totalorder %s23, 0
      %p225 = por %p223, %p224
      %p226 = scmp.ne.s32.totalorder %s218, %s220
      %p227 = scmp.eq.s32.totalorder %s28, 1
      %p228 = por %p226, %p227
      %p229 = scmp.ne.s32.totalorder %s220, %s221
      %p230 = scmp.eq.s32.totalorder %s28, 0
      %p231 = por %p229, %p230
      %p232 = scmp.ne.s32.totalorder %s220, %s221
      %p233 = scmp.eq.s32.totalorder %s29, 1
      %p234 = por %p232, %p233
      %p236 = scmp.ne.s32.totalorder %s221, %s235
      %p237 = scmp.eq.s32.totalorder %s29, 0
      %p238 = por %p236, %p237
      %p239 = scmp.le.s32.totalorder 1, %s23
      %p240 = scmp.lt.s32.totalorder %s23, 3
      %p241 = pnand %p239, %p240
      %p242 = pneg %p241
      // Predicated region
      $region9: #{series_embedding.4} parent=5 // pred_check
        _
      $region10: #{series_embedding.4} parent=5 // pred_check_branch
        %244 = sbr.rel (%p241) target = $region12
      $region11: #{series_embedding.4} parent=5 // pred_region
        %s245 = ssub.s32 %s23, 1
        // Predicated region
        $region13: #{series_embedding.4} parent=11 // pred_check
          %p246 = pneg %p84
        $region14: #{series_embedding.4} parent=11 // pred_check_branch
          %248 = sbr.rel (%p246) target = $region16
        $region15: #{series_embedding.4} parent=11 // pred_region
          %s250 = ssub.s32 128, 128
          %251 = vsyncadd [#allocation6], %s250
          %s253 = sshll.u32 [#allocation5], 4
          %s254 = int_to_ptr.vmem [resolvable:$true] %s253
          %256 = dma.hbm_to_vmem [thread:$0]  %s1, 128, %s254, [#allocation6]
        $region16: #{series_embedding.4} parent=11 // pred_fallthru
          _
        // Predicated region
        $region17: #{series_embedding.4} parent=11 // pred_check
          %p257 = pneg %p105
        $region18: #{series_embedding.4} parent=11 // pred_check_branch
          %259 = sbr.rel (%p257) target = $region20
        $region19: #{series_embedding.4} parent=11 // pred_region
          %s261 = ssub.s32 16, 16
          %262 = vsyncadd [#allocation6], %s261
          %s264 = sshll.u32 [#allocation7], 4
          %s265 = int_to_ptr.vmem [resolvable:$true] %s264
          %267 = dma.hbm_to_vmem [thread:$0]  %s2, 16, %s265, [#allocation6]
        $region20: #{series_embedding.4} parent=11 // pred_fallthru
          _
        // Predicated region
        $region21: #{series_embedding.4} parent=11 // pred_check
          %p268 = pneg %p126
        $region22: #{series_embedding.4} parent=11 // pred_check_branch
          %270 = sbr.rel (%p268) target = $region24
        $region23: #{series_embedding.4} parent=11 // pred_region
          %s272 = ssub.s32 16, 16
          %273 = vsyncadd [#allocation9], %s272
          %s275 = sshll.u32 [#allocation8], 4
          %s276 = int_to_ptr.vmem [resolvable:$true] %s275
          %278 = dma.hbm_to_vmem [thread:$0]  %s3, 16, %s276, [#allocation9]
        $region24: #{series_embedding.4} parent=11 // pred_fallthru
          _
        // Predicated region
        $region25: #{series_embedding.4} parent=11 // pred_check
          %p279 = pneg %p147
        $region26: #{series_embedding.4} parent=11 // pred_check_branch
          %281 = sbr.rel (%p279) target = $region28
        $region27: #{series_embedding.4} parent=11 // pred_region
          %s283 = ssub.s32 16, 16
          %284 = vsyncadd [#allocation9], %s283
          %s286 = sshll.u32 [#allocation10], 4
          %s287 = int_to_ptr.vmem [resolvable:$true] %s286
          %289 = dma.hbm_to_vmem [thread:$0]  %s4, 16, %s287, [#allocation9]
        $region28: #{series_embedding.4} parent=11 // pred_fallthru
          _
        // Predicated region
        $region29: #{series_embedding.4} parent=11 // pred_check
          %p290 = pneg %p168
        $region30: #{series_embedding.4} parent=11 // pred_check_branch
          %292 = sbr.rel (%p290) target = $region32
        $region31: #{series_embedding.4} parent=11 // pred_region
          %s294 = ssub.s32 2048, 2048
          %295 = vsyncadd [#allocation12], %s294
          %s296 = sshll.u32 [#allocation11], 4
          %s297 = int_to_ptr.vmem [resolvable:$true] %s296
          %302 = dma.hbm_to_vmem [thread:$0]  %s5, 2048, %s297, [#allocation12], 128, 128, 8
        $region32: #{series_embedding.4} parent=11 // pred_fallthru
          _
        // Predicated region
        $region33: #{series_embedding.4} parent=11 // pred_check
          %p303 = pneg %p189
        $region34: #{series_embedding.4} parent=11 // pred_check_branch
          %305 = sbr.rel (%p303) target = $region36
        $region35: #{series_embedding.4} parent=11 // pred_region
          %s307 = ssub.s32 16, 16
          %308 = vsyncadd [#allocation12], %s307
          %s310 = sshll.u32 [#allocation13], 4
          %s311 = int_to_ptr.vmem [resolvable:$true] %s310
          %313 = dma.hbm_to_vmem [thread:$0]  %s6, 16, %s311, [#allocation12]
        $region36: #{series_embedding.4} parent=11 // pred_fallthru
          _
      $region12: #{series_embedding.4} parent=5 // pred_fallthru
        _
      %p314 = scmp.lt.s32.totalorder %s23, 2
      // Predicated region
      $region37: #{series_embedding.4} parent=5 // pred_check
        %p315 = pneg %p314
      $region38: #{series_embedding.4} parent=5 // pred_check_branch
        %317 = sbr.rel (%p315) target = $region40
      $region39: #{series_embedding.4} parent=5 // pred_region
        // Predicated region
        $region41: #{series_embedding.4} parent=39 // pred_check
          %p318 = pneg %p57
        $region42: #{series_embedding.4} parent=39 // pred_check_branch
          %320 = sbr.rel (%p318) target = $region44
        $region43: #{series_embedding.4} parent=39 // pred_region
          %s321 = sand.u32 %s47, 1
          %s322 = scalar_lea.sflag [#allocation3], %s321
          %s323 = sand.u32 %s47, 1
          %s324 = smul.addr %s323, 128
          %s325 = scalar_lea.vmem [#allocation2], %s324
          %s326 = smul.u32 16, %s31
          %s328 = ssub.s32 2048, 2048
          %329 = vsyncadd %s322, %s328
          %s330 = smul.addr %s30, 16
          %s331 = sadd.s32 %s326, %s330
          %s332 = smul.addr %s331, 128
          %s333 = scalar_lea.hbm %s0, %s332
          %s334 = sshll.u32 %s325, 4
          %s335 = int_to_ptr.vmem [resolvable:$true] %s334
          %340 = dma.hbm_to_vmem [thread:$0]  %s333, 2048, %s335, %s322, 128, 128, 8
        $region44: #{series_embedding.4} parent=39 // pred_fallthru
          _
      $region40: #{series_embedding.4} parent=5 // pred_fallthru
        _
      %p341 = scmp.le.s32.totalorder 1, %s23
      %p342 = scmp.lt.s32.totalorder %s23, 3
      %p343 = pnand %p341, %p342
      %p344 = pneg %p343
      // Predicated region
      $region45: #{series_embedding.4} parent=5 // pred_check
        _
      $region46: #{series_embedding.4} parent=5 // pred_check_branch
        %346 = sbr.rel (%p343) target = $region48
      $region47: #{series_embedding.4} parent=5 // pred_region
        %s347 = ssub.s32 %s23, 1
        %s348 = sand.u32 %s50, 1
        %s349 = scalar_lea.sflag [#allocation3], %s348
        %s350 = sand.u32 %s50, 1
        %s351 = smul.addr %s350, 128
        %s352 = scalar_lea.vmem [#allocation2], %s351
        // Predicated region
        $region49: #{series_embedding.4} parent=47 // pred_check
          %p353 = pneg %p63
        $region50: #{series_embedding.4} parent=47 // pred_check_branch
          %355 = sbr.rel (%p353) target = $region52
        $region51: #{series_embedding.4} parent=47 // pred_region
          %356 = dma.done %s349, 2048
        $region52: #{series_embedding.4} parent=47 // pred_fallthru
          _
        // Predicated region
        $region53: #{series_embedding.4} parent=47 // pred_check
          %p357 = pneg %p84
        $region54: #{series_embedding.4} parent=47 // pred_check_branch
          %359 = sbr.rel (%p357) target = $region56
        $region55: #{series_embedding.4} parent=47 // pred_region
          %360 = dma.done [#allocation6], 128
        $region56: #{series_embedding.4} parent=47 // pred_fallthru
          _
        // Predicated region
        $region57: #{series_embedding.4} parent=47 // pred_check
          %p361 = pneg %p105
        $region58: #{series_embedding.4} parent=47 // pred_check_branch
          %363 = sbr.rel (%p361) target = $region60
        $region59: #{series_embedding.4} parent=47 // pred_region
          %364 = dma.done [#allocation6], 16
        $region60: #{series_embedding.4} parent=47 // pred_fallthru
          _
        // Predicated region
        $region61: #{series_embedding.4} parent=47 // pred_check
          %p365 = pneg %p126
        $region62: #{series_embedding.4} parent=47 // pred_check_branch
          %367 = sbr.rel (%p365) target = $region64
        $region63: #{series_embedding.4} parent=47 // pred_region
          %368 = dma.done [#allocation9], 16
        $region64: #{series_embedding.4} parent=47 // pred_fallthru
          _
        // Predicated region
        $region65: #{series_embedding.4} parent=47 // pred_check
          %p369 = pneg %p147
        $region66: #{series_embedding.4} parent=47 // pred_check_branch
          %371 = sbr.rel (%p369) target = $region68
        $region67: #{series_embedding.4} parent=47 // pred_region
          %372 = dma.done [#allocation9], 16
        $region68: #{series_embedding.4} parent=47 // pred_fallthru
          _
        // Predicated region
        $region69: #{series_embedding.4} parent=47 // pred_check
          %p373 = pneg %p168
        $region70: #{series_embedding.4} parent=47 // pred_check_branch
          %375 = sbr.rel (%p373) target = $region72
        $region71: #{series_embedding.4} parent=47 // pred_region
          %376 = dma.done [#allocation12], 2048
        $region72: #{series_embedding.4} parent=47 // pred_fallthru
          _
        // Predicated region
        $region73: #{series_embedding.4} parent=47 // pred_check
          %p377 = pneg %p189
        $region74: #{series_embedding.4} parent=47 // pred_check_branch
          %379 = sbr.rel (%p377) target = $region76
        $region75: #{series_embedding.4} parent=47 // pred_region
          %380 = dma.done [#allocation12], 16
        $region76: #{series_embedding.4} parent=47 // pred_fallthru
          _
        %s381 = sand.u32 %s50, 1
        %s382 = scalar_lea.sflag [#allocation3], %s381
        %s383 = sand.u32 %s50, 1
        %s384 = smul.addr %s383, 128
        %s385 = scalar_lea.vmem [#allocation2], %s384
        %p386 = pneg %p63
        %p387 = pneg %p60
        %p388 = pneg %p84
        %p389 = pneg %p81
        %p390 = pneg %p105
        %p391 = pneg %p102
        %p392 = pneg %p126
        %p393 = pneg %p123
        %p394 = pneg %p147
        %p395 = pneg %p144
        %p396 = pneg %p168
        %p397 = pneg %p165
        %p398 = pneg %p189
        %p399 = pneg %p186
        %p400 = pneg %p210
        %p401 = pneg %p207
        %p402 = pneg %p231
        %p403 = pneg %p228
        %s404 = smul.u32 16, %s33
        %p405 = scmp.eq.s32.totalorder %s32, 0
        %p406 = scmp.eq.s32.totalorder %s33, 0
        %p407 = pnand %p405, %p406
        %p408 = pneg %p407
        // Predicated region
        $region77: #{series_embedding.4} parent=47 // pred_check
          _
        $region78: #{series_embedding.4} parent=47 // pred_check_branch
          %410 = sbr.rel (%p407) target = $region80
        $region79: #{series_embedding.4} parent=47 // pred_region
          %411 = vst [vmem:[#allocation14] sm:$0x1] 0.0
          %412 = vst [vmem:[#allocation15] sm:$0x1] 0.0
        $region80: #{series_embedding.4} parent=47 // pred_fallthru
          _
        %v413 = vld [vmem:[%s352] sm:$0xff]
        %v414 = vld [vmem:[%s352 + $0x8] sm:$0xff]
        %v415 = vld [vmem:[%s352 + $0x10] sm:$0xff]
        %v416 = vld [vmem:[%s352 + $0x18] sm:$0xff]
        %v417 = vld [vmem:[%s352 + $0x20] sm:$0xff]
        %v418 = vld [vmem:[%s352 + $0x28] sm:$0xff]
        %v419 = vld [vmem:[%s352 + $0x30] sm:$0xff]
        %v420 = vld [vmem:[%s352 + $0x38] sm:$0xff]
        %v421 = vld [vmem:[%s352 + $0x40] sm:$0xff]
        %v422 = vld [vmem:[%s352 + $0x48] sm:$0xff]
        %v423 = vld [vmem:[%s352 + $0x50] sm:$0xff]
        %v424 = vld [vmem:[%s352 + $0x58] sm:$0xff]
        %v425 = vld [vmem:[%s352 + $0x60] sm:$0xff]
        %v426 = vld [vmem:[%s352 + $0x68] sm:$0xff]
        %v427 = vld [vmem:[%s352 + $0x70] sm:$0xff]
        %v428 = vld [vmem:[%s352 + $0x78] sm:$0xff]
        %v429 = vld [vmem:[#allocation5] sm:$0xff]
        %v430 = vld [vmem:[#allocation7] sm:$0x1]
        %v432 = vlaneseq
        %v433 = vshrl.u32 %v432, 7
        %v434 = vsub.s32 0, %v433
        %v435 = vrot.slane %v430, %v434
        %vm437 = vcmask 64512
        %v439 = vsel %vm437, %v413, 0
        %v442 = vsel %vm437, %v414, 0
        %v445 = vsel %vm437, %v415, 0
        %v448 = vsel %vm437, %v416, 0
        %v451 = vsel %vm437, %v417, 0
        %v454 = vsel %vm437, %v418, 0
        %v457 = vsel %vm437, %v419, 0
        %v460 = vsel %vm437, %v420, 0
        %v463 = vsel %vm437, %v421, 0
        %v466 = vsel %vm437, %v422, 0
        %v469 = vsel %vm437, %v423, 0
        %v472 = vsel %vm437, %v424, 0
        %v475 = vsel %vm437, %v425, 0
        %v478 = vsel %vm437, %v426, 0
        %v481 = vsel %vm437, %v427, 0
        %v484 = vsel %vm437, %v428, 0
        %486 = vmatprep.subr.mxu0 0.0
        %487 = vmatpush1.msra.mxu0 %v429
        %488 = vmatprep.subr.mxu0 0.0
        %489 = vmatpush1.msra.mxu0 0.0
        %490 = vmatprep.subr.mxu0 0.0
        %491 = vmatpush1.msra.mxu0 0.0
        %492 = vmatprep.subr.mxu0 0.0
        %493 = vmatpush1.msra.mxu0 0.0
        %494 = vmatprep.subr.mxu0 0.0
        %495 = vmatpush1.msra.mxu0 0.0
        %496 = vmatprep.subr.mxu0 0.0
        %497 = vmatpush1.msra.mxu0 0.0
        %498 = vmatprep.subr.mxu0 0.0
        %499 = vmatpush1.msra.mxu0 0.0
        %500 = vmatprep.subr.mxu0 0.0
        %501 = vmatpush1.msra.mxu0 0.0
        %502 = vmatprep.subr.mxu0 0.0
        %503 = vmatpush1.msra.mxu0 0.0
        %504 = vmatprep.subr.mxu0 0.0
        %505 = vmatpush1.msra.mxu0 0.0
        %506 = vmatprep.subr.mxu0 0.0
        %507 = vmatpush1.msra.mxu0 0.0
        %508 = vmatprep.subr.mxu0 0.0
        %509 = vmatpush1.msra.mxu0 0.0
        %510 = vmatprep.subr.mxu0 0.0
        %511 = vmatpush1.msra.mxu0 0.0
        %512 = vmatprep.subr.mxu0 0.0
        %513 = vmatpush1.msra.mxu0 0.0
        %514 = vmatprep.subr.mxu0 0.0
        %515 = vmatpush1.msra.mxu0 0.0
        %516 = vmatprep.subr.mxu0 0.0
        %517 = vmatpush1.msra.mxu0 0.0
        %518 = vmatprep.subr.mxu0 0.0
        %519 = vmatpush1.msra.mxu0 0.0
        %520 = vmatprep.subr.mxu0 0.0
        %521 = vmatpush1.msra.mxu0 0.0
        %522 = vmatprep.subr.mxu0 0.0
        %523 = vmatpush1.msra.mxu0 0.0
        %524 = vmatprep.subr.mxu0 0.0
        %525 = vmatpush1.msra.mxu0 0.0
        %526 = vmatprep.subr.mxu0 0.0
        %527 = vmatpush1.msra.mxu0 0.0
        %528 = vmatprep.subr.mxu0 0.0
        %529 = vmatpush1.msra.mxu0 0.0
        %530 = vmatprep.subr.mxu0 0.0
        %531 = vmatpush1.msra.mxu0 0.0
        %532 = vmatprep.subr.mxu0 0.0
        %533 = vmatpush1.msra.mxu0 0.0
        %534 = vmatprep.subr.mxu0 0.0
        %535 = vmatpush1.msra.mxu0 0.0
        %536 = vmatprep.subr.mxu0 0.0
        %537 = vmatpush1.msra.mxu0 0.0
        %538 = vmatprep.subr.mxu0 0.0
        %539 = vmatpush1.msra.mxu0 0.0
        %540 = vmatprep.subr.mxu0 0.0
        %541 = vmatpush1.msra.mxu0 0.0
        %542 = vmatprep.subr.mxu0 0.0
        %543 = vmatpush1.msra.mxu0 0.0
        %544 = vmatprep.subr.mxu0 0.0
        %545 = vmatpush1.msra.mxu0 0.0
        %546 = vmatprep.subr.mxu0 0.0
        %547 = vmatpush1.msra.mxu0 0.0
        %548 = vmatprep.subr.mxu0 0.0
        %549 = vmatpush1.msra.mxu0 0.0
        %550 = vmatprep.mubr.f32.mxu0 0.0
        %551 = vmatmul.mubr.f32.gmra.mrb[0].mxu0 %v439
        %v552 = vpop.f32.mrb[0].mxu0
        %v553 = vadd.f32 %v435, %v552
        %v554 = vpop.f32.mrb[0].mxu0
        %555 = vmatprep.mubr.f32.mxu0 0.0
        %556 = vmatmul.mubr.f32.gmra.mrb[0].mxu0 %v442
        %v557 = vpop.f32.mrb[0].mxu0
        %v558 = vadd.f32 %v435, %v557
        %v559 = vpop.f32.mrb[0].mxu0
        %560 = vmatprep.mubr.f32.mxu0 0.0
        %561 = vmatmul.mubr.f32.gmra.mrb[0].mxu0 %v445
        %v562 = vpop.f32.mrb[0].mxu0
        %v563 = vadd.f32 %v435, %v562
        %v564 = vpop.f32.mrb[0].mxu0
        %565 = vmatprep.mubr.f32.mxu0 0.0
        %566 = vmatmul.mubr.f32.gmra.mrb[0].mxu0 %v448
        %v567 = vpop.f32.mrb[0].mxu0
        %v568 = vadd.f32 %v435, %v567
        %v569 = vpop.f32.mrb[0].mxu0
        %570 = vmatprep.mubr.f32.mxu0 0.0
        %571 = vmatmul.mubr.f32.gmra.mrb[0].mxu0 %v451
        %v572 = vpop.f32.mrb[0].mxu0
        %v573 = vadd.f32 %v435, %v572
        %v574 = vpop.f32.mrb[0].mxu0
        %575 = vmatprep.mubr.f32.mxu0 0.0
        %576 = vmatmul.mubr.f32.gmra.mrb[0].mxu0 %v454
        %v577 = vpop.f32.mrb[0].mxu0
        %v578 = vadd.f32 %v435, %v577
        %v579 = vpop.f32.mrb[0].mxu0
        %580 = vmatprep.mubr.f32.mxu0 0.0
        %581 = vmatmul.mubr.f32.gmra.mrb[0].mxu0 %v457
        %v582 = vpop.f32.mrb[0].mxu0
        %v583 = vadd.f32 %v435, %v582
        %v584 = vpop.f32.mrb[0].mxu0
        %585 = vmatprep.mubr.f32.mxu0 0.0
        %586 = vmatmul.mubr.f32.gmra.mrb[0].mxu0 %v460
        %v587 = vpop.f32.mrb[0].mxu0
        %v588 = vadd.f32 %v435, %v587
        %v589 = vpop.f32.mrb[0].mxu0
        %590 = vmatprep.mubr.f32.mxu0 0.0
        %591 = vmatmul.mubr.f32.gmra.mrb[0].mxu0 %v463
        %v592 = vpop.f32.mrb[0].mxu0
        %v593 = vadd.f32 %v435, %v592
        %v594 = vpop.f32.mrb[0].mxu0
        %595 = vmatprep.mubr.f32.mxu0 0.0
        %596 = vmatmul.mubr.f32.gmra.mrb[0].mxu0 %v466
        %v597 = vpop.f32.mrb[0].mxu0
        %v598 = vadd.f32 %v435, %v597
        %v599 = vpop.f32.mrb[0].mxu0
        %600 = vmatprep.mubr.f32.mxu0 0.0
        %601 = vmatmul.mubr.f32.gmra.mrb[0].mxu0 %v469
        %v602 = vpop.f32.mrb[0].mxu0
        %v603 = vadd.f32 %v435, %v602
        %v604 = vpop.f32.mrb[0].mxu0
        %605 = vmatprep.mubr.f32.mxu0 0.0
        %606 = vmatmul.mubr.f32.gmra.mrb[0].mxu0 %v472
        %v607 = vpop.f32.mrb[0].mxu0
        %v608 = vadd.f32 %v435, %v607
        %v609 = vpop.f32.mrb[0].mxu0
        %610 = vmatprep.mubr.f32.mxu0 0.0
        %611 = vmatmul.mubr.f32.gmra.mrb[0].mxu0 %v475
        %v612 = vpop.f32.mrb[0].mxu0
        %v613 = vadd.f32 %v435, %v612
        %v614 = vpop.f32.mrb[0].mxu0
        %615 = vmatprep.mubr.f32.mxu0 0.0
        %616 = vmatmul.mubr.f32.gmra.mrb[0].mxu0 %v478
        %v617 = vpop.f32.mrb[0].mxu0
        %v618 = vadd.f32 %v435, %v617
        %v619 = vpop.f32.mrb[0].mxu0
        %620 = vmatprep.mubr.f32.mxu0 0.0
        %621 = vmatmul.mubr.f32.gmra.mrb[0].mxu0 %v481
        %v622 = vpop.f32.mrb[0].mxu0
        %v623 = vadd.f32 %v435, %v622
        %v624 = vpop.f32.mrb[0].mxu0
        %625 = vmatprep.mubr.f32.mxu0 0.0
        %626 = vmatmul.mubr.f32.gmra.mrb[0].mxu0 %v484
        %v627 = vpop.f32.mrb[0].mxu0
        %v628 = vadd.f32 %v435, %v627
        %v629 = vpop.f32.mrb[0].mxu0
        %630 = vdwg.mxu0
        %v631 = vmul.f32 %v553, 0.5
        %v632 = vmul.f32 %v558, 0.5
        %v633 = vmul.f32 %v563, 0.5
        %v634 = vmul.f32 %v568, 0.5
        %v635 = vmul.f32 %v573, 0.5
        %v636 = vmul.f32 %v578, 0.5
        %v637 = vmul.f32 %v583, 0.5
        %v638 = vmul.f32 %v588, 0.5
        %v639 = vmul.f32 %v593, 0.5
        %v640 = vmul.f32 %v598, 0.5
        %v641 = vmul.f32 %v603, 0.5
        %v642 = vmul.f32 %v608, 0.5
        %v643 = vmul.f32 %v613, 0.5
        %v644 = vmul.f32 %v618, 0.5
        %v645 = vmul.f32 %v623, 0.5
        %v646 = vmul.f32 %v628, 0.5
        %v647 = vmul.f32 %v553, 0.70710677
        %v648 = vmul.f32 %v558, 0.70710677
        %v649 = vmul.f32 %v563, 0.70710677
        %v650 = vmul.f32 %v568, 0.70710677
        %v651 = vmul.f32 %v573, 0.70710677
        %v652 = vmul.f32 %v578, 0.70710677
        %v653 = vmul.f32 %v583, 0.70710677
        %v654 = vmul.f32 %v588, 0.70710677
        %v655 = vmul.f32 %v593, 0.70710677
        %v656 = vmul.f32 %v598, 0.70710677
        %v657 = vmul.f32 %v603, 0.70710677
        %v658 = vmul.f32 %v608, 0.70710677
        %v659 = vmul.f32 %v613, 0.70710677
        %v660 = vmul.f32 %v618, 0.70710677
        %v661 = vmul.f32 %v623, 0.70710677
        %v662 = vmul.f32 %v628, 0.70710677
        %v663 = verf.f32.pop %v647
        %v664 = verf.f32.pop %v648
        %v665 = verf.f32.pop %v649
        %v666 = verf.f32.pop %v650
        %v667 = verf.f32.pop %v651
        %v668 = verf.f32.pop %v652
        %v669 = verf.f32.pop %v653
        %v670 = verf.f32.pop %v654
        %v671 = verf.f32.pop %v655
        %v672 = verf.f32.pop %v656
        %v673 = verf.f32.pop %v657
        %v674 = verf.f32.pop %v658
        %v675 = verf.f32.pop %v659
        %v676 = verf.f32.pop %v660
        %v677 = verf.f32.pop %v661
        %v678 = verf.f32.pop %v662
        %v679 = vadd.f32 %v663, 1.0
        %v680 = vadd.f32 %v664, 1.0
        %v681 = vadd.f32 %v665, 1.0
        %v682 = vadd.f32 %v666, 1.0
        %v683 = vadd.f32 %v667, 1.0
        %v684 = vadd.f32 %v668, 1.0
        %v685 = vadd.f32 %v669, 1.0
        %v686 = vadd.f32 %v670, 1.0
        %v687 = vadd.f32 %v671, 1.0
        %v688 = vadd.f32 %v672, 1.0
        %v689 = vadd.f32 %v673, 1.0
        %v690 = vadd.f32 %v674, 1.0
        %v691 = vadd.f32 %v675, 1.0
        %v692 = vadd.f32 %v676, 1.0
        %v693 = vadd.f32 %v677, 1.0
        %v694 = vadd.f32 %v678, 1.0
        %v695 = vmul.f32 %v631, %v679
        %v696 = vmul.f32 %v632, %v680
        %v697 = vmul.f32 %v633, %v681
        %v698 = vmul.f32 %v634, %v682
        %v699 = vmul.f32 %v635, %v683
        %v700 = vmul.f32 %v636, %v684
        %v701 = vmul.f32 %v637, %v685
        %v702 = vmul.f32 %v638, %v686
        %v703 = vmul.f32 %v639, %v687
        %v704 = vmul.f32 %v640, %v688
        %v705 = vmul.f32 %v641, %v689
        %v706 = vmul.f32 %v642, %v690
        %v707 = vmul.f32 %v643, %v691
        %v708 = vmul.f32 %v644, %v692
        %v709 = vmul.f32 %v645, %v693
        %v710 = vmul.f32 %v646, %v694
        %v711 = vld [vmem:[#allocation8] sm:$0x1]
        %v713 = vlaneseq
        %v714 = vshrl.u32 %v713, 7
        %v715 = vsub.s32 0, %v714
        %v716 = vrot.slane %v711, %v715
        %v718 = vmul.f32 %v695, %v716
        %v719 = vmul.f32 %v696, %v716
        %v720 = vmul.f32 %v697, %v716
        %v721 = vmul.f32 %v698, %v716
        %v722 = vmul.f32 %v699, %v716
        %v723 = vmul.f32 %v700, %v716
        %v724 = vmul.f32 %v701, %v716
        %v725 = vmul.f32 %v702, %v716
        %v726 = vmul.f32 %v703, %v716
        %v727 = vmul.f32 %v704, %v716
        %v728 = vmul.f32 %v705, %v716
        %v729 = vmul.f32 %v706, %v716
        %v730 = vmul.f32 %v707, %v716
        %v731 = vmul.f32 %v708, %v716
        %v732 = vmul.f32 %v709, %v716
        %v733 = vmul.f32 %v710, %v716
        %v734 = vld [vmem:[#allocation10] sm:$0x1]
        %v736 = vlaneseq
        %v737 = vshrl.u32 %v736, 7
        %v738 = vsub.s32 0, %v737
        %v739 = vrot.slane %v734, %v738
        %v741 = vadd.f32 %v718, %v739
        %v742 = vadd.f32 %v719, %v739
        %v743 = vadd.f32 %v720, %v739
        %v744 = vadd.f32 %v721, %v739
        %v745 = vadd.f32 %v722, %v739
        %v746 = vadd.f32 %v723, %v739
        %v747 = vadd.f32 %v724, %v739
        %v748 = vadd.f32 %v725, %v739
        %v749 = vadd.f32 %v726, %v739
        %v750 = vadd.f32 %v727, %v739
        %v751 = vadd.f32 %v728, %v739
        %v752 = vadd.f32 %v729, %v739
        %v753 = vadd.f32 %v730, %v739
        %v754 = vadd.f32 %v731, %v739
        %v755 = vadd.f32 %v732, %v739
        %v756 = vadd.f32 %v733, %v739
        %v757 = vld [vmem:[#allocation11] sm:$0xff]
        %v758 = vld [vmem:[#allocation11 + $0x8] sm:$0xff]
        %v759 = vld [vmem:[#allocation11 + $0x10] sm:$0xff]
        %v760 = vld [vmem:[#allocation11 + $0x18] sm:$0xff]
        %v761 = vld [vmem:[#allocation11 + $0x20] sm:$0xff]
        %v762 = vld [vmem:[#allocation11 + $0x28] sm:$0xff]
        %v763 = vld [vmem:[#allocation11 + $0x30] sm:$0xff]
        %v764 = vld [vmem:[#allocation11 + $0x38] sm:$0xff]
        %v765 = vld [vmem:[#allocation11 + $0x40] sm:$0xff]
        %v766 = vld [vmem:[#allocation11 + $0x48] sm:$0xff]
        %v767 = vld [vmem:[#allocation11 + $0x50] sm:$0xff]
        %v768 = vld [vmem:[#allocation11 + $0x58] sm:$0xff]
        %v769 = vld [vmem:[#allocation11 + $0x60] sm:$0xff]
        %v770 = vld [vmem:[#allocation11 + $0x68] sm:$0xff]
        %v771 = vld [vmem:[#allocation11 + $0x70] sm:$0xff]
        %v772 = vld [vmem:[#allocation11 + $0x78] sm:$0xff]
        %v773 = vld [vmem:[#allocation13] sm:$0x1]
        %v775 = vlaneseq
        %v776 = vshrl.u32 %v775, 7
        %v777 = vsub.s32 0, %v776
        %v778 = vrot.slane %v773, %v777
        %780 = vmatprep.subr.mxu0 0.0
        %781 = vmatpush1.msra.mxu0 %v757
        %782 = vmatprep.subr.mxu0 0.0
        %783 = vmatpush1.msra.mxu0 %v758
        %784 = vmatprep.subr.mxu0 0.0
        %785 = vmatpush1.msra.mxu0 %v759
        %786 = vmatprep.subr.mxu0 0.0
        %787 = vmatpush1.msra.mxu0 %v760
        %788 = vmatprep.subr.mxu0 0.0
        %789 = vmatpush1.msra.mxu0 %v761
        %790 = vmatprep.subr.mxu0 0.0
        %791 = vmatpush1.msra.mxu0 %v762
        %792 = vmatprep.subr.mxu0 0.0
        %793 = vmatpush1.msra.mxu0 %v763
        %794 = vmatprep.subr.mxu0 0.0
        %795 = vmatpush1.msra.mxu0 %v764
        %796 = vmatprep.subr.mxu0 0.0
        %797 = vmatpush1.msra.mxu0 %v765
        %798 = vmatprep.subr.mxu0 0.0
        %799 = vmatpush1.msra.mxu0 %v766
        %800 = vmatprep.subr.mxu0 0.0
        %801 = vmatpush1.msra.mxu0 %v767
        %802 = vmatprep.subr.mxu0 0.0
        %803 = vmatpush1.msra.mxu0 %v768
        %804 = vmatprep.subr.mxu0 0.0
        %805 = vmatpush1.msra.mxu0 %v769
        %806 = vmatprep.subr.mxu0 0.0
        %807 = vmatpush1.msra.mxu0 %v770
        %808 = vmatprep.subr.mxu0 0.0
        %809 = vmatpush1.msra.mxu0 %v771
        %810 = vmatprep.subr.mxu0 0.0
        %811 = vmatpush1.msra.mxu0 %v772
        %812 = vmatprep.subr.mxu0 0.0
        %813 = vmatpush1.msra.mxu0 0.0
        %814 = vmatprep.subr.mxu0 0.0
        %815 = vmatpush1.msra.mxu0 0.0
        %816 = vmatprep.subr.mxu0 0.0
        %817 = vmatpush1.msra.mxu0 0.0
        %818 = vmatprep.subr.mxu0 0.0
        %819 = vmatpush1.msra.mxu0 0.0
        %820 = vmatprep.subr.mxu0 0.0
        %821 = vmatpush1.msra.mxu0 0.0
        %822 = vmatprep.subr.mxu0 0.0
        %823 = vmatpush1.msra.mxu0 0.0
        %824 = vmatprep.subr.mxu0 0.0
        %825 = vmatpush1.msra.mxu0 0.0
        %826 = vmatprep.subr.mxu0 0.0
        %827 = vmatpush1.msra.mxu0 0.0
        %828 = vmatprep.subr.mxu0 0.0
        %829 = vmatpush1.msra.mxu0 0.0
        %830 = vmatprep.subr.mxu0 0.0
        %831 = vmatpush1.msra.mxu0 0.0
        %832 = vmatprep.subr.mxu0 0.0
        %833 = vmatpush1.msra.mxu0 0.0
        %834 = vmatprep.subr.mxu0 0.0
        %835 = vmatpush1.msra.mxu0 0.0
        %836 = vmatprep.subr.mxu0 0.0
        %837 = vmatpush1.msra.mxu0 0.0
        %838 = vmatprep.subr.mxu0 0.0
        %839 = vmatpush1.msra.mxu0 0.0
        %840 = vmatprep.subr.mxu0 0.0
        %841 = vmatpush1.msra.mxu0 0.0
        %842 = vmatprep.subr.mxu0 0.0
        %843 = vmatpush1.msra.mxu0 0.0
        %844 = vmatprep.mubr.f32.mxu0 0.0
        %845 = vmatmul.mubr.f32.gmra.mrb[0].mxu0 %v741
        %v846 = vpop.f32.mrb[0].mxu0
        %v847 = vadd.f32 %v778, %v846
        %v848 = vpop.f32.mrb[0].mxu0
        %849 = vmatprep.mubr.f32.mxu0 0.0
        %850 = vmatmul.mubr.f32.gmra.mrb[0].mxu0 %v742
        %v851 = vpop.f32.mrb[0].mxu0
        %v852 = vadd.f32 %v778, %v851
        %v853 = vpop.f32.mrb[0].mxu0
        %854 = vmatprep.mubr.f32.mxu0 0.0
        %855 = vmatmul.mubr.f32.gmra.mrb[0].mxu0 %v743
        %v856 = vpop.f32.mrb[0].mxu0
        %v857 = vadd.f32 %v778, %v856
        %v858 = vpop.f32.mrb[0].mxu0
        %859 = vmatprep.mubr.f32.mxu0 0.0
        %860 = vmatmul.mubr.f32.gmra.mrb[0].mxu0 %v744
        %v861 = vpop.f32.mrb[0].mxu0
        %v862 = vadd.f32 %v778, %v861
        %v863 = vpop.f32.mrb[0].mxu0
        %864 = vmatprep.mubr.f32.mxu0 0.0
        %865 = vmatmul.mubr.f32.gmra.mrb[0].mxu0 %v745
        %v866 = vpop.f32.mrb[0].mxu0
        %v867 = vadd.f32 %v778, %v866
        %v868 = vpop.f32.mrb[0].mxu0
        %869 = vmatprep.mubr.f32.mxu0 0.0
        %870 = vmatmul.mubr.f32.gmra.mrb[0].mxu0 %v746
        %v871 = vpop.f32.mrb[0].mxu0
        %v872 = vadd.f32 %v778, %v871
        %v873 = vpop.f32.mrb[0].mxu0
        %874 = vmatprep.mubr.f32.mxu0 0.0
        %875 = vmatmul.mubr.f32.gmra.mrb[0].mxu0 %v747
        %v876 = vpop.f32.mrb[0].mxu0
        %v877 = vadd.f32 %v778, %v876
        %v878 = vpop.f32.mrb[0].mxu0
        %879 = vmatprep.mubr.f32.mxu0 0.0
        %880 = vmatmul.mubr.f32.gmra.mrb[0].mxu0 %v748
        %v881 = vpop.f32.mrb[0].mxu0
        %v882 = vadd.f32 %v778, %v881
        %v883 = vpop.f32.mrb[0].mxu0
        %884 = vmatprep.mubr.f32.mxu0 0.0
        %885 = vmatmul.mubr.f32.gmra.mrb[0].mxu0 %v749
        %v886 = vpop.f32.mrb[0].mxu0
        %v887 = vadd.f32 %v778, %v886
        %v888 = vpop.f32.mrb[0].mxu0
        %889 = vmatprep.mubr.f32.mxu0 0.0
        %890 = vmatmul.mubr.f32.gmra.mrb[0].mxu0 %v750
        %v891 = vpop.f32.mrb[0].mxu0
        %v892 = vadd.f32 %v778, %v891
        %v893 = vpop.f32.mrb[0].mxu0
        %894 = vmatprep.mubr.f32.mxu0 0.0
        %895 = vmatmul.mubr.f32.gmra.mrb[0].mxu0 %v751
        %v896 = vpop.f32.mrb[0].mxu0
        %v897 = vadd.f32 %v778, %v896
        %v898 = vpop.f32.mrb[0].mxu0
        %899 = vmatprep.mubr.f32.mxu0 0.0
        %900 = vmatmul.mubr.f32.gmra.mrb[0].mxu0 %v752
        %v901 = vpop.f32.mrb[0].mxu0
        %v902 = vadd.f32 %v778, %v901
        %v903 = vpop.f32.mrb[0].mxu0
        %904 = vmatprep.mubr.f32.mxu0 0.0
        %905 = vmatmul.mubr.f32.gmra.mrb[0].mxu0 %v753
        %v906 = vpop.f32.mrb[0].mxu0
        %v907 = vadd.f32 %v778, %v906
        %v908 = vpop.f32.mrb[0].mxu0
        %909 = vmatprep.mubr.f32.mxu0 0.0
        %910 = vmatmul.mubr.f32.gmra.mrb[0].mxu0 %v754
        %v911 = vpop.f32.mrb[0].mxu0
        %v912 = vadd.f32 %v778, %v911
        %v913 = vpop.f32.mrb[0].mxu0
        %914 = vmatprep.mubr.f32.mxu0 0.0
        %915 = vmatmul.mubr.f32.gmra.mrb[0].mxu0 %v755
        %v916 = vpop.f32.mrb[0].mxu0
        %v917 = vadd.f32 %v778, %v916
        %v918 = vpop.f32.mrb[0].mxu0
        %919 = vmatprep.mubr.f32.mxu0 0.0
        %920 = vmatmul.mubr.f32.gmra.mrb[0].mxu0 %v756
        %v921 = vpop.f32.mrb[0].mxu0
        %v922 = vadd.f32 %v778, %v921
        %v923 = vpop.f32.mrb[0].mxu0
        %924 = vdwg.mxu0
        %v925 = vmul.f32 %v847, 0.5
        %v926 = vmul.f32 %v852, 0.5
        %v927 = vmul.f32 %v857, 0.5
        %v928 = vmul.f32 %v862, 0.5
        %v929 = vmul.f32 %v867, 0.5
        %v930 = vmul.f32 %v872, 0.5
        %v931 = vmul.f32 %v877, 0.5
        %v932 = vmul.f32 %v882, 0.5
        %v933 = vmul.f32 %v887, 0.5
        %v934 = vmul.f32 %v892, 0.5
        %v935 = vmul.f32 %v897, 0.5
        %v936 = vmul.f32 %v902, 0.5
        %v937 = vmul.f32 %v907, 0.5
        %v938 = vmul.f32 %v912, 0.5
        %v939 = vmul.f32 %v917, 0.5
        %v940 = vmul.f32 %v922, 0.5
        %v941 = vmul.f32 %v847, 0.70710677
        %v942 = vmul.f32 %v852, 0.70710677
        %v943 = vmul.f32 %v857, 0.70710677
        %v944 = vmul.f32 %v862, 0.70710677
        %v945 = vmul.f32 %v867, 0.70710677
        %v946 = vmul.f32 %v872, 0.70710677
        %v947 = vmul.f32 %v877, 0.70710677
        %v948 = vmul.f32 %v882, 0.70710677
        %v949 = vmul.f32 %v887, 0.70710677
        %v950 = vmul.f32 %v892, 0.70710677
        %v951 = vmul.f32 %v897, 0.70710677
        %v952 = vmul.f32 %v902, 0.70710677
        %v953 = vmul.f32 %v907, 0.70710677
        %v954 = vmul.f32 %v912, 0.70710677
        %v955 = vmul.f32 %v917, 0.70710677
        %v956 = vmul.f32 %v922, 0.70710677
        %v957 = verf.f32.pop %v941
        %v958 = verf.f32.pop %v942
        %v959 = verf.f32.pop %v943
        %v960 = verf.f32.pop %v944
        %v961 = verf.f32.pop %v945
        %v962 = verf.f32.pop %v946
        %v963 = verf.f32.pop %v947
        %v964 = verf.f32.pop %v948
        %v965 = verf.f32.pop %v949
        %v966 = verf.f32.pop %v950
        %v967 = verf.f32.pop %v951
        %v968 = verf.f32.pop %v952
        %v969 = verf.f32.pop %v953
        %v970 = verf.f32.pop %v954
        %v971 = verf.f32.pop %v955
        %v972 = verf.f32.pop %v956
        %v973 = vadd.f32 %v957, 1.0
        %v974 = vadd.f32 %v958, 1.0
        %v975 = vadd.f32 %v959, 1.0
        %v976 = vadd.f32 %v960, 1.0
        %v977 = vadd.f32 %v961, 1.0
        %v978 = vadd.f32 %v962, 1.0
        %v979 = vadd.f32 %v963, 1.0
        %v980 = vadd.f32 %v964, 1.0
        %v981 = vadd.f32 %v965, 1.0
        %v982 = vadd.f32 %v966, 1.0
        %v983 = vadd.f32 %v967, 1.0
        %v984 = vadd.f32 %v968, 1.0
        %v985 = vadd.f32 %v969, 1.0
        %v986 = vadd.f32 %v970, 1.0
        %v987 = vadd.f32 %v971, 1.0
        %v988 = vadd.f32 %v972, 1.0
        %v989 = vmul.f32 %v925, %v973
        %v990 = vmul.f32 %v926, %v974
        %v991 = vmul.f32 %v927, %v975
        %v992 = vmul.f32 %v928, %v976
        %v993 = vmul.f32 %v929, %v977
        %v994 = vmul.f32 %v930, %v978
        %v995 = vmul.f32 %v931, %v979
        %v996 = vmul.f32 %v932, %v980
        %v997 = vmul.f32 %v933, %v981
        %v998 = vmul.f32 %v934, %v982
        %v999 = vmul.f32 %v935, %v983
        %v1000 = vmul.f32 %v936, %v984
        %v1001 = vmul.f32 %v937, %v985
        %v1002 = vmul.f32 %v938, %v986
        %v1003 = vmul.f32 %v939, %v987
        %v1004 = vmul.f32 %v940, %v988
        %v1005 = vlaneseq
        %v1006 = vshrl.u32 %v1005, 7
        %v1007 = vadd.s32 %v1006, 8
        %v1008 = vadd.s32 %v1006, 16
        %v1009 = vadd.s32 %v1006, 24
        %v1010 = vadd.s32 %v1006, 32
        %v1011 = vadd.s32 %v1006, 40
        %v1012 = vadd.s32 %v1006, 48
        %v1013 = vadd.s32 %v1006, 56
        %v1014 = vadd.s32 %v1006, 64
        %v1015 = vadd.s32 %v1006, 72
        %v1016 = vadd.s32 %v1006, 80
        %v1017 = vadd.s32 %v1006, 88
        %v1018 = vadd.s32 %v1006, 96
        %v1019 = vadd.s32 %v1006, 104
        %v1020 = vadd.s32 %v1006, 112
        %v1021 = vadd.s32 %v1006, 120
        %s1022 = smul.u32 %s33, 128
        %v1023 = vstv %s1022
        %v1024 = vadd.s32 %v1023, %v1006
        %v1025 = vadd.s32 %v1023, %v1007
        %v1026 = vadd.s32 %v1023, %v1008
        %v1027 = vadd.s32 %v1023, %v1009
        %v1028 = vadd.s32 %v1023, %v1010
        %v1029 = vadd.s32 %v1023, %v1011
        %v1030 = vadd.s32 %v1023, %v1012
        %v1031 = vadd.s32 %v1023, %v1013
        %v1032 = vadd.s32 %v1023, %v1014
        %v1033 = vadd.s32 %v1023, %v1015
        %v1034 = vadd.s32 %v1023, %v1016
        %v1035 = vadd.s32 %v1023, %v1017
        %v1036 = vadd.s32 %v1023, %v1018
        %v1037 = vadd.s32 %v1023, %v1019
        %v1038 = vadd.s32 %v1023, %v1020
        %v1039 = vadd.s32 %v1023, %v1021
        %vm1040 = vcmp.lt.s32.totalorder %v1024, 17
        %vm1041 = vcmp.lt.s32.totalorder %v1025, 17
        %vm1042 = vcmp.lt.s32.totalorder %v1026, 17
        %vm1043 = vcmp.lt.s32.totalorder %v1027, 17
        %vm1044 = vcmp.lt.s32.totalorder %v1028, 17
        %vm1045 = vcmp.lt.s32.totalorder %v1029, 17
        %vm1046 = vcmp.lt.s32.totalorder %v1030, 17
        %vm1047 = vcmp.lt.s32.totalorder %v1031, 17
        %vm1048 = vcmp.lt.s32.totalorder %v1032, 17
        %vm1049 = vcmp.lt.s32.totalorder %v1033, 17
        %vm1050 = vcmp.lt.s32.totalorder %v1034, 17
        %vm1051 = vcmp.lt.s32.totalorder %v1035, 17
        %vm1052 = vcmp.lt.s32.totalorder %v1036, 17
        %vm1053 = vcmp.lt.s32.totalorder %v1037, 17
        %vm1054 = vcmp.lt.s32.totalorder %v1038, 17
        %vm1055 = vcmp.lt.s32.totalorder %v1039, 17
        %v1056 = vsel %vm1040, 1, 0
        %v1057 = vsel %vm1041, 1, 0
        %v1058 = vsel %vm1042, 1, 0
        %v1059 = vsel %vm1043, 1, 0
        %v1060 = vsel %vm1044, 1, 0
        %v1061 = vsel %vm1045, 1, 0
        %v1062 = vsel %vm1046, 1, 0
        %v1063 = vsel %vm1047, 1, 0
        %v1064 = vsel %vm1048, 1, 0
        %v1065 = vsel %vm1049, 1, 0
        %v1066 = vsel %vm1050, 1, 0
        %v1067 = vsel %vm1051, 1, 0
        %v1068 = vsel %vm1052, 1, 0
        %v1069 = vsel %vm1053, 1, 0
        %v1070 = vsel %vm1054, 1, 0
        %v1071 = vsel %vm1055, 1, 0
        %vm1072 = vcmp.eq.s32.totalorder %v1056, 1
        %vm1073 = vcmp.eq.s32.totalorder %v1057, 1
        %vm1074 = vcmp.eq.s32.totalorder %v1058, 1
        %vm1075 = vcmp.eq.s32.totalorder %v1059, 1
        %vm1076 = vcmp.eq.s32.totalorder %v1060, 1
        %vm1077 = vcmp.eq.s32.totalorder %v1061, 1
        %vm1078 = vcmp.eq.s32.totalorder %v1062, 1
        %vm1079 = vcmp.eq.s32.totalorder %v1063, 1
        %vm1080 = vcmp.eq.s32.totalorder %v1064, 1
        %vm1081 = vcmp.eq.s32.totalorder %v1065, 1
        %vm1082 = vcmp.eq.s32.totalorder %v1066, 1
        %vm1083 = vcmp.eq.s32.totalorder %v1067, 1
        %vm1084 = vcmp.eq.s32.totalorder %v1068, 1
        %vm1085 = vcmp.eq.s32.totalorder %v1069, 1
        %vm1086 = vcmp.eq.s32.totalorder %v1070, 1
        %vm1087 = vcmp.eq.s32.totalorder %v1071, 1
        %v1088 = vsel %vm1072, %v989, 0.0
        %v1089 = vsel %vm1073, %v990, 0.0
        %v1090 = vsel %vm1074, %v991, 0.0
        %v1091 = vsel %vm1075, %v992, 0.0
        %v1092 = vsel %vm1076, %v993, 0.0
        %v1093 = vsel %vm1077, %v994, 0.0
        %v1094 = vsel %vm1078, %v995, 0.0
        %v1095 = vsel %vm1079, %v996, 0.0
        %v1096 = vsel %vm1080, %v997, 0.0
        %v1097 = vsel %vm1081, %v998, 0.0
        %v1098 = vsel %vm1082, %v999, 0.0
        %v1099 = vsel %vm1083, %v1000, 0.0
        %v1100 = vsel %vm1084, %v1001, 0.0
        %v1101 = vsel %vm1085, %v1002, 0.0
        %v1102 = vsel %vm1086, %v1003, 0.0
        %v1103 = vsel %vm1087, %v1004, 0.0
        %v1104 = vld [vmem:[#allocation14] sm:$0x1]
        %v1105 = vadd.f32 %v1088, %v1089
        %v1106 = vadd.f32 %v1105, %v1090
        %v1107 = vadd.f32 %v1106, %v1091
        %v1108 = vadd.f32 %v1107, %v1092
        %v1109 = vadd.f32 %v1108, %v1093
        %v1110 = vadd.f32 %v1109, %v1094
        %v1111 = vadd.f32 %v1110, %v1095
        %v1112 = vadd.f32 %v1111, %v1096
        %v1113 = vadd.f32 %v1112, %v1097
        %v1114 = vadd.f32 %v1113, %v1098
        %v1115 = vadd.f32 %v1114, %v1099
        %v1116 = vadd.f32 %v1115, %v1100
        %v1117 = vadd.f32 %v1116, %v1101
        %v1118 = vadd.f32 %v1117, %v1102
        %v1119 = vadd.f32 %v1118, %v1103
        %v1120 = vrot.slane %v1119, 4
        %v1121 = vadd.f32 %v1119, %v1120
        %v1122 = vrot.slane %v1121, 2
        %v1123 = vadd.f32 %v1121, %v1122
        %v1124 = vrot.slane %v1123, 1
        %v1125 = vadd.f32 %v1123, %v1124
        %v1126 = vadd.f32 %v1104, %v1125
        %1127 = vst [vmem:[#allocation14] sm:$0x1] %v1126
        %v1128 = vld [vmem:[#allocation15] sm:$0x1]
        %v1129 = vmul.f32 %v1088, %v1088
        %v1130 = vmul.f32 %v1089, %v1089
        %v1131 = vmul.f32 %v1090, %v1090
        %v1132 = vmul.f32 %v1091, %v1091
        %v1133 = vmul.f32 %v1092, %v1092
        %v1134 = vmul.f32 %v1093, %v1093
        %v1135 = vmul.f32 %v1094, %v1094
        %v1136 = vmul.f32 %v1095, %v1095
        %v1137 = vmul.f32 %v1096, %v1096
        %v1138 = vmul.f32 %v1097, %v1097
        %v1139 = vmul.f32 %v1098, %v1098
        %v1140 = vmul.f32 %v1099, %v1099
        %v1141 = vmul.f32 %v1100, %v1100
        %v1142 = vmul.f32 %v1101, %v1101
        %v1143 = vmul.f32 %v1102, %v1102
        %v1144 = vmul.f32 %v1103, %v1103
        %v1145 = vadd.f32 %v1129, %v1130
        %v1146 = vadd.f32 %v1145, %v1131
        %v1147 = vadd.f32 %v1146, %v1132
        %v1148 = vadd.f32 %v1147, %v1133
        %v1149 = vadd.f32 %v1148, %v1134
        %v1150 = vadd.f32 %v1149, %v1135
        %v1151 = vadd.f32 %v1150, %v1136
        %v1152 = vadd.f32 %v1151, %v1137
        %v1153 = vadd.f32 %v1152, %v1138
        %v1154 = vadd.f32 %v1153, %v1139
        %v1155 = vadd.f32 %v1154, %v1140
        %v1156 = vadd.f32 %v1155, %v1141
        %v1157 = vadd.f32 %v1156, %v1142
        %v1158 = vadd.f32 %v1157, %v1143
        %v1159 = vadd.f32 %v1158, %v1144
        %v1160 = vrot.slane %v1159, 4
        %v1161 = vadd.f32 %v1159, %v1160
        %v1162 = vrot.slane %v1161, 2
        %v1163 = vadd.f32 %v1161, %v1162
        %v1164 = vrot.slane %v1163, 1
        %v1165 = vadd.f32 %v1163, %v1164
        %v1166 = vadd.f32 %v1128, %v1165
        %1167 = vst [vmem:[#allocation15] sm:$0x1] %v1166
        // Predicated region
        $region81: #{series_embedding.4} parent=47 // pred_check
          %p1168 = pneg %p207
        $region82: #{series_embedding.4} parent=47 // pred_check_branch
          %1170 = sbr.rel (%p1168) target = $region84
        $region83: #{series_embedding.4} parent=47 // pred_region
          %s1172 = ssub.s32 16, 16
          %1173 = vsyncadd [#allocation4], %s1172
          %s1175 = sshll.u32 [#allocation14], 4
          %s1176 = int_to_ptr.vmem [resolvable:$true] %s1175
          %1178 = dma.vmem_to_hbm [thread:$0]  %s1176, 16, %s7, [#allocation4]
        $region84: #{series_embedding.4} parent=47 // pred_fallthru
          _
        // Predicated region
        $region85: #{series_embedding.4} parent=47 // pred_check
          %p1179 = pneg %p228
        $region86: #{series_embedding.4} parent=47 // pred_check_branch
          %1181 = sbr.rel (%p1179) target = $region88
        $region87: #{series_embedding.4} parent=47 // pred_region
          %s1183 = ssub.s32 16, 16
          %1184 = vsyncadd [#allocation16], %s1183
          %s1186 = sshll.u32 [#allocation15], 4
          %s1187 = int_to_ptr.vmem [resolvable:$true] %s1186
          %1189 = dma.vmem_to_hbm [thread:$0]  %s1187, 16, %s8, [#allocation16]
        $region88: #{series_embedding.4} parent=47 // pred_fallthru
          _
        // Predicated region
        $region89: #{series_embedding.4} parent=47 // pred_check
          %p1190 = pneg %p207
        $region90: #{series_embedding.4} parent=47 // pred_check_branch
          %1192 = sbr.rel (%p1190) target = $region92
        $region91: #{series_embedding.4} parent=47 // pred_region
          %1193 = dma.done [#allocation4], 16
        $region92: #{series_embedding.4} parent=47 // pred_fallthru
          _
        // Predicated region
        $region93: #{series_embedding.4} parent=47 // pred_check
          %p1194 = pneg %p228
        $region94: #{series_embedding.4} parent=47 // pred_check_branch
          %1196 = sbr.rel (%p1194) target = $region96
        $region95: #{series_embedding.4} parent=47 // pred_region
          %1197 = dma.done [#allocation16], 16
        $region96: #{series_embedding.4} parent=47 // pred_fallthru
          _
      $region48: #{series_embedding.4} parent=5 // pred_fallthru
        _
      %p1198 = scmp.le.s32.totalorder 2, %s23
      // Predicated region
      $region97: #{series_embedding.4} parent=5 // pred_check
        %p1199 = pneg %p1198
      $region98: #{series_embedding.4} parent=5 // pred_check_branch
        %1201 = sbr.rel (%p1199) target = $region100
      $region99: #{series_embedding.4} parent=5 // pred_region
        %s1202 = ssub.s32 %s23, 2
      $region100: #{series_embedding.4} parent=5 // pred_fallthru
        _
    $region6: #{series_embedding.4} parent=1 // loop_footer
      %s27 = sadd.s32 1, %s23
    $region7: #{series_embedding.4} parent=1 // loop_footer_branch
      %22 = sbr.rel target = $region3
    $region8: #{series_embedding.4} parent=1 // loop_exit
      _
    %1203 = vsyncpa [#allocation3], 1
    %s1204 = scalar_lea.sflag [#allocation3], 1
    %1205 = vsyncpa %s1204, 1
    %1206 = vsyncpa [#allocation6], 1
    %1207 = vsyncpa [#allocation9], 1
    %1208 = vsyncpa [#allocation12], 1
    %1209 = vsyncpa [#allocation4], 1
    %s1210 = scalar_lea.sflag [#allocation4], 1
    %1211 = vsyncpa %s1210, 1
    %1212 = vsyncpa [#allocation16], 1

// kernel: series_embedding.5
$region0: #{series_embedding.5}
  #allocation0 [shape = 'u32[]', space=smem, size = 0x4, offset = 0x4, fixed_abs, tag = 'smem constant byte address 0x4 - core index']
  #allocation1 [shape = 'u32[144,128]{1,0:T(1,128)}', space=vmem, size = 0x12000, scoped, tag = 'internal scratch']
  %s0 = inlined_call_operand.hbm [shape: f32[2,128,8], index: 0, kind: input, shape index: {}]
  %s1 = inlined_call_operand.hbm [shape: f32[8,128], index: 1, kind: input, shape index: {}]
  %s2 = inlined_call_operand.hbm [shape: f32[1,128], index: 2, kind: input, shape index: {}]
  %s3 = inlined_call_operand.hbm [shape: f32[1,128], index: 3, kind: input, shape index: {}]
  %s4 = inlined_call_operand.hbm [shape: f32[1,128], index: 4, kind: input, shape index: {}]
  %s5 = inlined_call_operand.hbm [shape: f32[128,128], index: 5, kind: input, shape index: {}]
  %s6 = inlined_call_operand.hbm [shape: f32[1,128], index: 6, kind: input, shape index: {}]
  %s7 = inlined_call_operand.hbm [shape: f32[1,128], index: 7, kind: input, shape index: {}]
  %s8 = inlined_call_operand.hbm [shape: f32[1,128], index: 8, kind: input, shape index: {}]
  %s9 = inlined_call_operand.hbm [shape: f32[2,16,128], index: 9, kind: output, shape index: {}]
  %s10 = sld [smem:[#allocation0]]
  $region105: #{series_embedding.5} parent=0
    _
  %s12 = ssub.s32 1, %s10
  %s13 = scalar_select 0, %s12, %s10
  $region1: #{series_embedding.5} parent=0
    #allocation2 [shape = 'u8[131072]{0}', space=vmem, size = 0x20000, scoped, tag = 'input window, operand 0']
    #allocation3 [shape = 's32[2]{0}', space=sflag, size = 0x8, scoped, tag = 'scoped memory for series_embedding.5']
    #allocation4 [shape = 's32[2]{0}', space=sflag, size = 0x8, scoped, tag = 'scoped memory for series_embedding.5']
    #allocation5 [shape = 'u8[4096]{0}', space=vmem, size = 0x1000, scoped, tag = 'input window, operand 1, single buffered']
    #allocation6 [shape = 's32[1]{0}', space=sflag, size = 0x4, scoped, tag = 'scoped memory for series_embedding.5']
    #allocation7 [shape = 'u8[512]{0}', space=vmem, size = 0x400, scoped, tag = 'input window, operand 2, single buffered']
    #allocation8 [shape = 'u8[512]{0}', space=vmem, size = 0x400, scoped, tag = 'input window, operand 3, single buffered']
    #allocation9 [shape = 's32[1]{0}', space=sflag, size = 0x4, scoped, tag = 'scoped memory for series_embedding.5']
    #allocation10 [shape = 'u8[512]{0}', space=vmem, size = 0x400, scoped, tag = 'input window, operand 4, single buffered']
    #allocation11 [shape = 'u8[65536]{0}', space=vmem, size = 0x10000, scoped, tag = 'input window, operand 5, single buffered']
    #allocation12 [shape = 's32[1]{0}', space=sflag, size = 0x4, scoped, tag = 'scoped memory for series_embedding.5']
    #allocation13 [shape = 'u8[512]{0}', space=vmem, size = 0x400, scoped, tag = 'input window, operand 6, single buffered']
    #allocation14 [shape = 'u8[512]{0}', space=vmem, size = 0x400, scoped, tag = 'input window, operand 7, single buffered']
    #allocation15 [shape = 's32[1]{0}', space=sflag, size = 0x4, scoped, tag = 'scoped memory for series_embedding.5']
    #allocation16 [shape = 'u8[512]{0}', space=vmem, size = 0x400, scoped, tag = 'input window, operand 8, single buffered']
    #allocation17 [shape = 'u8[16384]{0}', space=vmem, size = 0x4000, scoped, tag = 'output window, operand 0']
    %14 = vsyncpa [#allocation3], 0
    %s15 = scalar_lea.sflag [#allocation3], 1
    %16 = vsyncpa %s15, 0
    %17 = vsyncpa [#allocation6], 0
    %18 = vsyncpa [#allocation9], 0
    %19 = vsyncpa [#allocation12], 0
    %20 = vsyncpa [#allocation15], 0
    %21 = vsyncpa [#allocation4], 0
    %s22 = scalar_lea.sflag [#allocation4], 1
    %23 = vsyncpa %s22, 0
    loop: start=0, step=1, limit=4
    $region2: #{series_embedding.5} parent=1 // loop_pre_header
      _
    $region3: #{series_embedding.5} parent=1 // loop_header
      %s25 = sphi 0, %s29
      %p26 = scmp.ge.s32.totalorder %s25, 4
      %s32 = sphi 0, %s44
      %s33 = sphi 0, %s40
      %s34 = sphi 0, %s32
      %s35 = sphi 0, %s33
      %s36 = sphi 0, %s34
      %s37 = sphi 0, %s35
      %s49 = sphi 0, %s51
      %s52 = sphi 0, %s49
      %s53 = sphi 0, %s52
      %s69 = sphi 0, %s53
      %s73 = sphi 0, %s73
      %s75 = sphi 0, %s73
      %s76 = sphi 0, %s75
      %s90 = sphi 0, %s76
      %s94 = sphi 0, %s94
      %s96 = sphi 0, %s94
      %s97 = sphi 0, %s96
      %s111 = sphi 0, %s97
      %s115 = sphi 0, %s115
      %s117 = sphi 0, %s115
      %s118 = sphi 0, %s117
      %s132 = sphi 0, %s118
      %s136 = sphi 0, %s136
      %s138 = sphi 0, %s136
      %s139 = sphi 0, %s138
      %s153 = sphi 0, %s139
      %s157 = sphi 0, %s157
      %s159 = sphi 0, %s157
      %s160 = sphi 0, %s159
      %s174 = sphi 0, %s160
      %s178 = sphi 0, %s178
      %s180 = sphi 0, %s178
      %s181 = sphi 0, %s180
      %s195 = sphi 0, %s181
      %s199 = sphi 0, %s199
      %s201 = sphi 0, %s199
      %s202 = sphi 0, %s201
      %s216 = sphi 0, %s202
      %s220 = sphi 0, %s220
      %s222 = sphi 0, %s220
      %s223 = sphi 0, %s222
      %s237 = sphi 0, %s223
      %s245 = sphi 0, %s247
      %s248 = sphi 0, %s245
      %s249 = sphi 0, %s248
      %s265 = sphi 0, %s249
    $region4: #{series_embedding.5} parent=1 // loop_header_branch
      %28 = sbr.rel (%p26) target = $region8
    $region5: #{series_embedding.5} parent=1 // loop_body
      %s30 = ssub.s32 %s25, 1
      %s31 = ssub.s32 %s25, 2
      %s38 = sadd.s32 1, %s33
      %p39 = scmp.ge.s32.totalorder %s38, 1
      %s40 = scalar_select %p39, 0, %s38
      %s41 = sadd.s32 1, %s32
      %s42 = scalar_select %p39, %s41, %s32
      %p43 = scmp.ge.s32.totalorder %s42, 2
      %s44 = scalar_select %p43, 0, %s42
      %s45 = ssub.s32 %s32, %s44
      %s46 = ssub.s32 %s33, %s40
      %s47 = sor.u32 %s45, %s46
      %p48 = scmp.eq.s32.totalorder %s47, 0
      %s50 = sadd.s32 %s49, 1
      %s51 = scalar_select %p48, %s49, %s50
      %p54 = pneg %p48
      %p55 = scmp.eq.s32.totalorder %s25, 1
      %p56 = por %p54, %p55
      %p57 = scmp.ne.s32.totalorder %s49, %s52
      %p58 = scmp.eq.s32.totalorder %s25, 0
      %p59 = por %p57, %p58
      %p60 = scmp.ne.s32.totalorder %s49, %s52
      %p61 = scmp.eq.s32.totalorder %s30, 1
      %p62 = por %p60, %p61
      %p63 = scmp.ne.s32.totalorder %s52, %s53
      %p64 = scmp.eq.s32.totalorder %s30, 0
      %p65 = por %p63, %p64
      %p66 = scmp.ne.s32.totalorder %s52, %s53
      %p67 = scmp.eq.s32.totalorder %s31, 1
      %p68 = por %p66, %p67
      %p70 = scmp.ne.s32.totalorder %s53, %s69
      %p71 = scmp.eq.s32.totalorder %s31, 0
      %p72 = por %p70, %p71
      %s74 = sadd.s32 %s73, 1
      %p77 = scmp.eq.s32.totalorder %s25, 1
      %p78 = scmp.ne.s32.totalorder %s73, %s75
      %p79 = scmp.eq.s32.totalorder %s25, 0
      %p80 = por %p78, %p79
      %p81 = scmp.ne.s32.totalorder %s73, %s75
      %p82 = scmp.eq.s32.totalorder %s30, 1
      %p83 = por %p81, %p82
      %p84 = scmp.ne.s32.totalorder %s75, %s76
      %p85 = scmp.eq.s32.totalorder %s30, 0
      %p86 = por %p84, %p85
      %p87 = scmp.ne.s32.totalorder %s75, %s76
      %p88 = scmp.eq.s32.totalorder %s31, 1
      %p89 = por %p87, %p88
      %p91 = scmp.ne.s32.totalorder %s76, %s90
      %p92 = scmp.eq.s32.totalorder %s31, 0
      %p93 = por %p91, %p92
      %s95 = sadd.s32 %s94, 1
      %p98 = scmp.eq.s32.totalorder %s25, 1
      %p99 = scmp.ne.s32.totalorder %s94, %s96
      %p100 = scmp.eq.s32.totalorder %s25, 0
      %p101 = por %p99, %p100
      %p102 = scmp.ne.s32.totalorder %s94, %s96
      %p103 = scmp.eq.s32.totalorder %s30, 1
      %p104 = por %p102, %p103
      %p105 = scmp.ne.s32.totalorder %s96, %s97
      %p106 = scmp.eq.s32.totalorder %s30, 0
      %p107 = por %p105, %p106
      %p108 = scmp.ne.s32.totalorder %s96, %s97
      %p109 = scmp.eq.s32.totalorder %s31, 1
      %p110 = por %p108, %p109
      %p112 = scmp.ne.s32.totalorder %s97, %s111
      %p113 = scmp.eq.s32.totalorder %s31, 0
      %p114 = por %p112, %p113
      %s116 = sadd.s32 %s115, 1
      %p119 = scmp.eq.s32.totalorder %s25, 1
      %p120 = scmp.ne.s32.totalorder %s115, %s117
      %p121 = scmp.eq.s32.totalorder %s25, 0
      %p122 = por %p120, %p121
      %p123 = scmp.ne.s32.totalorder %s115, %s117
      %p124 = scmp.eq.s32.totalorder %s30, 1
      %p125 = por %p123, %p124
      %p126 = scmp.ne.s32.totalorder %s117, %s118
      %p127 = scmp.eq.s32.totalorder %s30, 0
      %p128 = por %p126, %p127
      %p129 = scmp.ne.s32.totalorder %s117, %s118
      %p130 = scmp.eq.s32.totalorder %s31, 1
      %p131 = por %p129, %p130
      %p133 = scmp.ne.s32.totalorder %s118, %s132
      %p134 = scmp.eq.s32.totalorder %s31, 0
      %p135 = por %p133, %p134
      %s137 = sadd.s32 %s136, 1
      %p140 = scmp.eq.s32.totalorder %s25, 1
      %p141 = scmp.ne.s32.totalorder %s136, %s138
      %p142 = scmp.eq.s32.totalorder %s25, 0
      %p143 = por %p141, %p142
      %p144 = scmp.ne.s32.totalorder %s136, %s138
      %p145 = scmp.eq.s32.totalorder %s30, 1
      %p146 = por %p144, %p145
      %p147 = scmp.ne.s32.totalorder %s138, %s139
      %p148 = scmp.eq.s32.totalorder %s30, 0
      %p149 = por %p147, %p148
      %p150 = scmp.ne.s32.totalorder %s138, %s139
      %p151 = scmp.eq.s32.totalorder %s31, 1
      %p152 = por %p150, %p151
      %p154 = scmp.ne.s32.totalorder %s139, %s153
      %p155 = scmp.eq.s32.totalorder %s31, 0
      %p156 = por %p154, %p155
      %s158 = sadd.s32 %s157, 1
      %p161 = scmp.eq.s32.totalorder %s25, 1
      %p162 = scmp.ne.s32.totalorder %s157, %s159
      %p163 = scmp.eq.s32.totalorder %s25, 0
      %p164 = por %p162, %p163
      %p165 = scmp.ne.s32.totalorder %s157, %s159
      %p166 = scmp.eq.s32.totalorder %s30, 1
      %p167 = por %p165, %p166
      %p168 = scmp.ne.s32.totalorder %s159, %s160
      %p169 = scmp.eq.s32.totalorder %s30, 0
      %p170 = por %p168, %p169
      %p171 = scmp.ne.s32.totalorder %s159, %s160
      %p172 = scmp.eq.s32.totalorder %s31, 1
      %p173 = por %p171, %p172
      %p175 = scmp.ne.s32.totalorder %s160, %s174
      %p176 = scmp.eq.s32.totalorder %s31, 0
      %p177 = por %p175, %p176
      %s179 = sadd.s32 %s178, 1
      %p182 = scmp.eq.s32.totalorder %s25, 1
      %p183 = scmp.ne.s32.totalorder %s178, %s180
      %p184 = scmp.eq.s32.totalorder %s25, 0
      %p185 = por %p183, %p184
      %p186 = scmp.ne.s32.totalorder %s178, %s180
      %p187 = scmp.eq.s32.totalorder %s30, 1
      %p188 = por %p186, %p187
      %p189 = scmp.ne.s32.totalorder %s180, %s181
      %p190 = scmp.eq.s32.totalorder %s30, 0
      %p191 = por %p189, %p190
      %p192 = scmp.ne.s32.totalorder %s180, %s181
      %p193 = scmp.eq.s32.totalorder %s31, 1
      %p194 = por %p192, %p193
      %p196 = scmp.ne.s32.totalorder %s181, %s195
      %p197 = scmp.eq.s32.totalorder %s31, 0
      %p198 = por %p196, %p197
      %s200 = sadd.s32 %s199, 1
      %p203 = scmp.eq.s32.totalorder %s25, 1
      %p204 = scmp.ne.s32.totalorder %s199, %s201
      %p205 = scmp.eq.s32.totalorder %s25, 0
      %p206 = por %p204, %p205
      %p207 = scmp.ne.s32.totalorder %s199, %s201
      %p208 = scmp.eq.s32.totalorder %s30, 1
      %p209 = por %p207, %p208
      %p210 = scmp.ne.s32.totalorder %s201, %s202
      %p211 = scmp.eq.s32.totalorder %s30, 0
      %p212 = por %p210, %p211
      %p213 = scmp.ne.s32.totalorder %s201, %s202
      %p214 = scmp.eq.s32.totalorder %s31, 1
      %p215 = por %p213, %p214
      %p217 = scmp.ne.s32.totalorder %s202, %s216
      %p218 = scmp.eq.s32.totalorder %s31, 0
      %p219 = por %p217, %p218
      %s221 = sadd.s32 %s220, 1
      %p224 = scmp.eq.s32.totalorder %s25, 1
      %p225 = scmp.ne.s32.totalorder %s220, %s222
      %p226 = scmp.eq.s32.totalorder %s25, 0
      %p227 = por %p225, %p226
      %p228 = scmp.ne.s32.totalorder %s220, %s222
      %p229 = scmp.eq.s32.totalorder %s30, 1
      %p230 = por %p228, %p229
      %p231 = scmp.ne.s32.totalorder %s222, %s223
      %p232 = scmp.eq.s32.totalorder %s30, 0
      %p233 = por %p231, %p232
      %p234 = scmp.ne.s32.totalorder %s222, %s223
      %p235 = scmp.eq.s32.totalorder %s31, 1
      %p236 = por %p234, %p235
      %p238 = scmp.ne.s32.totalorder %s223, %s237
      %p239 = scmp.eq.s32.totalorder %s31, 0
      %p240 = por %p238, %p239
      %s241 = ssub.s32 %s32, %s44
      %s242 = ssub.s32 %s33, %s40
      %s243 = sor.u32 %s241, %s242
      %p244 = scmp.eq.s32.totalorder %s243, 0
      %s246 = sadd.s32 %s245, 1
      %s247 = scalar_select %p244, %s245, %s246
      %p250 = pneg %p244
      %p251 = scmp.eq.s32.totalorder %s25, 1
      %p252 = por %p250, %p251
      %p253 = scmp.ne.s32.totalorder %s245, %s248
      %p254 = scmp.eq.s32.totalorder %s25, 0
      %p255 = por %p253, %p254
      %p256 = scmp.ne.s32.totalorder %s245, %s248
      %p257 = scmp.eq.s32.totalorder %s30, 1
      %p258 = por %p256, %p257
      %p259 = scmp.ne.s32.totalorder %s248, %s249
      %p260 = scmp.eq.s32.totalorder %s30, 0
      %p261 = por %p259, %p260
      %p262 = scmp.ne.s32.totalorder %s248, %s249
      %p263 = scmp.eq.s32.totalorder %s31, 1
      %p264 = por %p262, %p263
      %p266 = scmp.ne.s32.totalorder %s249, %s265
      %p267 = scmp.eq.s32.totalorder %s31, 0
      %p268 = por %p266, %p267
      %p269 = scmp.le.s32.totalorder 1, %s25
      %p270 = scmp.lt.s32.totalorder %s25, 3
      %p271 = pnand %p269, %p270
      %p272 = pneg %p271
      // Predicated region
      $region9: #{series_embedding.5} parent=5 // pred_check
        _
      $region10: #{series_embedding.5} parent=5 // pred_check_branch
        %274 = sbr.rel (%p271) target = $region12
      $region11: #{series_embedding.5} parent=5 // pred_region
        %s275 = ssub.s32 %s25, 1
        // Predicated region
        $region13: #{series_embedding.5} parent=11 // pred_check
          %p276 = pneg %p86
        $region14: #{series_embedding.5} parent=11 // pred_check_branch
          %278 = sbr.rel (%p276) target = $region16
        $region15: #{series_embedding.5} parent=11 // pred_region
          %s280 = ssub.s32 128, 128
          %281 = vsyncadd [#allocation6], %s280
          %s283 = sshll.u32 [#allocation5], 4
          %s284 = int_to_ptr.vmem [resolvable:$true] %s283
          %286 = dma.hbm_to_vmem [thread:$0]  %s1, 128, %s284, [#allocation6]
        $region16: #{series_embedding.5} parent=11 // pred_fallthru
          _
        // Predicated region
        $region17: #{series_embedding.5} parent=11 // pred_check
          %p287 = pneg %p107
        $region18: #{series_embedding.5} parent=11 // pred_check_branch
          %289 = sbr.rel (%p287) target = $region20
        $region19: #{series_embedding.5} parent=11 // pred_region
          %s291 = ssub.s32 16, 16
          %292 = vsyncadd [#allocation6], %s291
          %s294 = sshll.u32 [#allocation7], 4
          %s295 = int_to_ptr.vmem [resolvable:$true] %s294
          %297 = dma.hbm_to_vmem [thread:$0]  %s2, 16, %s295, [#allocation6]
        $region20: #{series_embedding.5} parent=11 // pred_fallthru
          _
        // Predicated region
        $region21: #{series_embedding.5} parent=11 // pred_check
          %p298 = pneg %p128
        $region22: #{series_embedding.5} parent=11 // pred_check_branch
          %300 = sbr.rel (%p298) target = $region24
        $region23: #{series_embedding.5} parent=11 // pred_region
          %s302 = ssub.s32 16, 16
          %303 = vsyncadd [#allocation9], %s302
          %s305 = sshll.u32 [#allocation8], 4
          %s306 = int_to_ptr.vmem [resolvable:$true] %s305
          %308 = dma.hbm_to_vmem [thread:$0]  %s3, 16, %s306, [#allocation9]
        $region24: #{series_embedding.5} parent=11 // pred_fallthru
          _
        // Predicated region
        $region25: #{series_embedding.5} parent=11 // pred_check
          %p309 = pneg %p149
        $region26: #{series_embedding.5} parent=11 // pred_check_branch
          %311 = sbr.rel (%p309) target = $region28
        $region27: #{series_embedding.5} parent=11 // pred_region
          %s313 = ssub.s32 16, 16
          %314 = vsyncadd [#allocation9], %s313
          %s316 = sshll.u32 [#allocation10], 4
          %s317 = int_to_ptr.vmem [resolvable:$true] %s316
          %319 = dma.hbm_to_vmem [thread:$0]  %s4, 16, %s317, [#allocation9]
        $region28: #{series_embedding.5} parent=11 // pred_fallthru
          _
        // Predicated region
        $region29: #{series_embedding.5} parent=11 // pred_check
          %p320 = pneg %p170
        $region30: #{series_embedding.5} parent=11 // pred_check_branch
          %322 = sbr.rel (%p320) target = $region32
        $region31: #{series_embedding.5} parent=11 // pred_region
          %s324 = ssub.s32 2048, 2048
          %325 = vsyncadd [#allocation12], %s324
          %s326 = sshll.u32 [#allocation11], 4
          %s327 = int_to_ptr.vmem [resolvable:$true] %s326
          %332 = dma.hbm_to_vmem [thread:$0]  %s5, 2048, %s327, [#allocation12], 128, 128, 8
        $region32: #{series_embedding.5} parent=11 // pred_fallthru
          _
        // Predicated region
        $region33: #{series_embedding.5} parent=11 // pred_check
          %p333 = pneg %p191
        $region34: #{series_embedding.5} parent=11 // pred_check_branch
          %335 = sbr.rel (%p333) target = $region36
        $region35: #{series_embedding.5} parent=11 // pred_region
          %s337 = ssub.s32 16, 16
          %338 = vsyncadd [#allocation12], %s337
          %s340 = sshll.u32 [#allocation13], 4
          %s341 = int_to_ptr.vmem [resolvable:$true] %s340
          %343 = dma.hbm_to_vmem [thread:$0]  %s6, 16, %s341, [#allocation12]
        $region36: #{series_embedding.5} parent=11 // pred_fallthru
          _
        // Predicated region
        $region37: #{series_embedding.5} parent=11 // pred_check
          %p344 = pneg %p212
        $region38: #{series_embedding.5} parent=11 // pred_check_branch
          %346 = sbr.rel (%p344) target = $region40
        $region39: #{series_embedding.5} parent=11 // pred_region
          %s348 = ssub.s32 16, 16
          %349 = vsyncadd [#allocation15], %s348
          %s351 = sshll.u32 [#allocation14], 4
          %s352 = int_to_ptr.vmem [resolvable:$true] %s351
          %354 = dma.hbm_to_vmem [thread:$0]  %s7, 16, %s352, [#allocation15]
        $region40: #{series_embedding.5} parent=11 // pred_fallthru
          _
        // Predicated region
        $region41: #{series_embedding.5} parent=11 // pred_check
          %p355 = pneg %p233
        $region42: #{series_embedding.5} parent=11 // pred_check_branch
          %357 = sbr.rel (%p355) target = $region44
        $region43: #{series_embedding.5} parent=11 // pred_region
          %s359 = ssub.s32 16, 16
          %360 = vsyncadd [#allocation15], %s359
          %s362 = sshll.u32 [#allocation16], 4
          %s363 = int_to_ptr.vmem [resolvable:$true] %s362
          %365 = dma.hbm_to_vmem [thread:$0]  %s8, 16, %s363, [#allocation15]
        $region44: #{series_embedding.5} parent=11 // pred_fallthru
          _
      $region12: #{series_embedding.5} parent=5 // pred_fallthru
        _
      %p366 = scmp.lt.s32.totalorder %s25, 2
      // Predicated region
      $region45: #{series_embedding.5} parent=5 // pred_check
        %p367 = pneg %p366
      $region46: #{series_embedding.5} parent=5 // pred_check_branch
        %369 = sbr.rel (%p367) target = $region48
      $region47: #{series_embedding.5} parent=5 // pred_region
        // Predicated region
        $region49: #{series_embedding.5} parent=47 // pred_check
          %p370 = pneg %p59
        $region50: #{series_embedding.5} parent=47 // pred_check_branch
          %372 = sbr.rel (%p370) target = $region52
        $region51: #{series_embedding.5} parent=47 // pred_region
          %s373 = sand.u32 %s49, 1
          %s374 = scalar_lea.sflag [#allocation3], %s373
          %s375 = sand.u32 %s49, 1
          %s376 = smul.addr %s375, 128
          %s377 = scalar_lea.vmem [#allocation2], %s376
          %s378 = smul.u32 16, %s33
          %s380 = ssub.s32 2048, 2048
          %381 = vsyncadd %s374, %s380
          %s382 = smul.addr %s32, 16
          %s383 = sadd.s32 %s378, %s382
          %s384 = smul.addr %s383, 128
          %s385 = scalar_lea.hbm %s0, %s384
          %s386 = sshll.u32 %s377, 4
          %s387 = int_to_ptr.vmem [resolvable:$true] %s386
          %392 = dma.hbm_to_vmem [thread:$0]  %s385, 2048, %s387, %s374, 128, 128, 8
        $region52: #{series_embedding.5} parent=47 // pred_fallthru
          _
      $region48: #{series_embedding.5} parent=5 // pred_fallthru
        _
      %p393 = scmp.le.s32.totalorder 1, %s25
      %p394 = scmp.lt.s32.totalorder %s25, 3
      %p395 = pnand %p393, %p394
      %p396 = pneg %p395
      // Predicated region
      $region53: #{series_embedding.5} parent=5 // pred_check
        _
      $region54: #{series_embedding.5} parent=5 // pred_check_branch
        %398 = sbr.rel (%p395) target = $region56
      $region55: #{series_embedding.5} parent=5 // pred_region
        %s399 = ssub.s32 %s25, 1
        %s400 = sand.u32 %s52, 1
        %s401 = scalar_lea.sflag [#allocation3], %s400
        %s402 = sand.u32 %s52, 1
        %s403 = smul.addr %s402, 128
        %s404 = scalar_lea.vmem [#allocation2], %s403
        // Predicated region
        $region57: #{series_embedding.5} parent=55 // pred_check
          %p405 = pneg %p65
        $region58: #{series_embedding.5} parent=55 // pred_check_branch
          %407 = sbr.rel (%p405) target = $region60
        $region59: #{series_embedding.5} parent=55 // pred_region
          %408 = dma.done %s401, 2048
        $region60: #{series_embedding.5} parent=55 // pred_fallthru
          _
        // Predicated region
        $region61: #{series_embedding.5} parent=55 // pred_check
          %p409 = pneg %p86
        $region62: #{series_embedding.5} parent=55 // pred_check_branch
          %411 = sbr.rel (%p409) target = $region64
        $region63: #{series_embedding.5} parent=55 // pred_region
          %412 = dma.done [#allocation6], 128
        $region64: #{series_embedding.5} parent=55 // pred_fallthru
          _
        // Predicated region
        $region65: #{series_embedding.5} parent=55 // pred_check
          %p413 = pneg %p107
        $region66: #{series_embedding.5} parent=55 // pred_check_branch
          %415 = sbr.rel (%p413) target = $region68
        $region67: #{series_embedding.5} parent=55 // pred_region
          %416 = dma.done [#allocation6], 16
        $region68: #{series_embedding.5} parent=55 // pred_fallthru
          _
        // Predicated region
        $region69: #{series_embedding.5} parent=55 // pred_check
          %p417 = pneg %p128
        $region70: #{series_embedding.5} parent=55 // pred_check_branch
          %419 = sbr.rel (%p417) target = $region72
        $region71: #{series_embedding.5} parent=55 // pred_region
          %420 = dma.done [#allocation9], 16
        $region72: #{series_embedding.5} parent=55 // pred_fallthru
          _
        // Predicated region
        $region73: #{series_embedding.5} parent=55 // pred_check
          %p421 = pneg %p149
        $region74: #{series_embedding.5} parent=55 // pred_check_branch
          %423 = sbr.rel (%p421) target = $region76
        $region75: #{series_embedding.5} parent=55 // pred_region
          %424 = dma.done [#allocation9], 16
        $region76: #{series_embedding.5} parent=55 // pred_fallthru
          _
        // Predicated region
        $region77: #{series_embedding.5} parent=55 // pred_check
          %p425 = pneg %p170
        $region78: #{series_embedding.5} parent=55 // pred_check_branch
          %427 = sbr.rel (%p425) target = $region80
        $region79: #{series_embedding.5} parent=55 // pred_region
          %428 = dma.done [#allocation12], 2048
        $region80: #{series_embedding.5} parent=55 // pred_fallthru
          _
        // Predicated region
        $region81: #{series_embedding.5} parent=55 // pred_check
          %p429 = pneg %p191
        $region82: #{series_embedding.5} parent=55 // pred_check_branch
          %431 = sbr.rel (%p429) target = $region84
        $region83: #{series_embedding.5} parent=55 // pred_region
          %432 = dma.done [#allocation12], 16
        $region84: #{series_embedding.5} parent=55 // pred_fallthru
          _
        // Predicated region
        $region85: #{series_embedding.5} parent=55 // pred_check
          %p433 = pneg %p212
        $region86: #{series_embedding.5} parent=55 // pred_check_branch
          %435 = sbr.rel (%p433) target = $region88
        $region87: #{series_embedding.5} parent=55 // pred_region
          %436 = dma.done [#allocation15], 16
        $region88: #{series_embedding.5} parent=55 // pred_fallthru
          _
        // Predicated region
        $region89: #{series_embedding.5} parent=55 // pred_check
          %p437 = pneg %p233
        $region90: #{series_embedding.5} parent=55 // pred_check_branch
          %439 = sbr.rel (%p437) target = $region92
        $region91: #{series_embedding.5} parent=55 // pred_region
          %440 = dma.done [#allocation15], 16
        $region92: #{series_embedding.5} parent=55 // pred_fallthru
          _
        %s441 = sand.u32 %s52, 1
        %s442 = scalar_lea.sflag [#allocation3], %s441
        %s443 = sand.u32 %s52, 1
        %s444 = smul.addr %s443, 128
        %s445 = scalar_lea.vmem [#allocation2], %s444
        %p446 = pneg %p65
        %p447 = pneg %p62
        %p448 = pneg %p86
        %p449 = pneg %p83
        %p450 = pneg %p107
        %p451 = pneg %p104
        %p452 = pneg %p128
        %p453 = pneg %p125
        %p454 = pneg %p149
        %p455 = pneg %p146
        %p456 = pneg %p170
        %p457 = pneg %p167
        %p458 = pneg %p191
        %p459 = pneg %p188
        %p460 = pneg %p212
        %p461 = pneg %p209
        %p462 = pneg %p233
        %p463 = pneg %p230
        %p464 = pneg %p261
        %p465 = pneg %p258
        %s466 = sand.u32 %s248, 1
        %s467 = scalar_lea.sflag [#allocation4], %s466
        %s468 = sand.u32 %s248, 1
        %s469 = smul.addr %s468, 16
        %s470 = scalar_lea.vmem [#allocation17], %s469
        %s471 = smul.u32 16, %s35
        %v472 = vld [vmem:[%s404] sm:$0xff]
        %v473 = vld [vmem:[%s404 + $0x8] sm:$0xff]
        %v474 = vld [vmem:[%s404 + $0x10] sm:$0xff]
        %v475 = vld [vmem:[%s404 + $0x18] sm:$0xff]
        %v476 = vld [vmem:[%s404 + $0x20] sm:$0xff]
        %v477 = vld [vmem:[%s404 + $0x28] sm:$0xff]
        %v478 = vld [vmem:[%s404 + $0x30] sm:$0xff]
        %v479 = vld [vmem:[%s404 + $0x38] sm:$0xff]
        %v480 = vld [vmem:[%s404 + $0x40] sm:$0xff]
        %v481 = vld [vmem:[%s404 + $0x48] sm:$0xff]
        %v482 = vld [vmem:[%s404 + $0x50] sm:$0xff]
        %v483 = vld [vmem:[%s404 + $0x58] sm:$0xff]
        %v484 = vld [vmem:[%s404 + $0x60] sm:$0xff]
        %v485 = vld [vmem:[%s404 + $0x68] sm:$0xff]
        %v486 = vld [vmem:[%s404 + $0x70] sm:$0xff]
        %v487 = vld [vmem:[%s404 + $0x78] sm:$0xff]
        %v488 = vld [vmem:[#allocation5] sm:$0xff]
        %v489 = vld [vmem:[#allocation7] sm:$0x1]
        %v491 = vlaneseq
        %v492 = vshrl.u32 %v491, 7
        %v493 = vsub.s32 0, %v492
        %v494 = vrot.slane %v489, %v493
        %vm496 = vcmask 64512
        %v498 = vsel %vm496, %v472, 0
        %v501 = vsel %vm496, %v473, 0
        %v504 = vsel %vm496, %v474, 0
        %v507 = vsel %vm496, %v475, 0
        %v510 = vsel %vm496, %v476, 0
        %v513 = vsel %vm496, %v477, 0
        %v516 = vsel %vm496, %v478, 0
        %v519 = vsel %vm496, %v479, 0
        %v522 = vsel %vm496, %v480, 0
        %v525 = vsel %vm496, %v481, 0
        %v528 = vsel %vm496, %v482, 0
        %v531 = vsel %vm496, %v483, 0
        %v534 = vsel %vm496, %v484, 0
        %v537 = vsel %vm496, %v485, 0
        %v540 = vsel %vm496, %v486, 0
        %v543 = vsel %vm496, %v487, 0
        %545 = vmatprep.subr.mxu0 0.0
        %546 = vmatpush1.msra.mxu0 %v488
        %547 = vmatprep.subr.mxu0 0.0
        %548 = vmatpush1.msra.mxu0 0.0
        %549 = vmatprep.subr.mxu0 0.0
        %550 = vmatpush1.msra.mxu0 0.0
        %551 = vmatprep.subr.mxu0 0.0
        %552 = vmatpush1.msra.mxu0 0.0
        %553 = vmatprep.subr.mxu0 0.0
        %554 = vmatpush1.msra.mxu0 0.0
        %555 = vmatprep.subr.mxu0 0.0
        %556 = vmatpush1.msra.mxu0 0.0
        %557 = vmatprep.subr.mxu0 0.0
        %558 = vmatpush1.msra.mxu0 0.0
        %559 = vmatprep.subr.mxu0 0.0
        %560 = vmatpush1.msra.mxu0 0.0
        %561 = vmatprep.subr.mxu0 0.0
        %562 = vmatpush1.msra.mxu0 0.0
        %563 = vmatprep.subr.mxu0 0.0
        %564 = vmatpush1.msra.mxu0 0.0
        %565 = vmatprep.subr.mxu0 0.0
        %566 = vmatpush1.msra.mxu0 0.0
        %567 = vmatprep.subr.mxu0 0.0
        %568 = vmatpush1.msra.mxu0 0.0
        %569 = vmatprep.subr.mxu0 0.0
        %570 = vmatpush1.msra.mxu0 0.0
        %571 = vmatprep.subr.mxu0 0.0
        %572 = vmatpush1.msra.mxu0 0.0
        %573 = vmatprep.subr.mxu0 0.0
        %574 = vmatpush1.msra.mxu0 0.0
        %575 = vmatprep.subr.mxu0 0.0
        %576 = vmatpush1.msra.mxu0 0.0
        %577 = vmatprep.subr.mxu0 0.0
        %578 = vmatpush1.msra.mxu0 0.0
        %579 = vmatprep.subr.mxu0 0.0
        %580 = vmatpush1.msra.mxu0 0.0
        %581 = vmatprep.subr.mxu0 0.0
        %582 = vmatpush1.msra.mxu0 0.0
        %583 = vmatprep.subr.mxu0 0.0
        %584 = vmatpush1.msra.mxu0 0.0
        %585 = vmatprep.subr.mxu0 0.0
        %586 = vmatpush1.msra.mxu0 0.0
        %587 = vmatprep.subr.mxu0 0.0
        %588 = vmatpush1.msra.mxu0 0.0
        %589 = vmatprep.subr.mxu0 0.0
        %590 = vmatpush1.msra.mxu0 0.0
        %591 = vmatprep.subr.mxu0 0.0
        %592 = vmatpush1.msra.mxu0 0.0
        %593 = vmatprep.subr.mxu0 0.0
        %594 = vmatpush1.msra.mxu0 0.0
        %595 = vmatprep.subr.mxu0 0.0
        %596 = vmatpush1.msra.mxu0 0.0
        %597 = vmatprep.subr.mxu0 0.0
        %598 = vmatpush1.msra.mxu0 0.0
        %599 = vmatprep.subr.mxu0 0.0
        %600 = vmatpush1.msra.mxu0 0.0
        %601 = vmatprep.subr.mxu0 0.0
        %602 = vmatpush1.msra.mxu0 0.0
        %603 = vmatprep.subr.mxu0 0.0
        %604 = vmatpush1.msra.mxu0 0.0
        %605 = vmatprep.subr.mxu0 0.0
        %606 = vmatpush1.msra.mxu0 0.0
        %607 = vmatprep.subr.mxu0 0.0
        %608 = vmatpush1.msra.mxu0 0.0
        %609 = vmatprep.mubr.f32.mxu0 0.0
        %610 = vmatmul.mubr.f32.gmra.mrb[0].mxu0 %v498
        %v611 = vpop.f32.mrb[0].mxu0
        %v612 = vadd.f32 %v494, %v611
        %v613 = vpop.f32.mrb[0].mxu0
        %614 = vmatprep.mubr.f32.mxu0 0.0
        %615 = vmatmul.mubr.f32.gmra.mrb[0].mxu0 %v501
        %v616 = vpop.f32.mrb[0].mxu0
        %v617 = vadd.f32 %v494, %v616
        %v618 = vpop.f32.mrb[0].mxu0
        %619 = vmatprep.mubr.f32.mxu0 0.0
        %620 = vmatmul.mubr.f32.gmra.mrb[0].mxu0 %v504
        %v621 = vpop.f32.mrb[0].mxu0
        %v622 = vadd.f32 %v494, %v621
        %v623 = vpop.f32.mrb[0].mxu0
        %624 = vmatprep.mubr.f32.mxu0 0.0
        %625 = vmatmul.mubr.f32.gmra.mrb[0].mxu0 %v507
        %v626 = vpop.f32.mrb[0].mxu0
        %v627 = vadd.f32 %v494, %v626
        %v628 = vpop.f32.mrb[0].mxu0
        %629 = vmatprep.mubr.f32.mxu0 0.0
        %630 = vmatmul.mubr.f32.gmra.mrb[0].mxu0 %v510
        %v631 = vpop.f32.mrb[0].mxu0
        %v632 = vadd.f32 %v494, %v631
        %v633 = vpop.f32.mrb[0].mxu0
        %634 = vmatprep.mubr.f32.mxu0 0.0
        %635 = vmatmul.mubr.f32.gmra.mrb[0].mxu0 %v513
        %v636 = vpop.f32.mrb[0].mxu0
        %v637 = vadd.f32 %v494, %v636
        %v638 = vpop.f32.mrb[0].mxu0
        %639 = vmatprep.mubr.f32.mxu0 0.0
        %640 = vmatmul.mubr.f32.gmra.mrb[0].mxu0 %v516
        %v641 = vpop.f32.mrb[0].mxu0
        %v642 = vadd.f32 %v494, %v641
        %v643 = vpop.f32.mrb[0].mxu0
        %644 = vmatprep.mubr.f32.mxu0 0.0
        %645 = vmatmul.mubr.f32.gmra.mrb[0].mxu0 %v519
        %v646 = vpop.f32.mrb[0].mxu0
        %v647 = vadd.f32 %v494, %v646
        %v648 = vpop.f32.mrb[0].mxu0
        %649 = vmatprep.mubr.f32.mxu0 0.0
        %650 = vmatmul.mubr.f32.gmra.mrb[0].mxu0 %v522
        %v651 = vpop.f32.mrb[0].mxu0
        %v652 = vadd.f32 %v494, %v651
        %v653 = vpop.f32.mrb[0].mxu0
        %654 = vmatprep.mubr.f32.mxu0 0.0
        %655 = vmatmul.mubr.f32.gmra.mrb[0].mxu0 %v525
        %v656 = vpop.f32.mrb[0].mxu0
        %v657 = vadd.f32 %v494, %v656
        %v658 = vpop.f32.mrb[0].mxu0
        %659 = vmatprep.mubr.f32.mxu0 0.0
        %660 = vmatmul.mubr.f32.gmra.mrb[0].mxu0 %v528
        %v661 = vpop.f32.mrb[0].mxu0
        %v662 = vadd.f32 %v494, %v661
        %v663 = vpop.f32.mrb[0].mxu0
        %664 = vmatprep.mubr.f32.mxu0 0.0
        %665 = vmatmul.mubr.f32.gmra.mrb[0].mxu0 %v531
        %v666 = vpop.f32.mrb[0].mxu0
        %v667 = vadd.f32 %v494, %v666
        %v668 = vpop.f32.mrb[0].mxu0
        %669 = vmatprep.mubr.f32.mxu0 0.0
        %670 = vmatmul.mubr.f32.gmra.mrb[0].mxu0 %v534
        %v671 = vpop.f32.mrb[0].mxu0
        %v672 = vadd.f32 %v494, %v671
        %v673 = vpop.f32.mrb[0].mxu0
        %674 = vmatprep.mubr.f32.mxu0 0.0
        %675 = vmatmul.mubr.f32.gmra.mrb[0].mxu0 %v537
        %v676 = vpop.f32.mrb[0].mxu0
        %v677 = vadd.f32 %v494, %v676
        %v678 = vpop.f32.mrb[0].mxu0
        %679 = vmatprep.mubr.f32.mxu0 0.0
        %680 = vmatmul.mubr.f32.gmra.mrb[0].mxu0 %v540
        %v681 = vpop.f32.mrb[0].mxu0
        %v682 = vadd.f32 %v494, %v681
        %v683 = vpop.f32.mrb[0].mxu0
        %684 = vmatprep.mubr.f32.mxu0 0.0
        %685 = vmatmul.mubr.f32.gmra.mrb[0].mxu0 %v543
        %v686 = vpop.f32.mrb[0].mxu0
        %v687 = vadd.f32 %v494, %v686
        %v688 = vpop.f32.mrb[0].mxu0
        %689 = vdwg.mxu0
        %v690 = vmul.f32 %v612, 0.5
        %v691 = vmul.f32 %v617, 0.5
        %v692 = vmul.f32 %v622, 0.5
        %v693 = vmul.f32 %v627, 0.5
        %v694 = vmul.f32 %v632, 0.5
        %v695 = vmul.f32 %v637, 0.5
        %v696 = vmul.f32 %v642, 0.5
        %v697 = vmul.f32 %v647, 0.5
        %v698 = vmul.f32 %v652, 0.5
        %v699 = vmul.f32 %v657, 0.5
        %v700 = vmul.f32 %v662, 0.5
        %v701 = vmul.f32 %v667, 0.5
        %v702 = vmul.f32 %v672, 0.5
        %v703 = vmul.f32 %v677, 0.5
        %v704 = vmul.f32 %v682, 0.5
        %v705 = vmul.f32 %v687, 0.5
        %v706 = vmul.f32 %v612, 0.70710677
        %v707 = vmul.f32 %v617, 0.70710677
        %v708 = vmul.f32 %v622, 0.70710677
        %v709 = vmul.f32 %v627, 0.70710677
        %v710 = vmul.f32 %v632, 0.70710677
        %v711 = vmul.f32 %v637, 0.70710677
        %v712 = vmul.f32 %v642, 0.70710677
        %v713 = vmul.f32 %v647, 0.70710677
        %v714 = vmul.f32 %v652, 0.70710677
        %v715 = vmul.f32 %v657, 0.70710677
        %v716 = vmul.f32 %v662, 0.70710677
        %v717 = vmul.f32 %v667, 0.70710677
        %v718 = vmul.f32 %v672, 0.70710677
        %v719 = vmul.f32 %v677, 0.70710677
        %v720 = vmul.f32 %v682, 0.70710677
        %v721 = vmul.f32 %v687, 0.70710677
        %v722 = verf.f32.pop %v706
        %v723 = verf.f32.pop %v707
        %v724 = verf.f32.pop %v708
        %v725 = verf.f32.pop %v709
        %v726 = verf.f32.pop %v710
        %v727 = verf.f32.pop %v711
        %v728 = verf.f32.pop %v712
        %v729 = verf.f32.pop %v713
        %v730 = verf.f32.pop %v714
        %v731 = verf.f32.pop %v715
        %v732 = verf.f32.pop %v716
        %v733 = verf.f32.pop %v717
        %v734 = verf.f32.pop %v718
        %v735 = verf.f32.pop %v719
        %v736 = verf.f32.pop %v720
        %v737 = verf.f32.pop %v721
        %v738 = vadd.f32 %v722, 1.0
        %v739 = vadd.f32 %v723, 1.0
        %v740 = vadd.f32 %v724, 1.0
        %v741 = vadd.f32 %v725, 1.0
        %v742 = vadd.f32 %v726, 1.0
        %v743 = vadd.f32 %v727, 1.0
        %v744 = vadd.f32 %v728, 1.0
        %v745 = vadd.f32 %v729, 1.0
        %v746 = vadd.f32 %v730, 1.0
        %v747 = vadd.f32 %v731, 1.0
        %v748 = vadd.f32 %v732, 1.0
        %v749 = vadd.f32 %v733, 1.0
        %v750 = vadd.f32 %v734, 1.0
        %v751 = vadd.f32 %v735, 1.0
        %v752 = vadd.f32 %v736, 1.0
        %v753 = vadd.f32 %v737, 1.0
        %v754 = vmul.f32 %v690, %v738
        %v755 = vmul.f32 %v691, %v739
        %v756 = vmul.f32 %v692, %v740
        %v757 = vmul.f32 %v693, %v741
        %v758 = vmul.f32 %v694, %v742
        %v759 = vmul.f32 %v695, %v743
        %v760 = vmul.f32 %v696, %v744
        %v761 = vmul.f32 %v697, %v745
        %v762 = vmul.f32 %v698, %v746
        %v763 = vmul.f32 %v699, %v747
        %v764 = vmul.f32 %v700, %v748
        %v765 = vmul.f32 %v701, %v749
        %v766 = vmul.f32 %v702, %v750
        %v767 = vmul.f32 %v703, %v751
        %v768 = vmul.f32 %v704, %v752
        %v769 = vmul.f32 %v705, %v753
        %v770 = vld [vmem:[#allocation8] sm:$0x1]
        %v772 = vlaneseq
        %v773 = vshrl.u32 %v772, 7
        %v774 = vsub.s32 0, %v773
        %v775 = vrot.slane %v770, %v774
        %v777 = vmul.f32 %v754, %v775
        %v778 = vmul.f32 %v755, %v775
        %v779 = vmul.f32 %v756, %v775
        %v780 = vmul.f32 %v757, %v775
        %v781 = vmul.f32 %v758, %v775
        %v782 = vmul.f32 %v759, %v775
        %v783 = vmul.f32 %v760, %v775
        %v784 = vmul.f32 %v761, %v775
        %v785 = vmul.f32 %v762, %v775
        %v786 = vmul.f32 %v763, %v775
        %v787 = vmul.f32 %v764, %v775
        %v788 = vmul.f32 %v765, %v775
        %v789 = vmul.f32 %v766, %v775
        %v790 = vmul.f32 %v767, %v775
        %v791 = vmul.f32 %v768, %v775
        %v792 = vmul.f32 %v769, %v775
        %v793 = vld [vmem:[#allocation10] sm:$0x1]
        %v795 = vlaneseq
        %v796 = vshrl.u32 %v795, 7
        %v797 = vsub.s32 0, %v796
        %v798 = vrot.slane %v793, %v797
        %v800 = vadd.f32 %v777, %v798
        %v801 = vadd.f32 %v778, %v798
        %v802 = vadd.f32 %v779, %v798
        %v803 = vadd.f32 %v780, %v798
        %v804 = vadd.f32 %v781, %v798
        %v805 = vadd.f32 %v782, %v798
        %v806 = vadd.f32 %v783, %v798
        %v807 = vadd.f32 %v784, %v798
        %v808 = vadd.f32 %v785, %v798
        %v809 = vadd.f32 %v786, %v798
        %v810 = vadd.f32 %v787, %v798
        %v811 = vadd.f32 %v788, %v798
        %v812 = vadd.f32 %v789, %v798
        %v813 = vadd.f32 %v790, %v798
        %v814 = vadd.f32 %v791, %v798
        %v815 = vadd.f32 %v792, %v798
        %v816 = vld [vmem:[#allocation11] sm:$0xff]
        %v817 = vld [vmem:[#allocation11 + $0x8] sm:$0xff]
        %v818 = vld [vmem:[#allocation11 + $0x10] sm:$0xff]
        %v819 = vld [vmem:[#allocation11 + $0x18] sm:$0xff]
        %v820 = vld [vmem:[#allocation11 + $0x20] sm:$0xff]
        %v821 = vld [vmem:[#allocation11 + $0x28] sm:$0xff]
        %v822 = vld [vmem:[#allocation11 + $0x30] sm:$0xff]
        %v823 = vld [vmem:[#allocation11 + $0x38] sm:$0xff]
        %v824 = vld [vmem:[#allocation11 + $0x40] sm:$0xff]
        %v825 = vld [vmem:[#allocation11 + $0x48] sm:$0xff]
        %v826 = vld [vmem:[#allocation11 + $0x50] sm:$0xff]
        %v827 = vld [vmem:[#allocation11 + $0x58] sm:$0xff]
        %v828 = vld [vmem:[#allocation11 + $0x60] sm:$0xff]
        %v829 = vld [vmem:[#allocation11 + $0x68] sm:$0xff]
        %v830 = vld [vmem:[#allocation11 + $0x70] sm:$0xff]
        %v831 = vld [vmem:[#allocation11 + $0x78] sm:$0xff]
        %v832 = vld [vmem:[#allocation13] sm:$0x1]
        %v834 = vlaneseq
        %v835 = vshrl.u32 %v834, 7
        %v836 = vsub.s32 0, %v835
        %v837 = vrot.slane %v832, %v836
        %839 = vmatprep.subr.mxu0 0.0
        %840 = vmatpush1.msra.mxu0 %v816
        %841 = vmatprep.subr.mxu0 0.0
        %842 = vmatpush1.msra.mxu0 %v817
        %843 = vmatprep.subr.mxu0 0.0
        %844 = vmatpush1.msra.mxu0 %v818
        %845 = vmatprep.subr.mxu0 0.0
        %846 = vmatpush1.msra.mxu0 %v819
        %847 = vmatprep.subr.mxu0 0.0
        %848 = vmatpush1.msra.mxu0 %v820
        %849 = vmatprep.subr.mxu0 0.0
        %850 = vmatpush1.msra.mxu0 %v821
        %851 = vmatprep.subr.mxu0 0.0
        %852 = vmatpush1.msra.mxu0 %v822
        %853 = vmatprep.subr.mxu0 0.0
        %854 = vmatpush1.msra.mxu0 %v823
        %855 = vmatprep.subr.mxu0 0.0
        %856 = vmatpush1.msra.mxu0 %v824
        %857 = vmatprep.subr.mxu0 0.0
        %858 = vmatpush1.msra.mxu0 %v825
        %859 = vmatprep.subr.mxu0 0.0
        %860 = vmatpush1.msra.mxu0 %v826
        %861 = vmatprep.subr.mxu0 0.0
        %862 = vmatpush1.msra.mxu0 %v827
        %863 = vmatprep.subr.mxu0 0.0
        %864 = vmatpush1.msra.mxu0 %v828
        %865 = vmatprep.subr.mxu0 0.0
        %866 = vmatpush1.msra.mxu0 %v829
        %867 = vmatprep.subr.mxu0 0.0
        %868 = vmatpush1.msra.mxu0 %v830
        %869 = vmatprep.subr.mxu0 0.0
        %870 = vmatpush1.msra.mxu0 %v831
        %871 = vmatprep.subr.mxu0 0.0
        %872 = vmatpush1.msra.mxu0 0.0
        %873 = vmatprep.subr.mxu0 0.0
        %874 = vmatpush1.msra.mxu0 0.0
        %875 = vmatprep.subr.mxu0 0.0
        %876 = vmatpush1.msra.mxu0 0.0
        %877 = vmatprep.subr.mxu0 0.0
        %878 = vmatpush1.msra.mxu0 0.0
        %879 = vmatprep.subr.mxu0 0.0
        %880 = vmatpush1.msra.mxu0 0.0
        %881 = vmatprep.subr.mxu0 0.0
        %882 = vmatpush1.msra.mxu0 0.0
        %883 = vmatprep.subr.mxu0 0.0
        %884 = vmatpush1.msra.mxu0 0.0
        %885 = vmatprep.subr.mxu0 0.0
        %886 = vmatpush1.msra.mxu0 0.0
        %887 = vmatprep.subr.mxu0 0.0
        %888 = vmatpush1.msra.mxu0 0.0
        %889 = vmatprep.subr.mxu0 0.0
        %890 = vmatpush1.msra.mxu0 0.0
        %891 = vmatprep.subr.mxu0 0.0
        %892 = vmatpush1.msra.mxu0 0.0
        %893 = vmatprep.subr.mxu0 0.0
        %894 = vmatpush1.msra.mxu0 0.0
        %895 = vmatprep.subr.mxu0 0.0
        %896 = vmatpush1.msra.mxu0 0.0
        %897 = vmatprep.subr.mxu0 0.0
        %898 = vmatpush1.msra.mxu0 0.0
        %899 = vmatprep.subr.mxu0 0.0
        %900 = vmatpush1.msra.mxu0 0.0
        %901 = vmatprep.subr.mxu0 0.0
        %902 = vmatpush1.msra.mxu0 0.0
        %903 = vmatprep.mubr.f32.mxu0 0.0
        %904 = vmatmul.mubr.f32.gmra.mrb[0].mxu0 %v800
        %v905 = vpop.f32.mrb[0].mxu0
        %v906 = vadd.f32 %v837, %v905
        %v907 = vpop.f32.mrb[0].mxu0
        %908 = vmatprep.mubr.f32.mxu0 0.0
        %909 = vmatmul.mubr.f32.gmra.mrb[0].mxu0 %v801
        %v910 = vpop.f32.mrb[0].mxu0
        %v911 = vadd.f32 %v837, %v910
        %v912 = vpop.f32.mrb[0].mxu0
        %913 = vmatprep.mubr.f32.mxu0 0.0
        %914 = vmatmul.mubr.f32.gmra.mrb[0].mxu0 %v802
        %v915 = vpop.f32.mrb[0].mxu0
        %v916 = vadd.f32 %v837, %v915
        %v917 = vpop.f32.mrb[0].mxu0
        %918 = vmatprep.mubr.f32.mxu0 0.0
        %919 = vmatmul.mubr.f32.gmra.mrb[0].mxu0 %v803
        %v920 = vpop.f32.mrb[0].mxu0
        %v921 = vadd.f32 %v837, %v920
        %v922 = vpop.f32.mrb[0].mxu0
        %923 = vmatprep.mubr.f32.mxu0 0.0
        %924 = vmatmul.mubr.f32.gmra.mrb[0].mxu0 %v804
        %v925 = vpop.f32.mrb[0].mxu0
        %v926 = vadd.f32 %v837, %v925
        %v927 = vpop.f32.mrb[0].mxu0
        %928 = vmatprep.mubr.f32.mxu0 0.0
        %929 = vmatmul.mubr.f32.gmra.mrb[0].mxu0 %v805
        %v930 = vpop.f32.mrb[0].mxu0
        %v931 = vadd.f32 %v837, %v930
        %v932 = vpop.f32.mrb[0].mxu0
        %933 = vmatprep.mubr.f32.mxu0 0.0
        %934 = vmatmul.mubr.f32.gmra.mrb[0].mxu0 %v806
        %v935 = vpop.f32.mrb[0].mxu0
        %v936 = vadd.f32 %v837, %v935
        %v937 = vpop.f32.mrb[0].mxu0
        %938 = vmatprep.mubr.f32.mxu0 0.0
        %939 = vmatmul.mubr.f32.gmra.mrb[0].mxu0 %v807
        %v940 = vpop.f32.mrb[0].mxu0
        %v941 = vadd.f32 %v837, %v940
        %v942 = vpop.f32.mrb[0].mxu0
        %943 = vmatprep.mubr.f32.mxu0 0.0
        %944 = vmatmul.mubr.f32.gmra.mrb[0].mxu0 %v808
        %v945 = vpop.f32.mrb[0].mxu0
        %v946 = vadd.f32 %v837, %v945
        %v947 = vpop.f32.mrb[0].mxu0
        %948 = vmatprep.mubr.f32.mxu0 0.0
        %949 = vmatmul.mubr.f32.gmra.mrb[0].mxu0 %v809
        %v950 = vpop.f32.mrb[0].mxu0
        %v951 = vadd.f32 %v837, %v950
        %v952 = vpop.f32.mrb[0].mxu0
        %953 = vmatprep.mubr.f32.mxu0 0.0
        %954 = vmatmul.mubr.f32.gmra.mrb[0].mxu0 %v810
        %v955 = vpop.f32.mrb[0].mxu0
        %v956 = vadd.f32 %v837, %v955
        %v957 = vpop.f32.mrb[0].mxu0
        %958 = vmatprep.mubr.f32.mxu0 0.0
        %959 = vmatmul.mubr.f32.gmra.mrb[0].mxu0 %v811
        %v960 = vpop.f32.mrb[0].mxu0
        %v961 = vadd.f32 %v837, %v960
        %v962 = vpop.f32.mrb[0].mxu0
        %963 = vmatprep.mubr.f32.mxu0 0.0
        %964 = vmatmul.mubr.f32.gmra.mrb[0].mxu0 %v812
        %v965 = vpop.f32.mrb[0].mxu0
        %v966 = vadd.f32 %v837, %v965
        %v967 = vpop.f32.mrb[0].mxu0
        %968 = vmatprep.mubr.f32.mxu0 0.0
        %969 = vmatmul.mubr.f32.gmra.mrb[0].mxu0 %v813
        %v970 = vpop.f32.mrb[0].mxu0
        %v971 = vadd.f32 %v837, %v970
        %v972 = vpop.f32.mrb[0].mxu0
        %973 = vmatprep.mubr.f32.mxu0 0.0
        %974 = vmatmul.mubr.f32.gmra.mrb[0].mxu0 %v814
        %v975 = vpop.f32.mrb[0].mxu0
        %v976 = vadd.f32 %v837, %v975
        %v977 = vpop.f32.mrb[0].mxu0
        %978 = vmatprep.mubr.f32.mxu0 0.0
        %979 = vmatmul.mubr.f32.gmra.mrb[0].mxu0 %v815
        %v980 = vpop.f32.mrb[0].mxu0
        %v981 = vadd.f32 %v837, %v980
        %v982 = vpop.f32.mrb[0].mxu0
        %983 = vdwg.mxu0
        %v984 = vmul.f32 %v906, 0.5
        %v985 = vmul.f32 %v911, 0.5
        %v986 = vmul.f32 %v916, 0.5
        %v987 = vmul.f32 %v921, 0.5
        %v988 = vmul.f32 %v926, 0.5
        %v989 = vmul.f32 %v931, 0.5
        %v990 = vmul.f32 %v936, 0.5
        %v991 = vmul.f32 %v941, 0.5
        %v992 = vmul.f32 %v946, 0.5
        %v993 = vmul.f32 %v951, 0.5
        %v994 = vmul.f32 %v956, 0.5
        %v995 = vmul.f32 %v961, 0.5
        %v996 = vmul.f32 %v966, 0.5
        %v997 = vmul.f32 %v971, 0.5
        %v998 = vmul.f32 %v976, 0.5
        %v999 = vmul.f32 %v981, 0.5
        %v1000 = vmul.f32 %v906, 0.70710677
        %v1001 = vmul.f32 %v911, 0.70710677
        %v1002 = vmul.f32 %v916, 0.70710677
        %v1003 = vmul.f32 %v921, 0.70710677
        %v1004 = vmul.f32 %v926, 0.70710677
        %v1005 = vmul.f32 %v931, 0.70710677
        %v1006 = vmul.f32 %v936, 0.70710677
        %v1007 = vmul.f32 %v941, 0.70710677
        %v1008 = vmul.f32 %v946, 0.70710677
        %v1009 = vmul.f32 %v951, 0.70710677
        %v1010 = vmul.f32 %v956, 0.70710677
        %v1011 = vmul.f32 %v961, 0.70710677
        %v1012 = vmul.f32 %v966, 0.70710677
        %v1013 = vmul.f32 %v971, 0.70710677
        %v1014 = vmul.f32 %v976, 0.70710677
        %v1015 = vmul.f32 %v981, 0.70710677
        %v1016 = verf.f32.pop %v1000
        %v1017 = verf.f32.pop %v1001
        %v1018 = verf.f32.pop %v1002
        %v1019 = verf.f32.pop %v1003
        %v1020 = verf.f32.pop %v1004
        %v1021 = verf.f32.pop %v1005
        %v1022 = verf.f32.pop %v1006
        %v1023 = verf.f32.pop %v1007
        %v1024 = verf.f32.pop %v1008
        %v1025 = verf.f32.pop %v1009
        %v1026 = verf.f32.pop %v1010
        %v1027 = verf.f32.pop %v1011
        %v1028 = verf.f32.pop %v1012
        %v1029 = verf.f32.pop %v1013
        %v1030 = verf.f32.pop %v1014
        %v1031 = verf.f32.pop %v1015
        %v1032 = vadd.f32 %v1016, 1.0
        %v1033 = vadd.f32 %v1017, 1.0
        %v1034 = vadd.f32 %v1018, 1.0
        %v1035 = vadd.f32 %v1019, 1.0
        %v1036 = vadd.f32 %v1020, 1.0
        %v1037 = vadd.f32 %v1021, 1.0
        %v1038 = vadd.f32 %v1022, 1.0
        %v1039 = vadd.f32 %v1023, 1.0
        %v1040 = vadd.f32 %v1024, 1.0
        %v1041 = vadd.f32 %v1025, 1.0
        %v1042 = vadd.f32 %v1026, 1.0
        %v1043 = vadd.f32 %v1027, 1.0
        %v1044 = vadd.f32 %v1028, 1.0
        %v1045 = vadd.f32 %v1029, 1.0
        %v1046 = vadd.f32 %v1030, 1.0
        %v1047 = vadd.f32 %v1031, 1.0
        %v1048 = vmul.f32 %v984, %v1032
        %v1049 = vmul.f32 %v985, %v1033
        %v1050 = vmul.f32 %v986, %v1034
        %v1051 = vmul.f32 %v987, %v1035
        %v1052 = vmul.f32 %v988, %v1036
        %v1053 = vmul.f32 %v989, %v1037
        %v1054 = vmul.f32 %v990, %v1038
        %v1055 = vmul.f32 %v991, %v1039
        %v1056 = vmul.f32 %v992, %v1040
        %v1057 = vmul.f32 %v993, %v1041
        %v1058 = vmul.f32 %v994, %v1042
        %v1059 = vmul.f32 %v995, %v1043
        %v1060 = vmul.f32 %v996, %v1044
        %v1061 = vmul.f32 %v997, %v1045
        %v1062 = vmul.f32 %v998, %v1046
        %v1063 = vmul.f32 %v999, %v1047
        %v1064 = vld [vmem:[#allocation14] sm:$0x1]
        %v1066 = vlaneseq
        %v1067 = vshrl.u32 %v1066, 7
        %v1068 = vsub.s32 0, %v1067
        %v1069 = vrot.slane %v1064, %v1068
        %v1071 = vmul.f32 %v1048, %v1069
        %v1072 = vmul.f32 %v1049, %v1069
        %v1073 = vmul.f32 %v1050, %v1069
        %v1074 = vmul.f32 %v1051, %v1069
        %v1075 = vmul.f32 %v1052, %v1069
        %v1076 = vmul.f32 %v1053, %v1069
        %v1077 = vmul.f32 %v1054, %v1069
        %v1078 = vmul.f32 %v1055, %v1069
        %v1079 = vmul.f32 %v1056, %v1069
        %v1080 = vmul.f32 %v1057, %v1069
        %v1081 = vmul.f32 %v1058, %v1069
        %v1082 = vmul.f32 %v1059, %v1069
        %v1083 = vmul.f32 %v1060, %v1069
        %v1084 = vmul.f32 %v1061, %v1069
        %v1085 = vmul.f32 %v1062, %v1069
        %v1086 = vmul.f32 %v1063, %v1069
        %v1087 = vld [vmem:[#allocation16] sm:$0x1]
        %v1089 = vlaneseq
        %v1090 = vshrl.u32 %v1089, 7
        %v1091 = vsub.s32 0, %v1090
        %v1092 = vrot.slane %v1087, %v1091
        %v1094 = vadd.f32 %v1071, %v1092
        %v1095 = vadd.f32 %v1072, %v1092
        %v1096 = vadd.f32 %v1073, %v1092
        %v1097 = vadd.f32 %v1074, %v1092
        %v1098 = vadd.f32 %v1075, %v1092
        %v1099 = vadd.f32 %v1076, %v1092
        %v1100 = vadd.f32 %v1077, %v1092
        %v1101 = vadd.f32 %v1078, %v1092
        %v1102 = vadd.f32 %v1079, %v1092
        %v1103 = vadd.f32 %v1080, %v1092
        %v1104 = vadd.f32 %v1081, %v1092
        %v1105 = vadd.f32 %v1082, %v1092
        %v1106 = vadd.f32 %v1083, %v1092
        %v1107 = vadd.f32 %v1084, %v1092
        %v1108 = vadd.f32 %v1085, %v1092
        %v1109 = vadd.f32 %v1086, %v1092
        %1110 = vxpose.xlu0.b32.start [1/16] %v1094, 128
        %1111 = vxpose.xlu0.b32.cont [2/16] %v1095, 128
        %1112 = vxpose.xlu0.b32.cont [3/16] %v1096, 128
        %1113 = vxpose.xlu0.b32.cont [4/16] %v1097, 128
        %1114 = vxpose.xlu0.b32.cont [5/16] %v1098, 128
        %1115 = vxpose.xlu0.b32.cont [6/16] %v1099, 128
        %1116 = vxpose.xlu0.b32.cont [7/16] %v1100, 128
        %1117 = vxpose.xlu0.b32.cont [8/16] %v1101, 128
        %1118 = vxpose.xlu0.b32.cont [9/16] %v1102, 128
        %1119 = vxpose.xlu0.b32.cont [10/16] %v1103, 128
        %1120 = vxpose.xlu0.b32.cont [11/16] %v1104, 128
        %1121 = vxpose.xlu0.b32.cont [12/16] %v1105, 128
        %1122 = vxpose.xlu0.b32.cont [13/16] %v1106, 128
        %1123 = vxpose.xlu0.b32.cont [14/16] %v1107, 128
        %1124 = vxpose.xlu0.b32.cont [15/16] %v1108, 128
        %1125 = vxpose.xlu0.b32.end [16/16] %v1109, 128
        %v1126 = vpop.trf.xlu0
        %v1127 = vpop.trf.xlu0
        %v1128 = vpop.trf.xlu0
        %v1129 = vpop.trf.xlu0
        %v1130 = vpop.trf.xlu0
        %v1131 = vpop.trf.xlu0
        %v1132 = vpop.trf.xlu0
        %v1133 = vpop.trf.xlu0
        %v1134 = vpop.trf.xlu0
        %v1135 = vpop.trf.xlu0
        %v1136 = vpop.trf.xlu0
        %v1137 = vpop.trf.xlu0
        %v1138 = vpop.trf.xlu0
        %v1139 = vpop.trf.xlu0
        %v1140 = vpop.trf.xlu0
        %v1141 = vpop.trf.xlu0
        %1142 = vst [vmem:[%s470] sm:$0xff] %v1126
        %1143 = vst [vmem:[%s470 + $0x8] sm:$0xff] %v1127
        %s1144 = sand.u32 %s248, 1
        %s1145 = scalar_lea.sflag [#allocation4], %s1144
        %s1146 = sand.u32 %s248, 1
        %s1147 = smul.addr %s1146, 16
        %s1148 = scalar_lea.vmem [#allocation17], %s1147
        // Predicated region
        $region93: #{series_embedding.5} parent=55 // pred_check
          %p1149 = pneg %p258
        $region94: #{series_embedding.5} parent=55 // pred_check_branch
          %1151 = sbr.rel (%p1149) target = $region96
        $region95: #{series_embedding.5} parent=55 // pred_region
          %s1153 = ssub.s32 256, 256
          %1154 = vsyncadd %s1145, %s1153
          %s1155 = smul.addr %s34, 2
          %s1156 = sadd.s32 %s35, %s1155
          %s1157 = smul.addr %s1156, 128
          %s1158 = scalar_lea.hbm %s9, %s1157
          %s1159 = sshll.u32 %s1148, 4
          %s1160 = int_to_ptr.vmem [resolvable:$true] %s1159
          %1165 = dma.vmem_to_hbm [thread:$0]  %s1160, 256, %s1158, %s1145, 128, 128, 8
        $region96: #{series_embedding.5} parent=55 // pred_fallthru
          _
      $region56: #{series_embedding.5} parent=5 // pred_fallthru
        _
      %p1166 = scmp.le.s32.totalorder 2, %s25
      // Predicated region
      $region97: #{series_embedding.5} parent=5 // pred_check
        %p1167 = pneg %p1166
      $region98: #{series_embedding.5} parent=5 // pred_check_branch
        %1169 = sbr.rel (%p1167) target = $region100
      $region99: #{series_embedding.5} parent=5 // pred_region
        %s1170 = ssub.s32 %s25, 2
        // Predicated region
        $region101: #{series_embedding.5} parent=99 // pred_check
          %p1171 = pneg %p264
        $region102: #{series_embedding.5} parent=99 // pred_check_branch
          %1173 = sbr.rel (%p1171) target = $region104
        $region103: #{series_embedding.5} parent=99 // pred_region
          %s1174 = sand.u32 %s249, 1
          %s1175 = scalar_lea.sflag [#allocation4], %s1174
          %s1176 = sand.u32 %s249, 1
          %s1177 = smul.addr %s1176, 16
          %s1178 = scalar_lea.vmem [#allocation17], %s1177
          %1179 = dma.done %s1175, 256
        $region104: #{series_embedding.5} parent=99 // pred_fallthru
          _
      $region100: #{series_embedding.5} parent=5 // pred_fallthru
        _
    $region6: #{series_embedding.5} parent=1 // loop_footer
      %s29 = sadd.s32 1, %s25
    $region7: #{series_embedding.5} parent=1 // loop_footer_branch
      %24 = sbr.rel target = $region3
    $region8: #{series_embedding.5} parent=1 // loop_exit
      _
    %1180 = vsyncpa [#allocation3], 1
    %s1181 = scalar_lea.sflag [#allocation3], 1
    %1182 = vsyncpa %s1181, 1
    %1183 = vsyncpa [#allocation6], 1
    %1184 = vsyncpa [#allocation9], 1
    %1185 = vsyncpa [#allocation12], 1
    %1186 = vsyncpa [#allocation15], 1
    %1187 = vsyncpa [#allocation4], 1
    %s1188 = scalar_lea.sflag [#allocation4], 1
    %1189 = vsyncpa %s1188, 1

</llo_original>
